<compile_context>
chip_gen: v5e
topology: v5e:2x2
jax: 0.10.0
libtpu: 0.0.40
codegen_flags: <defaults>
</compile_context>

<pallas_src>
import jax
import jax.numpy as jnp
from jax.experimental import pallas as pl
from jax.experimental.pallas import tpu as pltpu


# ---------------------------------------------------------------------------
# Conv2d (SAME) + folded BatchNorm + optional ReLU + fused residual/style adds
# ---------------------------------------------------------------------------

def _choose_row_tile(H, W, Wp, tci, cout, kh, has_map,
                     budget_bytes=8 * 1024 * 1024):
    """Largest row tile TH (divisor of H) whose per-step VMEM stays bounded."""
    for th in range(H, 0, -1):
        if H % th:
            continue
        halo = th + kh - 1
        x_b = halo * Wp * tci * 2                          # bf16 input block
        cat_b = halo * W * kh * tci * 2 if kh > 1 else 0   # in-kernel dx-concat temp
        out_b = th * W * cout * 4                          # f32 output block
        map_b = th * W * cout * 4 if has_map else 0
        acc_b = th * W * cout * 4
        est = 2 * (x_b + out_b + map_b) + acc_b + 2 * cat_b   # x2: double-buffering
        if est <= budget_bytes:
            return th
    return 1


def _make_conv_kernel(kh, TH, W, tci, cout, relu, has_map, has_vec, multi_ci):
    kw = kh

    def kernel(*refs):
        x_ref, w_ref, s_ref, b_ref = refs[:4]
        idx = 4
        m_ref = v_ref = None
        if has_map:
            m_ref = refs[idx]; idx += 1
        if has_vec:
            v_ref = refs[idx]; idx += 1
        o_ref = refs[idx]; idx += 1
        acc_ref = refs[idx] if multi_ci else None

        def contribution():
            slab = x_ref[...]                              # (TH+kh-1, Wp, tci) bf16
            if kh == 1:
                patch = slab.reshape(TH * W, tci)
                return jnp.dot(patch, w_ref[0],
                               preferred_element_type=jnp.float32)
            # Fold the kw taps into the contraction dim: K = kw*tci,
            # kh matmuls instead of kh*kw (fewer f32 accumulator adds, fuller MXU K).
            cat = jnp.concatenate(
                [slab[:, dx:dx + W, :] for dx in range(kw)], axis=-1)
            acc = None
            for dy in range(kh):
                patch = cat[dy:dy + TH].reshape(TH * W, kw * tci)
                part = jnp.dot(patch, w_ref[dy],
                               preferred_element_type=jnp.float32)
                acc = part if acc is None else acc + part
            return acc

        def finalize(acc):
            y = acc * s_ref[...] + b_ref[...]              # (TH*W, Cout) f32
            if relu:
                y = jnp.maximum(y, 0.0)
            if has_vec:
                y = y + v_ref[...]                         # (1, Cout) broadcast
            y = y.reshape(TH, W, cout)
            if has_map:
                y = y + m_ref[...]
            o_ref[...] = y.astype(o_ref.dtype)

        if not multi_ci:
            # Single channel tile: no scratch round trip, write o_ref once.
            finalize(contribution())
        else:
            ci = pl.program_id(2)

            @pl.when(ci == 0)
            def _init():
                acc_ref[...] = jnp.zeros_like(acc_ref)

            acc_ref[...] += contribution()

            @pl.when(ci == pl.num_programs(2) - 1)
            def _fin():
                finalize(acc_ref[...])

    return kernel


def conv2d_bn_act(x, w, scale, bias, *, relu, add_map=None, add_vec=None,
                  in_add_vec=None, row_tile=None):
    """x: (N,H,W,Cin) f32; w: (kh,kw,Cin,Cout) HWIO; scale/bias: (Cout,).

    Returns post_adds(relu(conv_same(x + in_add_vec, w) * scale + bias)), f32 NHWC.
      add_map:    (N,H,W,Cout) residual added after the activation.
      add_vec:    (N,Cout) per-sample channel bias added after the activation.
      in_add_vec: (N,Cout) per-sample channel bias added to the INPUT before the
                  conv (fused into the same pad + bf16-cast pass).
    """
    N, H, W, Cin = x.shape
    kh, kw, wcin, Cout = w.shape
    assert wcin == Cin and kh == kw and kh % 2 == 1
    assert W % 8 == 0, "W must be a multiple of 8 for the in-kernel flatten"
    p = kh // 2

    if in_add_vec is not None:
        x = x + in_add_vec[:, None, None, :]
    xp = jnp.pad(x, ((0, 0), (p, p), (p, p), (0, 0))) if p else x
    xp = xp.astype(jnp.bfloat16)        # add + pad + cast fuse into one XLA pass
    Wp = W + 2 * p

    # Input-channel reduction tile: full Cin when small, else 256 (fills the
    # 256-wide MXU contraction on v6e/v7x; also fine on v5e).
    if Cin <= 256:
        tci = Cin
    elif Cin % 256 == 0:
        tci = 256
    elif Cin % 128 == 0:
        tci = 128
    else:
        tci = Cin
    n_ci = Cin // tci
    multi_ci = n_ci > 1

    # Row tiling keeps per-step VMEM bounded and independent of image size.
    if row_tile is not None:
        assert H % row_tile == 0
        TH = row_tile
    else:
        TH = _choose_row_tile(H, W, Wp, tci, Cout, kh, add_map is not None)
    n_h = H // TH
    halo = TH + 2 * p

    # Pre-split overlapping (halo) row tiles so every BlockSpec stays Blocked.
    if n_h == 1:
        x_split = xp[:, None]                              # (N,1,Hp,Wp,Cin)
    elif p == 0:
        x_split = xp.reshape(N, n_h, TH, Wp, Cin)          # free (row-major)
    else:
        rows = jnp.arange(n_h)[:, None] * TH + jnp.arange(halo)[None, :]
        x_split = xp[:, rows]                              # (N,n_h,halo,Wp,Cin)

    # Weights: fold kw into the contraction dim per ci tile; cast to bf16.
    w_r = (w.reshape(kh, kw, n_ci, tci, Cout)
            .transpose(0, 2, 1, 3, 4)
            .reshape(kh, n_ci, kw * tci, Cout)
            .astype(jnp.bfloat16))

    scale2 = scale.reshape(1, Cout).astype(jnp.float32)
    bias2 = bias.reshape(1, Cout).astype(jnp.float32)

    if multi_ci:
        grid = (N, n_h, n_ci)
        x_map = lambda n, h, ci: (n, h, 0, 0, ci)
        w_map = lambda n, h, ci: (0, ci, 0, 0)
        s_map = lambda n, h, ci: (0, 0)
        m_map = lambda n, h, ci: (n, h, 0, 0)
        v_map = lambda n, h, ci: (n, 0, 0)
        o_map = lambda n, h, ci: (n, h, 0, 0)
        semantics = ("parallel", "parallel", "arbitrary")
        scratch = [pltpu.VMEM((TH * W, Cout), jnp.float32)]
    else:
        grid = (N, n_h)
        x_map = lambda n, h: (n, h, 0, 0, 0)
        w_map = lambda n, h: (0, 0, 0, 0)      # constant -> weights stay resident
        s_map = lambda n, h: (0, 0)
        m_map = lambda n, h: (n, h, 0, 0)
        v_map = lambda n, h: (n, 0, 0)
        o_map = lambda n, h: (n, h, 0, 0)
        semantics = ("parallel", "parallel")
        scratch = []

    in_specs = [
        pl.BlockSpec((None, None, halo, Wp, tci), x_map),
        pl.BlockSpec((kh, None, kw * tci, Cout), w_map),
        pl.BlockSpec((1, Cout), s_map),
        pl.BlockSpec((1, Cout), s_map),
    ]
    inputs = [x_split, w_r, scale2, bias2]
    if add_map is not None:
        in_specs.append(pl.BlockSpec((None, TH, W, Cout), m_map))
        inputs.append(add_map)
    if add_vec is not None:
        in_specs.append(pl.BlockSpec((None, 1, Cout), v_map))
        inputs.append(add_vec.reshape(N, 1, Cout))

    kernel = _make_conv_kernel(kh, TH, W, tci, Cout, relu,
                               add_map is not None, add_vec is not None,
                               multi_ci)

    return pl.pallas_call(
        kernel,
        out_shape=jax.ShapeDtypeStruct((N, H, W, Cout), jnp.float32),
        grid_spec=pltpu.PrefetchScalarGridSpec(
            num_scalar_prefetch=0,
            grid=grid,
            in_specs=in_specs,
            out_specs=pl.BlockSpec((None, TH, W, Cout), o_map),
            scratch_shapes=scratch,
        ),
        compiler_params=pltpu.CompilerParams(
            dimension_semantics=semantics,
            vmem_limit_bytes=32 * 1024 * 1024),
    )(*inputs)


def _fold_bn(conv_bias, gamma, beta, mean, var, eps=1e-5):
    # Inference-mode BatchNorm folded into a per-channel scale / bias.
    scale = gamma * jax.lax.rsqrt(var + eps)
    bias = (conv_bias - mean) * scale + beta
    return scale, bias


def conv_block(x, p, *, relu=True, add_map=None, add_vec=None, in_add_vec=None):
    scale, bias = _fold_bn(p["b"], p["gamma"], p["beta"], p["mean"], p["var"])
    return conv2d_bn_act(x, p["w"], scale, bias, relu=relu, add_map=add_map,
                         add_vec=add_vec, in_add_vec=in_add_vec)


# ---------------------------------------------------------------------------
# Linear (the three style FCs fused into one matmul)
# ---------------------------------------------------------------------------

def _linear_kernel(x_ref, w_ref, b_ref, o_ref):
    o_ref[...] = (jnp.dot(x_ref[...], w_ref[...],
                          preferred_element_type=jnp.float32)
                  + b_ref[...]).astype(o_ref.dtype)


def linear(x, w, b):
    """x: (N,S); w: (S,C); b: (C,) -> (N,C)."""
    N, S = x.shape
    _, C = w.shape
    return pl.pallas_call(
        _linear_kernel,
        out_shape=jax.ShapeDtypeStruct((N, C), jnp.float32),
        in_specs=[pl.BlockSpec((N, S), lambda: (0, 0)),
                  pl.BlockSpec((S, C), lambda: (0, 0)),
                  pl.BlockSpec((1, C), lambda: (0, 0))],
        out_specs=pl.BlockSpec((N, C), lambda: (0, 0)),
    )(x, w, b.reshape(1, C))


# ---------------------------------------------------------------------------
# Nearest-neighbor 2x upsample kernel (NHWC), row-tiled
# ---------------------------------------------------------------------------

def _upsample2x_kernel(x_ref, o_ref):
    # x_ref: (R, W, C); o_ref: (R, 2, W, 2C)
    # o[i, di, j, dj*C + c] = x[i, j, c]  -- same row-major linearization as the
    # nearest-2x output (2H, 2W, C), so the wrapper reshapes are free.
    x = x_ref[...]
    wide = jnp.concatenate([x, x], axis=-1)                # (R, W, 2C)
    o_ref[...] = jnp.broadcast_to(wide[:, None, :, :], o_ref.shape)


def upsample2x_nearest(x, target_block_bytes=2 * 1024 * 1024):
    """NHWC nearest 2x: (N,H,W,C) -> (N,2H,2W,C), ~1-2 MB output blocks."""
    N, H, W, C = x.shape
    R = N * H
    itemsize = x.dtype.itemsize
    r_blk = 1
    for cand in range(R, 0, -1):
        if R % cand == 0 and cand * 2 * W * 2 * C * itemsize <= target_block_bytes:
            r_blk = cand
            break
    x3 = x.reshape(R, W, C)                                # free (row-major)
    out = pl.pallas_call(
        _upsample2x_kernel,
        out_shape=jax.ShapeDtypeStruct((R, 2, W, 2 * C), x.dtype),
        grid_spec=pltpu.PrefetchScalarGridSpec(
            num_scalar_prefetch=0,
            grid=(R // r_blk,),
            in_specs=[pl.BlockSpec((r_blk, W, C), lambda r: (r, 0, 0))],
            out_specs=pl.BlockSpec((r_blk, 2, W, 2 * C), lambda r: (r, 0, 0, 0)),
        ),
        compiler_params=pltpu.CompilerParams(dimension_semantics=("parallel",)),
    )(x3)
    return out.reshape(N, 2 * H, 2 * W, C)                 # free (row-major)


# ---------------------------------------------------------------------------
# ResUp block and UpSample forward (NCHW interface like the PyTorch module)
# ---------------------------------------------------------------------------

def res_up(x, y_resdown, style, p):
    """x, y_resdown: NHWC; style: (N, style_channels)."""
    cout = p["skip"]["w"].shape[-1]
    skip = conv_block(x, p["skip"], relu=False)                     # SkipConv
    fc = linear(style, p["fc_w"], p["fc_b"])                        # fused 3 FCs
    fc0, fc1, fc2 = fc[:, :cout], fc[:, cout:2 * cout], fc[:, 2 * cout:]
    h1 = conv_block(x, p["conv0"], add_map=y_resdown, add_vec=fc0)
    h2 = conv_block(h1, p["conv1"], add_map=skip)                   # second_block
    h3 = conv_block(h2, p["conv2"], add_vec=fc2, in_add_vec=fc1)    # fc1 fused in pad
    return conv_block(h3, p["conv3"], add_map=h2)


def upsample_forward(x_nchw, style, out_resdown_nchw, params):
    """Matches UpSample.forward (NCHW in / NCHW out)."""
    x = jnp.transpose(x_nchw, (0, 2, 3, 1))                         # -> NHWC
    blocks = params["blocks"]
    for idx in range(len(blocks)):
        y = jnp.transpose(out_resdown_nchw[idx], (0, 2, 3, 1))
        x = res_up(x, y, style, blocks[idx])
        if idx < len(blocks) - 1:
            x = upsample2x_nearest(x)
    return jnp.transpose(x, (0, 3, 1, 2))                           # -> NCHW


# ---------------------------------------------------------------------------
# Pure-JAX reference (mirrors the PyTorch forward, eval-mode BatchNorm)
# ---------------------------------------------------------------------------

def _conv_block_ref(x, p, relu=True, eps=1e-5):
    kh = p["w"].shape[0]
    pad = kh // 2
    y = jax.lax.conv_general_dilated(
        x, p["w"], window_strides=(1, 1), padding=[(pad, pad), (pad, pad)],
        dimension_numbers=("NHWC", "HWIO", "NHWC"),
        precision=jax.lax.Precision.HIGHEST)
    y = y + p["b"]
    y = (y - p["mean"]) * p["gamma"] / jnp.sqrt(p["var"] + eps) + p["beta"]
    return jnp.maximum(y, 0.0) if relu else y


def _linear_ref(x, w, b):
    return jnp.dot(x, w, precision=jax.lax.Precision.HIGHEST) + b


def _res_up_ref(x, y_resdown, style, p):
    cout = p["skip"]["w"].shape[-1]
    skip = _conv_block_ref(x, p["skip"], relu=False)
    fc = _linear_ref(style, p["fc_w"], p["fc_b"])
    fc0, fc1, fc2 = fc[:, :cout], fc[:, cout:2 * cout], fc[:, 2 * cout:]
    h1 = _conv_block_ref(x, p["conv0"]) + y_resdown + fc0[:, None, None, :]
    h2 = _conv_block_ref(h1, p["conv1"]) + skip
    h3 = _conv_block_ref(h2 + fc1[:, None, None, :], p["conv2"]) + fc2[:, None, None, :]
    return _conv_block_ref(h3, p["conv3"]) + h2


def upsample_forward_ref(x_nchw, style, out_resdown_nchw, params):
    x = jnp.transpose(x_nchw, (0, 2, 3, 1))
    blocks = params["blocks"]
    for idx in range(len(blocks)):
        y = jnp.transpose(out_resdown_nchw[idx], (0, 2, 3, 1))
        x = _res_up_ref(x, y, style, blocks[idx])
        if idx < len(blocks) - 1:
            x = jnp.repeat(jnp.repeat(x, 2, axis=1), 2, axis=2)
    return jnp.transpose(x, (0, 3, 1, 2))


# ---------------------------------------------------------------------------
# Parameter construction (HWIO conv weights; eval-mode BN parameters)
# ---------------------------------------------------------------------------

def _init_conv_bn(key, kh, cin, cout):
    kw_, kb, kg, kbe, km, kv = jax.random.split(key, 6)
    fan_in = kh * kh * cin
    return dict(
        w=jax.random.normal(kw_, (kh, kh, cin, cout), jnp.float32) / jnp.sqrt(fan_in),
        b=0.1 * jax.random.normal(kb, (cout,), jnp.float32),
        gamma=1.0 + 0.1 * jax.random.normal(kg, (cout,), jnp.float32),
        beta=0.1 * jax.random.normal(kbe, (cout,), jnp.float32),
        mean=0.1 * jax.random.normal(km, (cout,), jnp.float32),
        var=jax.random.uniform(kv, (cout,), jnp.float32, 0.5, 1.5),
    )


def _init_resup(key, cin, cout, s):
    keys = jax.random.split(key, 7)
    return dict(
        skip=_init_conv_bn(keys[0], 1, cin, cout),
        conv0=_init_conv_bn(keys[1], 3, cin, cout),
        conv1=_init_conv_bn(keys[2], 3, cout, cout),
        conv2=_init_conv_bn(keys[3], 3, cout, cout),
        conv3=_init_conv_bn(keys[4], 3, cout, cout),
        fc_w=jax.random.normal(keys[5], (s, 3 * cout), jnp.float32) / jnp.sqrt(s),
        fc_b=0.1 * jax.random.normal(keys[6], (3 * cout,), jnp.float32),
    )


def init_upsample_params(key, c_hiddens, s):
    keys = jax.random.split(key, len(c_hiddens) - 1)
    return dict(blocks=[_init_resup(keys[i], c_hiddens[i], c_hiddens[i + 1], s)
                        for i in range(len(c_hiddens) - 1)])


if __name__ == "__main__":
    key = jax.random.PRNGKey(0)

    # --- unit check: channel-tiled reduction (n_ci=2) + row tiling (n_h=2) ---
    kc0, kc1 = jax.random.split(key, 2)
    xt = jax.random.normal(kc0, (1, 16, 16, 512), jnp.float32)
    wt = jax.random.normal(kc1, (3, 3, 512, 128), jnp.float32) / jnp.sqrt(9 * 512)
    yt = jax.block_until_ready(
        conv2d_bn_act(xt, wt, jnp.ones((128,), jnp.float32),
                      jnp.zeros((128,), jnp.float32), relu=False, row_tile=8))
    yt_ref = jax.lax.conv_general_dilated(
        xt, wt, (1, 1), [(1, 1), (1, 1)],
        dimension_numbers=("NHWC", "HWIO", "NHWC"),
        precision=jax.lax.Precision.HIGHEST)
    rel_c = jnp.linalg.norm(yt - yt_ref) / jnp.linalg.norm(yt_ref)
    assert rel_c < 2e-2, f"conv unit check failed: rel={float(rel_c)}"

    # --- end-to-end UpSample (small version of c_hiddens=[256,256,128,64,32]) ---
    c_hiddens = [16, 16, 8]
    N, H0, W0, S = 2, 8, 8, 256          # style_channels=256 (fixed in the module)
    k_x, k_s, k_r, k_p = jax.random.split(key, 4)
    x = jax.random.normal(k_x, (N, c_hiddens[0], H0, W0), jnp.float32)
    style = jax.random.normal(k_s, (N, S), jnp.float32)
    out_resdown = []
    r_keys = jax.random.split(k_r, len(c_hiddens) - 1)
    for i in range(len(c_hiddens) - 1):
        h = H0 * (2 ** i)
        out_resdown.append(jax.random.normal(
            r_keys[i], (N, c_hiddens[i + 1], h, h), jnp.float32))
    params = init_upsample_params(k_p, c_hiddens, S)

    fwd = jax.jit(upsample_forward)
    out = jax.block_until_ready(fwd(x, style, out_resdown, params))

    ref = upsample_forward_ref(x, style, out_resdown, params)
    final_hw = H0 * 2 ** (len(c_hiddens) - 2)
    assert out.shape == ref.shape == (N, c_hiddens[-1], final_hw, final_hw), out.shape
    # bf16 MXU operands (f32 accumulation) vs an f32 HIGHEST reference over an
    # 8-conv chain: allow 5% relative L2 (structural bugs would be >> this).
    rel = jnp.linalg.norm(out - ref) / jnp.linalg.norm(ref)
    assert rel < 5e-2, f"mismatch vs reference: rel={float(rel)}"

    print("KERNEL_OK")
</pallas_src>

<mosaic_0001>
module attributes {stable_mosaic.version = 11 : i64} {
  func.func @kernel(%arg0: i32, %arg1: i32, %arg2: i32, %arg3: memref<1x1x10x18x256xbf16, #tpu.memory_space<vmem>>, %arg4: memref<3x1x768x128xbf16, #tpu.memory_space<vmem>>, %arg5: memref<1x128xf32, #tpu.memory_space<vmem>>, %arg6: memref<1x128xf32, #tpu.memory_space<vmem>>, %arg7: memref<1x8x16x128xf32, #tpu.memory_space<vmem>>, %arg8: memref<128x128xf32, #tpu.memory_space<vmem>>) attributes {dimension_semantics = [#tpu.dimension_semantics<parallel>, #tpu.dimension_semantics<parallel>, #tpu.dimension_semantics<arbitrary>], iteration_bounds = array<i64: 1, 2, 2>, scalar_prefetch = 0 : i64, scratch_operands = 1 : i64, tpu.core_type = #tpu.core_type<tc>, window_params = [{transform_indices = @transform_0, window_bounds = array<i64: 1, 1, 10, 18, 256>}, {transform_indices = @transform_1, window_bounds = array<i64: 3, 1, 768, 128>}, {pipeline_mode = #tpu.pipeline_mode<synchronous>, transform_indices = @transform_2, window_bounds = array<i64: 1, 128>}, {pipeline_mode = #tpu.pipeline_mode<synchronous>, transform_indices = @transform_3, window_bounds = array<i64: 1, 128>}, {transform_indices = @transform_4, window_bounds = array<i64: 1, 8, 16, 128>}]} {
    %c0_i32 = arith.constant 0 : i32
    %0 = arith.cmpi eq, %arg2, %c0_i32 : i32
    %1 = arith.extui %0 : i1 to i32
    %c0_i32_0 = arith.constant 0 : i32
    %2 = arith.cmpi ne, %1, %c0_i32_0 : i32
    scf.if %2 {
      %cst_22 = arith.constant 0.000000e+00 : f32
      %32 = vector.broadcast %cst_22 : f32 to vector<128x128xf32>
      %c0_23 = arith.constant 0 : index
      %c0_24 = arith.constant 0 : index
      %33 = vector.load %arg8[%c0_23, %c0_24] : memref<128x128xf32, #tpu.memory_space<vmem>>, vector<128x128xf32>
      tpu.vector_store %arg8[%c0_23, %c0_24], %32 {strides = array<i32>} : memref<128x128xf32, #tpu.memory_space<vmem>>, vector<128x128xf32>,
    } else {
    }
    %c0 = arith.constant 0 : index
    %c0_1 = arith.constant 0 : index
    %3 = vector.load %arg8[%c0, %c0_1] : memref<128x128xf32, #tpu.memory_space<vmem>>, vector<128x128xf32>
    %c0_2 = arith.constant 0 : index
    %c0_3 = arith.constant 0 : index
    %c0_4 = arith.constant 0 : index
    %c0_5 = arith.constant 0 : index
    %c0_6 = arith.constant 0 : index
    %4 = vector.load %arg3[%c0_2, %c0_3, %c0_4, %c0_5, %c0_6] : memref<1x1x10x18x256xbf16, #tpu.memory_space<vmem>>, vector<1x1x10x18x256xbf16>
    %5 = vector.shape_cast %4 : vector<1x1x10x18x256xbf16> to vector<10x18x256xbf16>
    %6 = vector.extract_strided_slice %5 {offsets = [0, 0, 0], sizes = [10, 16, 256], strides = [1, 1, 1]} : vector<10x18x256xbf16> to vector<10x16x256xbf16>
    %7 = vector.extract_strided_slice %5 {offsets = [0, 1, 0], sizes = [10, 16, 256], strides = [1, 1, 1]} : vector<10x18x256xbf16> to vector<10x16x256xbf16>
    %8 = vector.extract_strided_slice %5 {offsets = [0, 2, 0], sizes = [10, 16, 256], strides = [1, 1, 1]} : vector<10x18x256xbf16> to vector<10x16x256xbf16>
    %9 = tpu.concatenate %6, %7, %8 in 2 : vector<10x16x256xbf16>, vector<10x16x256xbf16>, vector<10x16x256xbf16> -> vector<10x16x768xbf16>
    %10 = vector.extract_strided_slice %9 {offsets = [0, 0, 0], sizes = [8, 16, 768], strides = [1, 1, 1]} : vector<10x16x768xbf16> to vector<8x16x768xbf16>
    %11 = vector.shape_cast %10 : vector<8x16x768xbf16> to vector<128x768xbf16>
    %c0_7 = arith.constant 0 : index
    %c0_8 = arith.constant 0 : index
    %c0_9 = arith.constant 0 : index
    %c0_10 = arith.constant 0 : index
    %12 = vector.load %arg4[%c0_7, %c0_8, %c0_9, %c0_10] : memref<3x1x768x128xbf16, #tpu.memory_space<vmem>>, vector<1x1x768x128xbf16>
    %13 = vector.shape_cast %12 : vector<1x1x768x128xbf16> to vector<768x128xbf16>
    %cst = arith.constant dense<0.000000e+00> : vector<128x128xf32>
    %14 = tpu.matmul %11, %13, %cst {dimension_numbers = #tpu.dot_dimension_numbers<[1], [0], [0], [1], [0, 0, 1, 1], [], []>} : vector<128x768xbf16>, vector<768x128xbf16>, vector<128x128xf32> -> vector<128x128xf32>
    %15 = vector.extract_strided_slice %9 {offsets = [1, 0, 0], sizes = [8, 16, 768], strides = [1, 1, 1]} : vector<10x16x768xbf16> to vector<8x16x768xbf16>
    %16 = vector.shape_cast %15 : vector<8x16x768xbf16> to vector<128x768xbf16>
    %c1 = arith.constant 1 : index
    %c0_11 = arith.constant 0 : index
    %c0_12 = arith.constant 0 : index
    %c0_13 = arith.constant 0 : index
    %17 = vector.load %arg4[%c1, %c0_11, %c0_12, %c0_13] : memref<3x1x768x128xbf16, #tpu.memory_space<vmem>>, vector<1x1x768x128xbf16>
    %18 = vector.shape_cast %17 : vector<1x1x768x128xbf16> to vector<768x128xbf16>
    %cst_14 = arith.constant dense<0.000000e+00> : vector<128x128xf32>
    %19 = tpu.matmul %16, %18, %cst_14 {dimension_numbers = #tpu.dot_dimension_numbers<[1], [0], [0], [1], [0, 0, 1, 1], [], []>} : vector<128x768xbf16>, vector<768x128xbf16>, vector<128x128xf32> -> vector<128x128xf32>
    %20 = arith.addf %14, %19 : vector<128x128xf32>
    %21 = vector.extract_strided_slice %9 {offsets = [2, 0, 0], sizes = [8, 16, 768], strides = [1, 1, 1]} : vector<10x16x768xbf16> to vector<8x16x768xbf16>
    %22 = vector.shape_cast %21 : vector<8x16x768xbf16> to vector<128x768xbf16>
    %c2 = arith.constant 2 : index
    %c0_15 = arith.constant 0 : index
    %c0_16 = arith.constant 0 : index
    %c0_17 = arith.constant 0 : index
    %23 = vector.load %arg4[%c2, %c0_15, %c0_16, %c0_17] : memref<3x1x768x128xbf16, #tpu.memory_space<vmem>>, vector<1x1x768x128xbf16>
    %24 = vector.shape_cast %23 : vector<1x1x768x128xbf16> to vector<768x128xbf16>
    %cst_18 = arith.constant dense<0.000000e+00> : vector<128x128xf32>
    %25 = tpu.matmul %22, %24, %cst_18 {dimension_numbers = #tpu.dot_dimension_numbers<[1], [0], [0], [1], [0, 0, 1, 1], [], []>} : vector<128x768xbf16>, vector<768x128xbf16>, vector<128x128xf32> -> vector<128x128xf32>
    %26 = arith.addf %20, %25 : vector<128x128xf32>
    %27 = arith.addf %3, %26 : vector<128x128xf32>
    %c0_19 = arith.constant 0 : index
    %c0_20 = arith.constant 0 : index
    %28 = vector.load %arg8[%c0_19, %c0_20] : memref<128x128xf32, #tpu.memory_space<vmem>>, vector<128x128xf32>
    tpu.vector_store %arg8[%c0_19, %c0_20], %27 {strides = array<i32>} : memref<128x128xf32, #tpu.memory_space<vmem>>, vector<128x128xf32>,
    %c1_i32 = arith.constant 1 : i32
    %29 = arith.cmpi eq, %arg2, %c1_i32 : i32
    %30 = arith.extui %29 : i1 to i32
    %c0_i32_21 = arith.constant 0 : i32
    %31 = arith.cmpi ne, %30, %c0_i32_21 : i32
    scf.if %31 {
      %c0_22 = arith.constant 0 : index
      %c0_23 = arith.constant 0 : index
      %32 = vector.load %arg8[%c0_22, %c0_23] : memref<128x128xf32, #tpu.memory_space<vmem>>, vector<128x128xf32>
      %c0_24 = arith.constant 0 : index
      %c0_25 = arith.constant 0 : index
      %33 = vector.load %arg5[%c0_24, %c0_25] : memref<1x128xf32, #tpu.memory_space<vmem>>, vector<1x128xf32>
      %34 = vector.broadcast %33 : vector<1x128xf32> to vector<128x128xf32>
      %35 = arith.mulf %32, %34 : vector<128x128xf32>
      %c0_26 = arith.constant 0 : index
      %c0_27 = arith.constant 0 : index
      %36 = vector.load %arg6[%c0_26, %c0_27] : memref<1x128xf32, #tpu.memory_space<vmem>>, vector<1x128xf32>
      %37 = vector.broadcast %36 : vector<1x128xf32> to vector<128x128xf32>
      %38 = arith.addf %35, %37 : vector<128x128xf32>
      %39 = vector.shape_cast %38 : vector<128x128xf32> to vector<8x16x128xf32>
      %c0_28 = arith.constant 0 : index
      %c0_29 = arith.constant 0 : index
      %c0_30 = arith.constant 0 : index
      %c0_31 = arith.constant 0 : index
      %40 = vector.load %arg7[%c0_28, %c0_29, %c0_30, %c0_31] : memref<1x8x16x128xf32, #tpu.memory_space<vmem>>, vector<1x8x16x128xf32>
      %41 = vector.shape_cast %40 : vector<1x8x16x128xf32> to vector<8x16x128xf32>
      %42 = vector.shape_cast %39 : vector<8x16x128xf32> to vector<1x8x16x128xf32>
      tpu.vector_store %arg7[%c0_28, %c0_29, %c0_30, %c0_31], %42 {strides = array<i32>} : memref<1x8x16x128xf32, #tpu.memory_space<vmem>>, vector<1x8x16x128xf32>,
    } else {
    }
    return
  }
  func.func @transform_0(%arg0: i32, %arg1: i32, %arg2: i32) -> (i32, i32, i32, i32, i32) {
    %c0_i32 = arith.constant 0 : i32
    %c0_i32_0 = arith.constant 0 : i32
    %c0_i32_1 = arith.constant 0 : i32
    return %arg0, %arg1, %c0_i32, %c0_i32_0, %arg2 : i32, i32, i32, i32, i32
  }
  func.func @transform_1(%arg0: i32, %arg1: i32, %arg2: i32) -> (i32, i32, i32, i32) {
    %c0_i32 = arith.constant 0 : i32
    %c0_i32_0 = arith.constant 0 : i32
    %c0_i32_1 = arith.constant 0 : i32
    %c0_i32_2 = arith.constant 0 : i32
    return %c0_i32, %arg2, %c0_i32_0, %c0_i32_1 : i32, i32, i32, i32
  }
  func.func @transform_2(%arg0: i32, %arg1: i32, %arg2: i32) -> (i32, i32) {
    %c0_i32 = arith.constant 0 : i32
    %c0_i32_0 = arith.constant 0 : i32
    %c0_i32_1 = arith.constant 0 : i32
    return %c0_i32, %c0_i32_0 : i32, i32
  }
  func.func @transform_3(%arg0: i32, %arg1: i32, %arg2: i32) -> (i32, i32) {
    %c0_i32 = arith.constant 0 : i32
    %c0_i32_0 = arith.constant 0 : i32
    %c0_i32_1 = arith.constant 0 : i32
    return %c0_i32, %c0_i32_0 : i32, i32
  }
  func.func @transform_4(%arg0: i32, %arg1: i32, %arg2: i32) -> (i32, i32, i32, i32) {
    %c0_i32 = arith.constant 0 : i32
    %c0_i32_0 = arith.constant 0 : i32
    %c0_i32_1 = arith.constant 0 : i32
    return %arg0, %arg1, %c0_i32, %c0_i32_0 : i32, i32, i32, i32
  }
}

</mosaic_0001>

<llo_original>
// kernel: tpu_custom_call.1
$region0: #{tpu_custom_call.1}
  #allocation0 [shape = 'u32[]', space=smem, size = 0x4, offset = 0x4, fixed_abs, tag = 'smem constant byte address 0x4 - core index']
  #allocation1 [shape = 'u32[72,128]{1,0:T(1,128)}', space=vmem, size = 0x9000, scoped, tag = 'internal scratch']
  #allocation2 [shape = 'f32[128,128]{1,0:T(8,128)}', space=vmem, size = 0x10000, scoped, tag = 'scratch operand']
  #allocation11 [shape = 's32[]', space=sflag, size = 0x4, offset = 0, fixed_abs, tag = 'sflag constant byte address 0x0 - dummy sync flag']
  %s0 = inlined_call_operand.vmem [shape: bf16[1,2,10,18,512], index: 0, kind: input, shape index: {}]
  %s1 = inlined_call_operand.hbm [shape: bf16[3,2,768,128], index: 1, kind: input, shape index: {}]
  %s2 = inlined_call_operand.hbm [shape: f32[1,128], index: 2, kind: input, shape index: {}]
  %s3 = inlined_call_operand.hbm [shape: f32[1,128], index: 3, kind: input, shape index: {}]
  %s4 = inlined_call_operand.hbm [shape: f32[1,16,16,128], index: 4, kind: output, shape index: {}]
  %s5 = sld [smem:[#allocation0]]
  $region107: #{tpu_custom_call.1} parent=0
    _
  %s7 = ssub.s32 1, %s5
  %s8 = scalar_select 0, %s7, %s5
  $region1: #{tpu_custom_call.1} parent=0
    #allocation3 [shape = 'u8[245760]{0}', space=vmem, size = 0x3c000, scoped, tag = 'input window, operand 0']
    #allocation4 [shape = 'u8[1179648]{0}', space=vmem, size = 0x120000, scoped, tag = 'input window, operand 1']
    #allocation5 [shape = 's32[2]{0}', space=sflag, size = 0x8, scoped, tag = 'scoped memory for tpu_custom_call.1']
    #allocation6 [shape = 's32[2]{0}', space=sflag, size = 0x8, scoped, tag = 'scoped memory for tpu_custom_call.1']
    #allocation7 [shape = 'u8[512]{0}', space=vmem, size = 0x400, scoped, tag = 'input window, operand 2, single buffered']
    #allocation8 [shape = 's32[1]{0}', space=sflag, size = 0x4, scoped, tag = 'scoped memory for tpu_custom_call.1']
    #allocation9 [shape = 'u8[512]{0}', space=vmem, size = 0x400, scoped, tag = 'input window, operand 3, single buffered']
    #allocation10 [shape = 'u8[131072]{0}', space=vmem, size = 0x20000, scoped, tag = 'output window, operand 0']
    %9 = vsyncpa [#allocation5], 0
    %s10 = scalar_lea.sflag [#allocation5], 1
    %11 = vsyncpa %s10, 0
    %12 = vsyncpa [#allocation8], 0
    %13 = vsyncpa [#allocation6], 0
    %s14 = scalar_lea.sflag [#allocation6], 1
    %15 = vsyncpa %s14, 0
    loop: start=0, step=1, limit=6
    $region2: #{tpu_custom_call.1} parent=1 // loop_pre_header
      _
    $region3: #{tpu_custom_call.1} parent=1 // loop_header
      %s17 = sphi 0, %s21
      %p18 = scmp.ge.s32.totalorder %s17, 6
      %s24 = sphi 0, %s43
      %s25 = sphi 0, %s39
      %s26 = sphi 0, %s35
      %s27 = sphi 0, %s24
      %s28 = sphi 0, %s25
      %s29 = sphi 0, %s26
      %s30 = sphi 0, %s27
      %s31 = sphi 0, %s28
      %s32 = sphi 0, %s29
      %s50 = sphi 0, %s52
      %s53 = sphi 0, %s50
      %s54 = sphi 0, %s53
      %s70 = sphi 0, %s54
      %s76 = sphi 0, %s78
      %s79 = sphi 0, %s76
      %s80 = sphi 0, %s79
      %s96 = sphi 0, %s80
      %s100 = sphi 0, %s100
      %s102 = sphi 0, %s100
      %s103 = sphi 0, %s102
      %s117 = sphi 0, %s103
      %s121 = sphi 0, %s121
      %s123 = sphi 0, %s121
      %s124 = sphi 0, %s123
      %s138 = sphi 0, %s124
      %s146 = sphi 0, %s148
      %s149 = sphi 0, %s146
      %s150 = sphi 0, %s149
      %s166 = sphi 0, %s150
    $region4: #{tpu_custom_call.1} parent=1 // loop_header_branch
      %20 = sbr.rel (%p18) target = $region8
    $region5: #{tpu_custom_call.1} parent=1 // loop_body
      %s22 = ssub.s32 %s17, 1
      %s23 = ssub.s32 %s17, 2
      %s33 = sadd.s32 1, %s26
      %p34 = scmp.ge.s32.totalorder %s33, 2
      %s35 = scalar_select %p34, 0, %s33
      %s36 = sadd.s32 1, %s25
      %s37 = scalar_select %p34, %s36, %s25
      %p38 = scmp.ge.s32.totalorder %s37, 2
      %s39 = scalar_select %p38, 0, %s37
      %s40 = sadd.s32 1, %s24
      %s41 = scalar_select %p38, %s40, %s24
      %p42 = scmp.ge.s32.totalorder %s41, 1
      %s43 = scalar_select %p42, 0, %s41
      %s44 = ssub.s32 %s24, %s43
      %s45 = ssub.s32 %s25, %s39
      %s46 = sor.u32 %s44, %s45
      %s47 = ssub.s32 %s26, %s35
      %s48 = sor.u32 %s46, %s47
      %p49 = scmp.eq.s32.totalorder %s48, 0
      %s51 = sadd.s32 %s50, 1
      %s52 = scalar_select %p49, %s50, %s51
      %p55 = pneg %p49
      %p56 = scmp.eq.s32.totalorder %s17, 3
      %p57 = por %p55, %p56
      %p58 = scmp.ne.s32.totalorder %s50, %s53
      %p59 = scmp.eq.s32.totalorder %s17, 0
      %p60 = por %p58, %p59
      %p61 = scmp.ne.s32.totalorder %s50, %s53
      %p62 = scmp.eq.s32.totalorder %s22, 3
      %p63 = por %p61, %p62
      %p64 = scmp.ne.s32.totalorder %s53, %s54
      %p65 = scmp.eq.s32.totalorder %s22, 0
      %p66 = por %p64, %p65
      %p67 = scmp.ne.s32.totalorder %s53, %s54
      %p68 = scmp.eq.s32.totalorder %s23, 3
      %p69 = por %p67, %p68
      %p71 = scmp.ne.s32.totalorder %s54, %s70
      %p72 = scmp.eq.s32.totalorder %s23, 0
      %p73 = por %p71, %p72
      %s74 = ssub.s32 %s26, %s35
      %p75 = scmp.eq.s32.totalorder %s74, 0
      %s77 = sadd.s32 %s76, 1
      %s78 = scalar_select %p75, %s76, %s77
      %p81 = pneg %p75
      %p82 = scmp.eq.s32.totalorder %s17, 3
      %p83 = por %p81, %p82
      %p84 = scmp.ne.s32.totalorder %s76, %s79
      %p85 = scmp.eq.s32.totalorder %s17, 0
      %p86 = por %p84, %p85
      %p87 = scmp.ne.s32.totalorder %s76, %s79
      %p88 = scmp.eq.s32.totalorder %s22, 3
      %p89 = por %p87, %p88
      %p90 = scmp.ne.s32.totalorder %s79, %s80
      %p91 = scmp.eq.s32.totalorder %s22, 0
      %p92 = por %p90, %p91
      %p93 = scmp.ne.s32.totalorder %s79, %s80
      %p94 = scmp.eq.s32.totalorder %s23, 3
      %p95 = por %p93, %p94
      %p97 = scmp.ne.s32.totalorder %s80, %s96
      %p98 = scmp.eq.s32.totalorder %s23, 0
      %p99 = por %p97, %p98
      %s101 = sadd.s32 %s100, 1
      %p104 = scmp.eq.s32.totalorder %s17, 3
      %p105 = scmp.ne.s32.totalorder %s100, %s102
      %p106 = scmp.eq.s32.totalorder %s17, 0
      %p107 = por %p105, %p106
      %p108 = scmp.ne.s32.totalorder %s100, %s102
      %p109 = scmp.eq.s32.totalorder %s22, 3
      %p110 = por %p108, %p109
      %p111 = scmp.ne.s32.totalorder %s102, %s103
      %p112 = scmp.eq.s32.totalorder %s22, 0
      %p113 = por %p111, %p112
      %p114 = scmp.ne.s32.totalorder %s102, %s103
      %p115 = scmp.eq.s32.totalorder %s23, 3
      %p116 = por %p114, %p115
      %p118 = scmp.ne.s32.totalorder %s103, %s117
      %p119 = scmp.eq.s32.totalorder %s23, 0
      %p120 = por %p118, %p119
      %s122 = sadd.s32 %s121, 1
      %p125 = scmp.eq.s32.totalorder %s17, 3
      %p126 = scmp.ne.s32.totalorder %s121, %s123
      %p127 = scmp.eq.s32.totalorder %s17, 0
      %p128 = por %p126, %p127
      %p129 = scmp.ne.s32.totalorder %s121, %s123
      %p130 = scmp.eq.s32.totalorder %s22, 3
      %p131 = por %p129, %p130
      %p132 = scmp.ne.s32.totalorder %s123, %s124
      %p133 = scmp.eq.s32.totalorder %s22, 0
      %p134 = por %p132, %p133
      %p135 = scmp.ne.s32.totalorder %s123, %s124
      %p136 = scmp.eq.s32.totalorder %s23, 3
      %p137 = por %p135, %p136
      %p139 = scmp.ne.s32.totalorder %s124, %s138
      %p140 = scmp.eq.s32.totalorder %s23, 0
      %p141 = por %p139, %p140
      %s142 = ssub.s32 %s24, %s43
      %s143 = ssub.s32 %s25, %s39
      %s144 = sor.u32 %s142, %s143
      %p145 = scmp.eq.s32.totalorder %s144, 0
      %s147 = sadd.s32 %s146, 1
      %s148 = scalar_select %p145, %s146, %s147
      %p151 = pneg %p145
      %p152 = scmp.eq.s32.totalorder %s17, 3
      %p153 = por %p151, %p152
      %p154 = scmp.ne.s32.totalorder %s146, %s149
      %p155 = scmp.eq.s32.totalorder %s17, 0
      %p156 = por %p154, %p155
      %p157 = scmp.ne.s32.totalorder %s146, %s149
      %p158 = scmp.eq.s32.totalorder %s22, 3
      %p159 = por %p157, %p158
      %p160 = scmp.ne.s32.totalorder %s149, %s150
      %p161 = scmp.eq.s32.totalorder %s22, 0
      %p162 = por %p160, %p161
      %p163 = scmp.ne.s32.totalorder %s149, %s150
      %p164 = scmp.eq.s32.totalorder %s23, 3
      %p165 = por %p163, %p164
      %p167 = scmp.ne.s32.totalorder %s150, %s166
      %p168 = scmp.eq.s32.totalorder %s23, 0
      %p169 = por %p167, %p168
      %p170 = scmp.le.s32.totalorder 1, %s17
      %p171 = scmp.lt.s32.totalorder %s17, 5
      %p172 = pnand %p170, %p171
      %p173 = pneg %p172
      // Predicated region
      $region9: #{tpu_custom_call.1} parent=5 // pred_check
        _
      $region10: #{tpu_custom_call.1} parent=5 // pred_check_branch
        %175 = sbr.rel (%p172) target = $region12
      $region11: #{tpu_custom_call.1} parent=5 // pred_region
        %s176 = ssub.s32 %s17, 1
        // Predicated region
        $region13: #{tpu_custom_call.1} parent=11 // pred_check
          %p177 = pneg %p113
        $region14: #{tpu_custom_call.1} parent=11 // pred_check_branch
          %179 = sbr.rel (%p177) target = $region16
        $region15: #{tpu_custom_call.1} parent=11 // pred_region
          %181 = vsyncadd [#allocation8], 0
          %s183 = sshll.u32 %s2, 4
          %s184 = int_to_ptr.hbm [resolvable:$true] %s183
          %s185 = sshll.u32 [#allocation7], 4
          %s186 = int_to_ptr.vmem [resolvable:$true] %s185
          %188 = dma.hbm_to_vmem [thread:$0]  %s184, 16, %s186, [#allocation8]
        $region16: #{tpu_custom_call.1} parent=11 // pred_fallthru
          _
        // Predicated region
        $region17: #{tpu_custom_call.1} parent=11 // pred_check
          %p189 = pneg %p134
        $region18: #{tpu_custom_call.1} parent=11 // pred_check_branch
          %191 = sbr.rel (%p189) target = $region20
        $region19: #{tpu_custom_call.1} parent=11 // pred_region
          %193 = vsyncadd [#allocation8], 0
          %s195 = sshll.u32 %s3, 4
          %s196 = int_to_ptr.hbm [resolvable:$true] %s195
          %s197 = sshll.u32 [#allocation9], 4
          %s198 = int_to_ptr.vmem [resolvable:$true] %s197
          %200 = dma.hbm_to_vmem [thread:$0]  %s196, 16, %s198, [#allocation8]
        $region20: #{tpu_custom_call.1} parent=11 // pred_fallthru
          _
      $region12: #{tpu_custom_call.1} parent=5 // pred_fallthru
        _
      %p201 = scmp.lt.s32.totalorder %s17, 4
      // Predicated region
      $region21: #{tpu_custom_call.1} parent=5 // pred_check
        %p202 = pneg %p201
      $region22: #{tpu_custom_call.1} parent=5 // pred_check_branch
        %204 = sbr.rel (%p202) target = $region24
      $region23: #{tpu_custom_call.1} parent=5 // pred_region
        // Predicated region
        $region25: #{tpu_custom_call.1} parent=23 // pred_check
          %p205 = pneg %p60
        $region26: #{tpu_custom_call.1} parent=23 // pred_check_branch
          %207 = sbr.rel (%p205) target = $region28
        $region27: #{tpu_custom_call.1} parent=23 // pred_region
          %s208 = sand.u32 %s50, 1
          %s209 = sand.u32 %s50, 1
          %s210 = smul.addr %s209, 240
          %s211 = scalar_lea.vmem [#allocation3], %s210
          %s212 = smul.u32 2, %s26
          %s213 = smul.addr %s25, 120
          %s214 = sadd.s32 %s212, %s213
          %s215 = smul.addr %s24, 240
          %s216 = sadd.s32 %s214, %s215
          %s217 = smul.addr %s216, 4
          %s218 = scalar_lea.vmem %s0, %s217
          // Predicated region
          $region29: #{tpu_custom_call.1} parent=27 // pred_check
            _
          $region30: #{tpu_custom_call.1} parent=27 // pred_check_branch
            %220 = sbr.rel (0) target = $region32
          $region31: #{tpu_custom_call.1} parent=27 // pred_region
            // Predicated region
            $region33: #{tpu_custom_call.1} parent=31 // pred_check
              _
            $region34: #{tpu_custom_call.1} parent=31 // pred_check_branch
              %222 = sbr.rel (0) target = $region36
            $region35: #{tpu_custom_call.1} parent=31 // pred_region
              // Predicated region
              $region48: #{tpu_custom_call.1} parent=35 // pred_check
                _
              $region49: #{tpu_custom_call.1} parent=35 // pred_check_branch
                %296 = sbr.rel (0) target = $region51
              $region50: #{tpu_custom_call.1} parent=35 // pred_region
                loop: start=0, step=1, limit=1
                $region52: #{tpu_custom_call.1} parent=50 // loop_pre_header
                  _
                $region53: #{tpu_custom_call.1} parent=50 // loop_header
                  %s298 = sphi 0, %s302
                  %p299 = scmp.ge.s32.totalorder %s298, 1
                  %s303 = sphi %s218, %s218
                  %s304 = sphi %s211, %s211
                $region54: #{tpu_custom_call.1} parent=50 // loop_header_branch
                  %301 = sbr.rel (%p299) target = $region58
                $region55: #{tpu_custom_call.1} parent=50 // loop_body
                  %v305 = vld [vmem:[%s303] sm:$0xff]
                  %306 = vst [vmem:[%s304] sm:$0xff] %v305
                  %v307 = vld [vmem:[%s303 + $0x10] sm:$0xff]
                  %308 = vst [vmem:[%s304 + $0x8] sm:$0xff] %v307
                  %v309 = vld [vmem:[%s303 + $0x20] sm:$0xff]
                  %310 = vst [vmem:[%s304 + $0x10] sm:$0xff] %v309
                  %v311 = vld [vmem:[%s303 + $0x30] sm:$0xff]
                  %312 = vst [vmem:[%s304 + $0x18] sm:$0xff] %v311
                  %v313 = vld [vmem:[%s303 + $0x40] sm:$0xff]
                  %314 = vst [vmem:[%s304 + $0x20] sm:$0xff] %v313
                  %v315 = vld [vmem:[%s303 + $0x50] sm:$0xff]
                  %316 = vst [vmem:[%s304 + $0x28] sm:$0xff] %v315
                  %v317 = vld [vmem:[%s303 + $0x60] sm:$0xff]
                  %318 = vst [vmem:[%s304 + $0x30] sm:$0xff] %v317
                  %v319 = vld [vmem:[%s303 + $0x70] sm:$0xff]
                  %320 = vst [vmem:[%s304 + $0x38] sm:$0xff] %v319
                  %v321 = vld [vmem:[%s303 + $0x80] sm:$0xff]
                  %322 = vst [vmem:[%s304 + $0x40] sm:$0xff] %v321
                  %v323 = vld [vmem:[%s303 + $0x90] sm:$0xff]
                  %324 = vst [vmem:[%s304 + $0x48] sm:$0xff] %v323
                  %v325 = vld [vmem:[%s303 + $0xa0] sm:$0xff]
                  %326 = vst [vmem:[%s304 + $0x50] sm:$0xff] %v325
                  %v327 = vld [vmem:[%s303 + $0xb0] sm:$0xff]
                  %328 = vst [vmem:[%s304 + $0x58] sm:$0xff] %v327
                  %v329 = vld [vmem:[%s303 + $0xc0] sm:$0xff]
                  %330 = vst [vmem:[%s304 + $0x60] sm:$0xff] %v329
                  %v331 = vld [vmem:[%s303 + $0xd0] sm:$0xff]
                  %332 = vst [vmem:[%s304 + $0x68] sm:$0xff] %v331
                  %v333 = vld [vmem:[%s303 + $0xe0] sm:$0xff]
                  %334 = vst [vmem:[%s304 + $0x70] sm:$0xff] %v333
                  %v335 = vld [vmem:[%s303 + $0xf0] sm:$0xff]
                  %336 = vst [vmem:[%s304 + $0x78] sm:$0xff] %v335
                  %v337 = vld [vmem:[%s303 + $0x100] sm:$0xff]
                  %338 = vst [vmem:[%s304 + $0x80] sm:$0xff] %v337
                  %v339 = vld [vmem:[%s303 + $0x110] sm:$0xff]
                  %340 = vst [vmem:[%s304 + $0x88] sm:$0xff] %v339
                  %v341 = vld [vmem:[%s303 + $0x120] sm:$0xff]
                  %342 = vst [vmem:[%s304 + $0x90] sm:$0xff] %v341
                  %v343 = vld [vmem:[%s303 + $0x130] sm:$0xff]
                  %344 = vst [vmem:[%s304 + $0x98] sm:$0xff] %v343
                  %v345 = vld [vmem:[%s303 + $0x140] sm:$0xff]
                  %346 = vst [vmem:[%s304 + $0xa0] sm:$0xff] %v345
                  %v347 = vld [vmem:[%s303 + $0x150] sm:$0xff]
                  %348 = vst [vmem:[%s304 + $0xa8] sm:$0xff] %v347
                  %v349 = vld [vmem:[%s303 + $0x160] sm:$0xff]
                  %350 = vst [vmem:[%s304 + $0xb0] sm:$0xff] %v349
                  %v351 = vld [vmem:[%s303 + $0x170] sm:$0xff]
                  %352 = vst [vmem:[%s304 + $0xb8] sm:$0xff] %v351
                  %v353 = vld [vmem:[%s303 + $0x180] sm:$0xff]
                  %354 = vst [vmem:[%s304 + $0xc0] sm:$0xff] %v353
                  %v355 = vld [vmem:[%s303 + $0x190] sm:$0xff]
                  %356 = vst [vmem:[%s304 + $0xc8] sm:$0xff] %v355
                  %v357 = vld [vmem:[%s303 + $0x1a0] sm:$0xff]
                  %358 = vst [vmem:[%s304 + $0xd0] sm:$0xff] %v357
                  %v359 = vld [vmem:[%s303 + $0x1b0] sm:$0xff]
                  %360 = vst [vmem:[%s304 + $0xd8] sm:$0xff] %v359
                  %v361 = vld [vmem:[%s303 + $0x1c0] sm:$0xff]
                  %362 = vst [vmem:[%s304 + $0xe0] sm:$0xff] %v361
                  %v363 = vld [vmem:[%s303 + $0x1d0] sm:$0xff]
                  %364 = vst [vmem:[%s304 + $0xe8] sm:$0xff] %v363
                $region56: #{tpu_custom_call.1} parent=50 // loop_footer
                  %s302 = sadd.s32 1, %s298
                $region57: #{tpu_custom_call.1} parent=50 // loop_footer_branch
                  %297 = sbr.rel target = $region53
                $region58: #{tpu_custom_call.1} parent=50 // loop_exit
                  _
              $region51: #{tpu_custom_call.1} parent=35 // pred_fallthru
                _
              // Predicated region
              $region59: #{tpu_custom_call.1} parent=35 // pred_check
                _
              $region60: #{tpu_custom_call.1} parent=35 // pred_check_branch
                %366 = sbr.rel target = $region62
              $region61: #{tpu_custom_call.1} parent=35 // pred_region
                _
              $region62: #{tpu_custom_call.1} parent=35 // pred_fallthru
                _
            $region36: #{tpu_custom_call.1} parent=31 // pred_fallthru
              _
            // Predicated region
            $region37: #{tpu_custom_call.1} parent=31 // pred_check
              _
            $region38: #{tpu_custom_call.1} parent=31 // pred_check_branch
              %224 = sbr.rel target = $region40
            $region39: #{tpu_custom_call.1} parent=31 // pred_region
              %s226 = ssub.s32 256, 1
              loop: start=0, step=1, limit=1
              $region41: #{tpu_custom_call.1} parent=39 // loop_pre_header
                _
              $region42: #{tpu_custom_call.1} parent=39 // loop_header
                %s228 = sphi 0, %s232
                %p229 = scmp.ge.s32.totalorder %s228, 1
                %s233 = sphi %s218, %s218
                %s234 = sphi %s211, %s211
              $region43: #{tpu_custom_call.1} parent=39 // loop_header_branch
                %231 = sbr.rel (%p229) target = $region47
              $region44: #{tpu_custom_call.1} parent=39 // loop_body
                %v235 = vld [vmem:[%s233] sm:%s226]
                %236 = vst [vmem:[%s234] sm:%s226] %v235
                %v237 = vld [vmem:[%s233 + $0x10] sm:%s226]
                %238 = vst [vmem:[%s234 + $0x8] sm:%s226] %v237
                %v239 = vld [vmem:[%s233 + $0x20] sm:%s226]
                %240 = vst [vmem:[%s234 + $0x10] sm:%s226] %v239
                %v241 = vld [vmem:[%s233 + $0x30] sm:%s226]
                %242 = vst [vmem:[%s234 + $0x18] sm:%s226] %v241
                %v243 = vld [vmem:[%s233 + $0x40] sm:%s226]
                %244 = vst [vmem:[%s234 + $0x20] sm:%s226] %v243
                %v245 = vld [vmem:[%s233 + $0x50] sm:%s226]
                %246 = vst [vmem:[%s234 + $0x28] sm:%s226] %v245
                %v247 = vld [vmem:[%s233 + $0x60] sm:%s226]
                %248 = vst [vmem:[%s234 + $0x30] sm:%s226] %v247
                %v249 = vld [vmem:[%s233 + $0x70] sm:%s226]
                %250 = vst [vmem:[%s234 + $0x38] sm:%s226] %v249
                %v251 = vld [vmem:[%s233 + $0x80] sm:%s226]
                %252 = vst [vmem:[%s234 + $0x40] sm:%s226] %v251
                %v253 = vld [vmem:[%s233 + $0x90] sm:%s226]
                %254 = vst [vmem:[%s234 + $0x48] sm:%s226] %v253
                %v255 = vld [vmem:[%s233 + $0xa0] sm:%s226]
                %256 = vst [vmem:[%s234 + $0x50] sm:%s226] %v255
                %v257 = vld [vmem:[%s233 + $0xb0] sm:%s226]
                %258 = vst [vmem:[%s234 + $0x58] sm:%s226] %v257
                %v259 = vld [vmem:[%s233 + $0xc0] sm:%s226]
                %260 = vst [vmem:[%s234 + $0x60] sm:%s226] %v259
                %v261 = vld [vmem:[%s233 + $0xd0] sm:%s226]
                %262 = vst [vmem:[%s234 + $0x68] sm:%s226] %v261
                %v263 = vld [vmem:[%s233 + $0xe0] sm:%s226]
                %264 = vst [vmem:[%s234 + $0x70] sm:%s226] %v263
                %v265 = vld [vmem:[%s233 + $0xf0] sm:%s226]
                %266 = vst [vmem:[%s234 + $0x78] sm:%s226] %v265
                %v267 = vld [vmem:[%s233 + $0x100] sm:%s226]
                %268 = vst [vmem:[%s234 + $0x80] sm:%s226] %v267
                %v269 = vld [vmem:[%s233 + $0x110] sm:%s226]
                %270 = vst [vmem:[%s234 + $0x88] sm:%s226] %v269
                %v271 = vld [vmem:[%s233 + $0x120] sm:%s226]
                %272 = vst [vmem:[%s234 + $0x90] sm:%s226] %v271
                %v273 = vld [vmem:[%s233 + $0x130] sm:%s226]
                %274 = vst [vmem:[%s234 + $0x98] sm:%s226] %v273
                %v275 = vld [vmem:[%s233 + $0x140] sm:%s226]
                %276 = vst [vmem:[%s234 + $0xa0] sm:%s226] %v275
                %v277 = vld [vmem:[%s233 + $0x150] sm:%s226]
                %278 = vst [vmem:[%s234 + $0xa8] sm:%s226] %v277
                %v279 = vld [vmem:[%s233 + $0x160] sm:%s226]
                %280 = vst [vmem:[%s234 + $0xb0] sm:%s226] %v279
                %v281 = vld [vmem:[%s233 + $0x170] sm:%s226]
                %282 = vst [vmem:[%s234 + $0xb8] sm:%s226] %v281
                %v283 = vld [vmem:[%s233 + $0x180] sm:%s226]
                %284 = vst [vmem:[%s234 + $0xc0] sm:%s226] %v283
                %v285 = vld [vmem:[%s233 + $0x190] sm:%s226]
                %286 = vst [vmem:[%s234 + $0xc8] sm:%s226] %v285
                %v287 = vld [vmem:[%s233 + $0x1a0] sm:%s226]
                %288 = vst [vmem:[%s234 + $0xd0] sm:%s226] %v287
                %v289 = vld [vmem:[%s233 + $0x1b0] sm:%s226]
                %290 = vst [vmem:[%s234 + $0xd8] sm:%s226] %v289
                %v291 = vld [vmem:[%s233 + $0x1c0] sm:%s226]
                %292 = vst [vmem:[%s234 + $0xe0] sm:%s226] %v291
                %v293 = vld [vmem:[%s233 + $0x1d0] sm:%s226]
                %294 = vst [vmem:[%s234 + $0xe8] sm:%s226] %v293
              $region45: #{tpu_custom_call.1} parent=39 // loop_footer
                %s232 = sadd.s32 1, %s228
              $region46: #{tpu_custom_call.1} parent=39 // loop_footer_branch
                %227 = sbr.rel target = $region42
              $region47: #{tpu_custom_call.1} parent=39 // loop_exit
                _
            $region40: #{tpu_custom_call.1} parent=31 // pred_fallthru
              _
          $region32: #{tpu_custom_call.1} parent=27 // pred_fallthru
            _
          %367 = vnop
        $region28: #{tpu_custom_call.1} parent=23 // pred_fallthru
          _
        // Predicated region
        $region63: #{tpu_custom_call.1} parent=23 // pred_check
          %p368 = pneg %p86
        $region64: #{tpu_custom_call.1} parent=23 // pred_check_branch
          %370 = sbr.rel (%p368) target = $region66
        $region65: #{tpu_custom_call.1} parent=23 // pred_region
          #allocation12 [shape = 'u32[6]{0}', space=smem, size = 0x18, scoped, tag = 'DMA stride descriptor']
          %s371 = sand.u32 %s76, 1
          %s372 = scalar_lea.sflag [#allocation5], %s371
          %s373 = sand.u32 %s76, 1
          %s374 = smul.addr %s373, 1152
          %s375 = scalar_lea.vmem [#allocation4], %s374
          %377 = vsyncadd %s372, 0
          %s378 = smul.addr %s26, 96
          %s379 = smul.addr %s378, 4
          %s380 = scalar_lea.hbm %s1, %s379
          %s382 = sshll.u32 1, 14
          %s383 = sxor.u32 4294967295, %s382
          %s385 = sld [smem:[#allocation0]]
          %s386 = sadd.s32 2, %s385
          %s388 = sshll.u32 7, 26
          %s389 = sxor.u32 4294967295, %s388
          %s390 = sand.u32 0, %s389
          %s391 = sshll.u32 %s386, 26
          %s392 = sor.u32 %s390, %s391
          %s393 = sshll.u32 %s380, 4
          %s394 = int_to_ptr.hbm [resolvable:$true] %s393
          %s395 = sshll.u32 %s375, 4
          %s396 = int_to_ptr.vmem [resolvable:$true] %s395
          %402 = sst [smem:[#allocation12]] 12288
          %s403 = scalar_lea.smem [#allocation12], 1
          %404 = sst [smem:[%s403]] 6144
          %s405 = scalar_lea.smem [#allocation12], 2
          %406 = sst [smem:[%s405]] 96
          %s407 = scalar_lea.smem [#allocation12], 3
          %408 = sst [smem:[%s407]] 64
          %s409 = scalar_lea.smem [#allocation12], 4
          %410 = sst [smem:[%s409]] 64
          %s411 = scalar_lea.smem [#allocation12], 5
          %412 = sst [smem:[%s411]] 4
          %414 = dma.general %s394, 18432, %s396, %s372, [#allocation11], [#allocation12], %s392, 0
        $region66: #{tpu_custom_call.1} parent=23 // pred_fallthru
          _
      $region24: #{tpu_custom_call.1} parent=5 // pred_fallthru
        _
      %p415 = scmp.le.s32.totalorder 1, %s17
      %p416 = scmp.lt.s32.totalorder %s17, 5
      %p417 = pnand %p415, %p416
      %p418 = pneg %p417
      // Predicated region
      $region67: #{tpu_custom_call.1} parent=5 // pred_check
        _
      $region68: #{tpu_custom_call.1} parent=5 // pred_check_branch
        %420 = sbr.rel (%p417) target = $region70
      $region69: #{tpu_custom_call.1} parent=5 // pred_region
        %s421 = ssub.s32 %s17, 1
        %s422 = sand.u32 %s53, 1
        %s423 = sand.u32 %s53, 1
        %s424 = smul.addr %s423, 240
        %s425 = scalar_lea.vmem [#allocation3], %s424
        // Predicated region
        $region71: #{tpu_custom_call.1} parent=69 // pred_check
          %p426 = pneg %p66
        $region72: #{tpu_custom_call.1} parent=69 // pred_check_branch
          %428 = sbr.rel (%p426) target = $region74
        $region73: #{tpu_custom_call.1} parent=69 // pred_region
          _
        $region74: #{tpu_custom_call.1} parent=69 // pred_fallthru
          _
        %s429 = sand.u32 %s79, 1
        %s430 = scalar_lea.sflag [#allocation5], %s429
        %s431 = sand.u32 %s79, 1
        %s432 = smul.addr %s431, 1152
        %s433 = scalar_lea.vmem [#allocation4], %s432
        // Predicated region
        $region75: #{tpu_custom_call.1} parent=69 // pred_check
          %p434 = pneg %p92
        $region76: #{tpu_custom_call.1} parent=69 // pred_check_branch
          %436 = sbr.rel (%p434) target = $region78
        $region77: #{tpu_custom_call.1} parent=69 // pred_region
          %438 = dma.done %s430, 18432
        $region78: #{tpu_custom_call.1} parent=69 // pred_fallthru
          _
        // Predicated region
        $region79: #{tpu_custom_call.1} parent=69 // pred_check
          %p439 = pneg %p113
        $region80: #{tpu_custom_call.1} parent=69 // pred_check_branch
          %441 = sbr.rel (%p439) target = $region82
        $region81: #{tpu_custom_call.1} parent=69 // pred_region
          %443 = dma.done [#allocation8], 16
        $region82: #{tpu_custom_call.1} parent=69 // pred_fallthru
          _
        // Predicated region
        $region83: #{tpu_custom_call.1} parent=69 // pred_check
          %p444 = pneg %p134
        $region84: #{tpu_custom_call.1} parent=69 // pred_check_branch
          %446 = sbr.rel (%p444) target = $region86
        $region85: #{tpu_custom_call.1} parent=69 // pred_region
          %448 = dma.done [#allocation8], 16
        $region86: #{tpu_custom_call.1} parent=69 // pred_fallthru
          _
        %s449 = sand.u32 %s53, 1
        %s450 = sand.u32 %s53, 1
        %s451 = smul.addr %s450, 240
        %s452 = scalar_lea.vmem [#allocation3], %s451
        %p453 = pneg %p66
        %p454 = pneg %p63
        %s455 = sand.u32 %s79, 1
        %s456 = scalar_lea.sflag [#allocation5], %s455
        %s457 = sand.u32 %s79, 1
        %s458 = smul.addr %s457, 1152
        %s459 = scalar_lea.vmem [#allocation4], %s458
        %p460 = pneg %p92
        %p461 = pneg %p89
        %p462 = pneg %p113
        %p463 = pneg %p110
        %p464 = pneg %p134
        %p465 = pneg %p131
        %p466 = pneg %p162
        %p467 = pneg %p159
        %s468 = sand.u32 %s149, 1
        %s469 = scalar_lea.sflag [#allocation6], %s468
        %s470 = sand.u32 %s149, 1
        %s471 = smul.addr %s470, 128
        %s472 = scalar_lea.vmem [#allocation10], %s471
        %s473 = smul.u32 2, %s29
        %s474 = smul.u32 8, %s28
        %p475 = scmp.eq.s32.totalorder %s29, 0
        // Predicated region
        $region87: #{tpu_custom_call.1} parent=69 // pred_check
          %p476 = pneg %p475
        $region88: #{tpu_custom_call.1} parent=69 // pred_check_branch
          %478 = sbr.rel (%p476) target = $region90
        $region89: #{tpu_custom_call.1} parent=69 // pred_region
          %479 = vst [vmem:[#allocation2] sm:$0xff] 0.0
          %480 = vst [vmem:[#allocation2 + $0x8] sm:$0xff] 0.0
          %481 = vst [vmem:[#allocation2 + $0x10] sm:$0xff] 0.0
          %482 = vst [vmem:[#allocation2 + $0x18] sm:$0xff] 0.0
          %483 = vst [vmem:[#allocation2 + $0x20] sm:$0xff] 0.0
          %484 = vst [vmem:[#allocation2 + $0x28] sm:$0xff] 0.0
          %485 = vst [vmem:[#allocation2 + $0x30] sm:$0xff] 0.0
          %486 = vst [vmem:[#allocation2 + $0x38] sm:$0xff] 0.0
          %487 = vst [vmem:[#allocation2 + $0x40] sm:$0xff] 0.0
          %488 = vst [vmem:[#allocation2 + $0x48] sm:$0xff] 0.0
          %489 = vst [vmem:[#allocation2 + $0x50] sm:$0xff] 0.0
          %490 = vst [vmem:[#allocation2 + $0x58] sm:$0xff] 0.0
          %491 = vst [vmem:[#allocation2 + $0x60] sm:$0xff] 0.0
          %492 = vst [vmem:[#allocation2 + $0x68] sm:$0xff] 0.0
          %493 = vst [vmem:[#allocation2 + $0x70] sm:$0xff] 0.0
          %494 = vst [vmem:[#allocation2 + $0x78] sm:$0xff] 0.0
        $region90: #{tpu_custom_call.1} parent=69 // pred_fallthru
          _
        %v495 = vld [vmem:[#allocation2] sm:$0xff]
        %v496 = vld [vmem:[#allocation2 + $0x8] sm:$0xff]
        %v497 = vld [vmem:[#allocation2 + $0x10] sm:$0xff]
        %v498 = vld [vmem:[#allocation2 + $0x18] sm:$0xff]
        %v499 = vld [vmem:[#allocation2 + $0x20] sm:$0xff]
        %v500 = vld [vmem:[#allocation2 + $0x28] sm:$0xff]
        %v501 = vld [vmem:[#allocation2 + $0x30] sm:$0xff]
        %v502 = vld [vmem:[#allocation2 + $0x38] sm:$0xff]
        %v503 = vld [vmem:[#allocation2 + $0x40] sm:$0xff]
        %v504 = vld [vmem:[#allocation2 + $0x48] sm:$0xff]
        %v505 = vld [vmem:[#allocation2 + $0x50] sm:$0xff]
        %v506 = vld [vmem:[#allocation2 + $0x58] sm:$0xff]
        %v507 = vld [vmem:[#allocation2 + $0x60] sm:$0xff]
        %v508 = vld [vmem:[#allocation2 + $0x68] sm:$0xff]
        %v509 = vld [vmem:[#allocation2 + $0x70] sm:$0xff]
        %v510 = vld [vmem:[#allocation2 + $0x78] sm:$0xff]
        %v511 = vld [vmem:[%s425] sm:$0xff]
        %v512 = vld [vmem:[%s425 + $0x8] sm:$0xff]
        %v513 = vld [vmem:[%s425 + $0x10] sm:$0x11]
        %v514 = vld [vmem:[%s425 + $0x18] sm:$0xff]
        %v515 = vld [vmem:[%s425 + $0x20] sm:$0xff]
        %v516 = vld [vmem:[%s425 + $0x28] sm:$0x11]
        %v517 = vld [vmem:[%s425 + $0x30] sm:$0xff]
        %v518 = vld [vmem:[%s425 + $0x38] sm:$0xff]
        %v519 = vld [vmem:[%s425 + $0x40] sm:$0x11]
        %v520 = vld [vmem:[%s425 + $0x48] sm:$0xff]
        %v521 = vld [vmem:[%s425 + $0x50] sm:$0xff]
        %v522 = vld [vmem:[%s425 + $0x58] sm:$0x11]
        %v523 = vld [vmem:[%s425 + $0x60] sm:$0xff]
        %v524 = vld [vmem:[%s425 + $0x68] sm:$0xff]
        %v525 = vld [vmem:[%s425 + $0x70] sm:$0x11]
        %v526 = vld [vmem:[%s425 + $0x78] sm:$0xff]
        %v527 = vld [vmem:[%s425 + $0x80] sm:$0xff]
        %v528 = vld [vmem:[%s425 + $0x88] sm:$0x11]
        %v529 = vld [vmem:[%s425 + $0x90] sm:$0xff]
        %v530 = vld [vmem:[%s425 + $0x98] sm:$0xff]
        %v531 = vld [vmem:[%s425 + $0xa0] sm:$0x11]
        %v532 = vld [vmem:[%s425 + $0xa8] sm:$0xff]
        %v533 = vld [vmem:[%s425 + $0xb0] sm:$0xff]
        %v534 = vld [vmem:[%s425 + $0xb8] sm:$0x11]
        %v535 = vld [vmem:[%s425 + $0xc0] sm:$0xff]
        %v536 = vld [vmem:[%s425 + $0xc8] sm:$0xff]
        %v537 = vld [vmem:[%s425 + $0xd0] sm:$0x11]
        %v538 = vld [vmem:[%s425 + $0xd8] sm:$0xff]
        %v539 = vld [vmem:[%s425 + $0xe0] sm:$0xff]
        %v540 = vld [vmem:[%s425 + $0xe8] sm:$0x11]
        %v561 = vunpack.c.l.b16 %v511
        %v562 = vunpack.c.h.b16 %v511
        %v563 = vunpack.c.l.b16 %v512
        %v564 = vunpack.c.h.b16 %v512
        %v565 = vunpack.c.l.b16 %v514
        %v566 = vunpack.c.h.b16 %v514
        %v567 = vunpack.c.l.b16 %v515
        %v568 = vunpack.c.h.b16 %v515
        %v569 = vunpack.c.l.b16 %v517
        %v570 = vunpack.c.h.b16 %v517
        %v571 = vunpack.c.l.b16 %v518
        %v572 = vunpack.c.h.b16 %v518
        %v573 = vunpack.c.l.b16 %v520
        %v574 = vunpack.c.h.b16 %v520
        %v575 = vunpack.c.l.b16 %v521
        %v576 = vunpack.c.h.b16 %v521
        %v577 = vunpack.c.l.b16 %v523
        %v578 = vunpack.c.h.b16 %v523
        %v579 = vunpack.c.l.b16 %v524
        %v580 = vunpack.c.h.b16 %v524
        %v581 = vunpack.c.l.b16 %v526
        %v582 = vunpack.c.h.b16 %v526
        %v583 = vunpack.c.l.b16 %v527
        %v584 = vunpack.c.h.b16 %v527
        %v585 = vunpack.c.l.b16 %v529
        %v586 = vunpack.c.h.b16 %v529
        %v587 = vunpack.c.l.b16 %v530
        %v588 = vunpack.c.h.b16 %v530
        %v589 = vunpack.c.l.b16 %v532
        %v590 = vunpack.c.h.b16 %v532
        %v591 = vunpack.c.l.b16 %v533
        %v592 = vunpack.c.h.b16 %v533
        %v593 = vunpack.c.l.b16 %v535
        %v594 = vunpack.c.h.b16 %v535
        %v595 = vunpack.c.l.b16 %v536
        %v596 = vunpack.c.h.b16 %v536
        %v597 = vunpack.c.l.b16 %v538
        %v598 = vunpack.c.h.b16 %v538
        %v599 = vunpack.c.l.b16 %v539
        %v600 = vunpack.c.h.b16 %v539
        %v601 = vpack.c.b16 %v563, %v561
        %v602 = vpack.c.b16 %v564, %v562
        %v603 = vpack.c.b16 %v567, %v565
        %v604 = vpack.c.b16 %v568, %v566
        %v605 = vpack.c.b16 %v571, %v569
        %v606 = vpack.c.b16 %v572, %v570
        %v607 = vpack.c.b16 %v575, %v573
        %v608 = vpack.c.b16 %v576, %v574
        %v609 = vpack.c.b16 %v579, %v577
        %v610 = vpack.c.b16 %v580, %v578
        %v611 = vpack.c.b16 %v583, %v581
        %v612 = vpack.c.b16 %v584, %v582
        %v613 = vpack.c.b16 %v587, %v585
        %v614 = vpack.c.b16 %v588, %v586
        %v615 = vpack.c.b16 %v591, %v589
        %v616 = vpack.c.b16 %v592, %v590
        %v617 = vpack.c.b16 %v595, %v593
        %v618 = vpack.c.b16 %v596, %v594
        %v619 = vpack.c.b16 %v599, %v597
        %v620 = vpack.c.b16 %v600, %v598
        %v651 = vunpack.c.l.b16 %v513
        %v652 = vunpack.c.h.b16 %v513
        %v653 = vunpack.c.l.b16 %v516
        %v654 = vunpack.c.h.b16 %v516
        %v655 = vunpack.c.l.b16 %v519
        %v656 = vunpack.c.h.b16 %v519
        %v657 = vunpack.c.l.b16 %v522
        %v658 = vunpack.c.h.b16 %v522
        %v659 = vunpack.c.l.b16 %v525
        %v660 = vunpack.c.h.b16 %v525
        %v661 = vunpack.c.l.b16 %v528
        %v662 = vunpack.c.h.b16 %v528
        %v663 = vunpack.c.l.b16 %v531
        %v664 = vunpack.c.h.b16 %v531
        %v665 = vunpack.c.l.b16 %v534
        %v666 = vunpack.c.h.b16 %v534
        %v667 = vunpack.c.l.b16 %v537
        %v668 = vunpack.c.h.b16 %v537
        %v669 = vunpack.c.l.b16 %v540
        %v670 = vunpack.c.h.b16 %v540
        %v671 = vpack.c.b16 %v651, %v651
        %v672 = vpack.c.b16 %v652, %v652
        %v673 = vpack.c.b16 %v653, %v653
        %v674 = vpack.c.b16 %v654, %v654
        %v675 = vpack.c.b16 %v655, %v655
        %v676 = vpack.c.b16 %v656, %v656
        %v677 = vpack.c.b16 %v657, %v657
        %v678 = vpack.c.b16 %v658, %v658
        %v679 = vpack.c.b16 %v659, %v659
        %v680 = vpack.c.b16 %v660, %v660
        %v681 = vpack.c.b16 %v661, %v661
        %v682 = vpack.c.b16 %v662, %v662
        %v683 = vpack.c.b16 %v663, %v663
        %v684 = vpack.c.b16 %v664, %v664
        %v685 = vpack.c.b16 %v665, %v665
        %v686 = vpack.c.b16 %v666, %v666
        %v687 = vpack.c.b16 %v667, %v667
        %v688 = vpack.c.b16 %v668, %v668
        %v689 = vpack.c.b16 %v669, %v669
        %v690 = vpack.c.b16 %v670, %v670
        %vm691 = vsmask.f32 7424
        %v693 = vshrl.u32 %v601, 16
        %v695 = vshll.u32 %v601, 16
        %v697 = vrot.slane %v695, 1
        %v698 = vor.u32 %v693, %v697
        %v700 = vshll.u32 %v671, 16
        %v702 = vrot.slane %v700, 1
        %v703 = vsel %vm691, %v698, %v702
        %v705 = vshrl.u32 %v602, 16
        %v707 = vshll.u32 %v602, 16
        %v709 = vrot.slane %v707, 1
        %v710 = vor.u32 %v705, %v709
        %v712 = vshll.u32 %v672, 16
        %v714 = vrot.slane %v712, 1
        %v715 = vsel %vm691, %v710, %v714
        %v717 = vshrl.u32 %v603, 16
        %v719 = vshll.u32 %v603, 16
        %v721 = vrot.slane %v719, 1
        %v722 = vor.u32 %v717, %v721
        %v724 = vshll.u32 %v673, 16
        %v726 = vrot.slane %v724, 1
        %v727 = vsel %vm691, %v722, %v726
        %v729 = vshrl.u32 %v604, 16
        %v731 = vshll.u32 %v604, 16
        %v733 = vrot.slane %v731, 1
        %v734 = vor.u32 %v729, %v733
        %v736 = vshll.u32 %v674, 16
        %v738 = vrot.slane %v736, 1
        %v739 = vsel %vm691, %v734, %v738
        %v741 = vshrl.u32 %v605, 16
        %v743 = vshll.u32 %v605, 16
        %v745 = vrot.slane %v743, 1
        %v746 = vor.u32 %v741, %v745
        %v748 = vshll.u32 %v675, 16
        %v750 = vrot.slane %v748, 1
        %v751 = vsel %vm691, %v746, %v750
        %v753 = vshrl.u32 %v606, 16
        %v755 = vshll.u32 %v606, 16
        %v757 = vrot.slane %v755, 1
        %v758 = vor.u32 %v753, %v757
        %v760 = vshll.u32 %v676, 16
        %v762 = vrot.slane %v760, 1
        %v763 = vsel %vm691, %v758, %v762
        %v765 = vshrl.u32 %v607, 16
        %v767 = vshll.u32 %v607, 16
        %v769 = vrot.slane %v767, 1
        %v770 = vor.u32 %v765, %v769
        %v772 = vshll.u32 %v677, 16
        %v774 = vrot.slane %v772, 1
        %v775 = vsel %vm691, %v770, %v774
        %v777 = vshrl.u32 %v608, 16
        %v779 = vshll.u32 %v608, 16
        %v781 = vrot.slane %v779, 1
        %v782 = vor.u32 %v777, %v781
        %v784 = vshll.u32 %v678, 16
        %v786 = vrot.slane %v784, 1
        %v787 = vsel %vm691, %v782, %v786
        %v789 = vshrl.u32 %v609, 16
        %v791 = vshll.u32 %v609, 16
        %v793 = vrot.slane %v791, 1
        %v794 = vor.u32 %v789, %v793
        %v796 = vshll.u32 %v679, 16
        %v798 = vrot.slane %v796, 1
        %v799 = vsel %vm691, %v794, %v798
        %v801 = vshrl.u32 %v610, 16
        %v803 = vshll.u32 %v610, 16
        %v805 = vrot.slane %v803, 1
        %v806 = vor.u32 %v801, %v805
        %v808 = vshll.u32 %v680, 16
        %v810 = vrot.slane %v808, 1
        %v811 = vsel %vm691, %v806, %v810
        %v813 = vshrl.u32 %v611, 16
        %v815 = vshll.u32 %v611, 16
        %v817 = vrot.slane %v815, 1
        %v818 = vor.u32 %v813, %v817
        %v820 = vshll.u32 %v681, 16
        %v822 = vrot.slane %v820, 1
        %v823 = vsel %vm691, %v818, %v822
        %v825 = vshrl.u32 %v612, 16
        %v827 = vshll.u32 %v612, 16
        %v829 = vrot.slane %v827, 1
        %v830 = vor.u32 %v825, %v829
        %v832 = vshll.u32 %v682, 16
        %v834 = vrot.slane %v832, 1
        %v835 = vsel %vm691, %v830, %v834
        %v837 = vshrl.u32 %v613, 16
        %v839 = vshll.u32 %v613, 16
        %v841 = vrot.slane %v839, 1
        %v842 = vor.u32 %v837, %v841
        %v844 = vshll.u32 %v683, 16
        %v846 = vrot.slane %v844, 1
        %v847 = vsel %vm691, %v842, %v846
        %v849 = vshrl.u32 %v614, 16
        %v851 = vshll.u32 %v614, 16
        %v853 = vrot.slane %v851, 1
        %v854 = vor.u32 %v849, %v853
        %v856 = vshll.u32 %v684, 16
        %v858 = vrot.slane %v856, 1
        %v859 = vsel %vm691, %v854, %v858
        %v861 = vshrl.u32 %v615, 16
        %v863 = vshll.u32 %v615, 16
        %v865 = vrot.slane %v863, 1
        %v866 = vor.u32 %v861, %v865
        %v868 = vshll.u32 %v685, 16
        %v870 = vrot.slane %v868, 1
        %v871 = vsel %vm691, %v866, %v870
        %v873 = vshrl.u32 %v616, 16
        %v875 = vshll.u32 %v616, 16
        %v877 = vrot.slane %v875, 1
        %v878 = vor.u32 %v873, %v877
        %v880 = vshll.u32 %v686, 16
        %v882 = vrot.slane %v880, 1
        %v883 = vsel %vm691, %v878, %v882
        %v885 = vshrl.u32 %v617, 16
        %v887 = vshll.u32 %v617, 16
        %v889 = vrot.slane %v887, 1
        %v890 = vor.u32 %v885, %v889
        %v892 = vshll.u32 %v687, 16
        %v894 = vrot.slane %v892, 1
        %v895 = vsel %vm691, %v890, %v894
        %v897 = vshrl.u32 %v618, 16
        %v899 = vshll.u32 %v618, 16
        %v901 = vrot.slane %v899, 1
        %v902 = vor.u32 %v897, %v901
        %v904 = vshll.u32 %v688, 16
        %v906 = vrot.slane %v904, 1
        %v907 = vsel %vm691, %v902, %v906
        %v909 = vshrl.u32 %v619, 16
        %v911 = vshll.u32 %v619, 16
        %v913 = vrot.slane %v911, 1
        %v914 = vor.u32 %v909, %v913
        %v916 = vshll.u32 %v689, 16
        %v918 = vrot.slane %v916, 1
        %v919 = vsel %vm691, %v914, %v918
        %v921 = vshrl.u32 %v620, 16
        %v923 = vshll.u32 %v620, 16
        %v925 = vrot.slane %v923, 1
        %v926 = vor.u32 %v921, %v925
        %v928 = vshll.u32 %v690, 16
        %v930 = vrot.slane %v928, 1
        %v931 = vsel %vm691, %v926, %v930
        %vm952 = vcmask 1046528
        %v953 = vrot.slane %v601, 1
        %v954 = vrot.slane %v671, 1
        %v955 = vsel %vm952, %v953, %v954
        %v956 = vrot.slane %v602, 1
        %v957 = vrot.slane %v672, 1
        %v958 = vsel %vm952, %v956, %v957
        %v959 = vrot.slane %v603, 1
        %v960 = vrot.slane %v673, 1
        %v961 = vsel %vm952, %v959, %v960
        %v962 = vrot.slane %v604, 1
        %v963 = vrot.slane %v674, 1
        %v964 = vsel %vm952, %v962, %v963
        %v965 = vrot.slane %v605, 1
        %v966 = vrot.slane %v675, 1
        %v967 = vsel %vm952, %v965, %v966
        %v968 = vrot.slane %v606, 1
        %v969 = vrot.slane %v676, 1
        %v970 = vsel %vm952, %v968, %v969
        %v971 = vrot.slane %v607, 1
        %v972 = vrot.slane %v677, 1
        %v973 = vsel %vm952, %v971, %v972
        %v974 = vrot.slane %v608, 1
        %v975 = vrot.slane %v678, 1
        %v976 = vsel %vm952, %v974, %v975
        %v977 = vrot.slane %v609, 1
        %v978 = vrot.slane %v679, 1
        %v979 = vsel %vm952, %v977, %v978
        %v980 = vrot.slane %v610, 1
        %v981 = vrot.slane %v680, 1
        %v982 = vsel %vm952, %v980, %v981
        %v983 = vrot.slane %v611, 1
        %v984 = vrot.slane %v681, 1
        %v985 = vsel %vm952, %v983, %v984
        %v986 = vrot.slane %v612, 1
        %v987 = vrot.slane %v682, 1
        %v988 = vsel %vm952, %v986, %v987
        %v989 = vrot.slane %v613, 1
        %v990 = vrot.slane %v683, 1
        %v991 = vsel %vm952, %v989, %v990
        %v992 = vrot.slane %v614, 1
        %v993 = vrot.slane %v684, 1
        %v994 = vsel %vm952, %v992, %v993
        %v995 = vrot.slane %v615, 1
        %v996 = vrot.slane %v685, 1
        %v997 = vsel %vm952, %v995, %v996
        %v998 = vrot.slane %v616, 1
        %v999 = vrot.slane %v686, 1
        %v1000 = vsel %vm952, %v998, %v999
        %v1001 = vrot.slane %v617, 1
        %v1002 = vrot.slane %v687, 1
        %v1003 = vsel %vm952, %v1001, %v1002
        %v1004 = vrot.slane %v618, 1
        %v1005 = vrot.slane %v688, 1
        %v1006 = vsel %vm952, %v1004, %v1005
        %v1007 = vrot.slane %v619, 1
        %v1008 = vrot.slane %v689, 1
        %v1009 = vsel %vm952, %v1007, %v1008
        %v1010 = vrot.slane %v620, 1
        %v1011 = vrot.slane %v690, 1
        %v1012 = vsel %vm952, %v1010, %v1011
        %v1033 = vld [vmem:[%s433] sm:$0xf]
        %v1034 = vld [vmem:[%s433 + $0x4] sm:$0xf]
        %v1035 = vld [vmem:[%s433 + $0x8] sm:$0xf]
        %v1036 = vld [vmem:[%s433 + $0xc] sm:$0xf]
        %v1037 = vld [vmem:[%s433 + $0x10] sm:$0xf]
        %v1038 = vld [vmem:[%s433 + $0x14] sm:$0xf]
        %v1039 = vld [vmem:[%s433 + $0x18] sm:$0xf]
        %v1040 = vld [vmem:[%s433 + $0x1c] sm:$0xf]
        %v1041 = vld [vmem:[%s433 + $0x20] sm:$0xf]
        %v1042 = vld [vmem:[%s433 + $0x24] sm:$0xf]
        %v1043 = vld [vmem:[%s433 + $0x28] sm:$0xf]
        %v1044 = vld [vmem:[%s433 + $0x2c] sm:$0xf]
        %v1045 = vld [vmem:[%s433 + $0x30] sm:$0xf]
        %v1046 = vld [vmem:[%s433 + $0x34] sm:$0xf]
        %v1047 = vld [vmem:[%s433 + $0x38] sm:$0xf]
        %v1048 = vld [vmem:[%s433 + $0x3c] sm:$0xf]
        %v1049 = vld [vmem:[%s433 + $0x40] sm:$0xf]
        %v1050 = vld [vmem:[%s433 + $0x44] sm:$0xf]
        %v1051 = vld [vmem:[%s433 + $0x48] sm:$0xf]
        %v1052 = vld [vmem:[%s433 + $0x4c] sm:$0xf]
        %v1053 = vld [vmem:[%s433 + $0x50] sm:$0xf]
        %v1054 = vld [vmem:[%s433 + $0x54] sm:$0xf]
        %v1055 = vld [vmem:[%s433 + $0x58] sm:$0xf]
        %v1056 = vld [vmem:[%s433 + $0x5c] sm:$0xf]
        %v1057 = vld [vmem:[%s433 + $0x60] sm:$0xf]
        %v1058 = vld [vmem:[%s433 + $0x64] sm:$0xf]
        %v1059 = vld [vmem:[%s433 + $0x68] sm:$0xf]
        %v1060 = vld [vmem:[%s433 + $0x6c] sm:$0xf]
        %v1061 = vld [vmem:[%s433 + $0x70] sm:$0xf]
        %v1062 = vld [vmem:[%s433 + $0x74] sm:$0xf]
        %v1063 = vld [vmem:[%s433 + $0x78] sm:$0xf]
        %v1064 = vld [vmem:[%s433 + $0x7c] sm:$0xf]
        %v1065 = vld [vmem:[%s433 + $0x80] sm:$0xf]
        %v1066 = vld [vmem:[%s433 + $0x84] sm:$0xf]
        %v1067 = vld [vmem:[%s433 + $0x88] sm:$0xf]
        %v1068 = vld [vmem:[%s433 + $0x8c] sm:$0xf]
        %v1069 = vld [vmem:[%s433 + $0x90] sm:$0xf]
        %v1070 = vld [vmem:[%s433 + $0x94] sm:$0xf]
        %v1071 = vld [vmem:[%s433 + $0x98] sm:$0xf]
        %v1072 = vld [vmem:[%s433 + $0x9c] sm:$0xf]
        %v1073 = vld [vmem:[%s433 + $0xa0] sm:$0xf]
        %v1074 = vld [vmem:[%s433 + $0xa4] sm:$0xf]
        %v1075 = vld [vmem:[%s433 + $0xa8] sm:$0xf]
        %v1076 = vld [vmem:[%s433 + $0xac] sm:$0xf]
        %v1077 = vld [vmem:[%s433 + $0xb0] sm:$0xf]
        %v1078 = vld [vmem:[%s433 + $0xb4] sm:$0xf]
        %v1079 = vld [vmem:[%s433 + $0xb8] sm:$0xf]
        %v1080 = vld [vmem:[%s433 + $0xbc] sm:$0xf]
        %v1081 = vld [vmem:[%s433 + $0xc0] sm:$0xf]
        %v1082 = vld [vmem:[%s433 + $0xc4] sm:$0xf]
        %v1083 = vld [vmem:[%s433 + $0xc8] sm:$0xf]
        %v1084 = vld [vmem:[%s433 + $0xcc] sm:$0xf]
        %v1085 = vld [vmem:[%s433 + $0xd0] sm:$0xf]
        %v1086 = vld [vmem:[%s433 + $0xd4] sm:$0xf]
        %v1087 = vld [vmem:[%s433 + $0xd8] sm:$0xf]
        %v1088 = vld [vmem:[%s433 + $0xdc] sm:$0xf]
        %v1089 = vld [vmem:[%s433 + $0xe0] sm:$0xf]
        %v1090 = vld [vmem:[%s433 + $0xe4] sm:$0xf]
        %v1091 = vld [vmem:[%s433 + $0xe8] sm:$0xf]
        %v1092 = vld [vmem:[%s433 + $0xec] sm:$0xf]
        %v1093 = vld [vmem:[%s433 + $0xf0] sm:$0xf]
        %v1094 = vld [vmem:[%s433 + $0xf4] sm:$0xf]
        %v1095 = vld [vmem:[%s433 + $0xf8] sm:$0xf]
        %v1096 = vld [vmem:[%s433 + $0xfc] sm:$0xf]
        %v1097 = vld [vmem:[%s433 + $0x100] sm:$0xf]
        %v1098 = vld [vmem:[%s433 + $0x104] sm:$0xf]
        %v1099 = vld [vmem:[%s433 + $0x108] sm:$0xf]
        %v1100 = vld [vmem:[%s433 + $0x10c] sm:$0xf]
        %v1101 = vld [vmem:[%s433 + $0x110] sm:$0xf]
        %v1102 = vld [vmem:[%s433 + $0x114] sm:$0xf]
        %v1103 = vld [vmem:[%s433 + $0x118] sm:$0xf]
        %v1104 = vld [vmem:[%s433 + $0x11c] sm:$0xf]
        %v1105 = vld [vmem:[%s433 + $0x120] sm:$0xf]
        %v1106 = vld [vmem:[%s433 + $0x124] sm:$0xf]
        %v1107 = vld [vmem:[%s433 + $0x128] sm:$0xf]
        %v1108 = vld [vmem:[%s433 + $0x12c] sm:$0xf]
        %v1109 = vld [vmem:[%s433 + $0x130] sm:$0xf]
        %v1110 = vld [vmem:[%s433 + $0x134] sm:$0xf]
        %v1111 = vld [vmem:[%s433 + $0x138] sm:$0xf]
        %v1112 = vld [vmem:[%s433 + $0x13c] sm:$0xf]
        %v1113 = vld [vmem:[%s433 + $0x140] sm:$0xf]
        %v1114 = vld [vmem:[%s433 + $0x144] sm:$0xf]
        %v1115 = vld [vmem:[%s433 + $0x148] sm:$0xf]
        %v1116 = vld [vmem:[%s433 + $0x14c] sm:$0xf]
        %v1117 = vld [vmem:[%s433 + $0x150] sm:$0xf]
        %v1118 = vld [vmem:[%s433 + $0x154] sm:$0xf]
        %v1119 = vld [vmem:[%s433 + $0x158] sm:$0xf]
        %v1120 = vld [vmem:[%s433 + $0x15c] sm:$0xf]
        %v1121 = vld [vmem:[%s433 + $0x160] sm:$0xf]
        %v1122 = vld [vmem:[%s433 + $0x164] sm:$0xf]
        %v1123 = vld [vmem:[%s433 + $0x168] sm:$0xf]
        %v1124 = vld [vmem:[%s433 + $0x16c] sm:$0xf]
        %v1125 = vld [vmem:[%s433 + $0x170] sm:$0xf]
        %v1126 = vld [vmem:[%s433 + $0x174] sm:$0xf]
        %v1127 = vld [vmem:[%s433 + $0x178] sm:$0xf]
        %v1128 = vld [vmem:[%s433 + $0x17c] sm:$0xf]
        %s1129 = scalar_lea.vmem %s433, 384 [#allocation4]
        %v1130 = vld [vmem:[%s1129] sm:$0xf]
        %v1131 = vld [vmem:[%s1129 + $0x4] sm:$0xf]
        %v1132 = vld [vmem:[%s1129 + $0x8] sm:$0xf]
        %v1133 = vld [vmem:[%s1129 + $0xc] sm:$0xf]
        %v1134 = vld [vmem:[%s1129 + $0x10] sm:$0xf]
        %v1135 = vld [vmem:[%s1129 + $0x14] sm:$0xf]
        %v1136 = vld [vmem:[%s1129 + $0x18] sm:$0xf]
        %v1137 = vld [vmem:[%s1129 + $0x1c] sm:$0xf]
        %v1138 = vld [vmem:[%s1129 + $0x20] sm:$0xf]
        %v1139 = vld [vmem:[%s1129 + $0x24] sm:$0xf]
        %v1140 = vld [vmem:[%s1129 + $0x28] sm:$0xf]
        %v1141 = vld [vmem:[%s1129 + $0x2c] sm:$0xf]
        %v1142 = vld [vmem:[%s1129 + $0x30] sm:$0xf]
        %v1143 = vld [vmem:[%s1129 + $0x34] sm:$0xf]
        %v1144 = vld [vmem:[%s1129 + $0x38] sm:$0xf]
        %v1145 = vld [vmem:[%s1129 + $0x3c] sm:$0xf]
        %v1146 = vld [vmem:[%s1129 + $0x40] sm:$0xf]
        %v1147 = vld [vmem:[%s1129 + $0x44] sm:$0xf]
        %v1148 = vld [vmem:[%s1129 + $0x48] sm:$0xf]
        %v1149 = vld [vmem:[%s1129 + $0x4c] sm:$0xf]
        %v1150 = vld [vmem:[%s1129 + $0x50] sm:$0xf]
        %v1151 = vld [vmem:[%s1129 + $0x54] sm:$0xf]
        %v1152 = vld [vmem:[%s1129 + $0x58] sm:$0xf]
        %v1153 = vld [vmem:[%s1129 + $0x5c] sm:$0xf]
        %v1154 = vld [vmem:[%s1129 + $0x60] sm:$0xf]
        %v1155 = vld [vmem:[%s1129 + $0x64] sm:$0xf]
        %v1156 = vld [vmem:[%s1129 + $0x68] sm:$0xf]
        %v1157 = vld [vmem:[%s1129 + $0x6c] sm:$0xf]
        %v1158 = vld [vmem:[%s1129 + $0x70] sm:$0xf]
        %v1159 = vld [vmem:[%s1129 + $0x74] sm:$0xf]
        %v1160 = vld [vmem:[%s1129 + $0x78] sm:$0xf]
        %v1161 = vld [vmem:[%s1129 + $0x7c] sm:$0xf]
        %v1162 = vld [vmem:[%s1129 + $0x80] sm:$0xf]
        %v1163 = vld [vmem:[%s1129 + $0x84] sm:$0xf]
        %v1164 = vld [vmem:[%s1129 + $0x88] sm:$0xf]
        %v1165 = vld [vmem:[%s1129 + $0x8c] sm:$0xf]
        %v1166 = vld [vmem:[%s1129 + $0x90] sm:$0xf]
        %v1167 = vld [vmem:[%s1129 + $0x94] sm:$0xf]
        %v1168 = vld [vmem:[%s1129 + $0x98] sm:$0xf]
        %v1169 = vld [vmem:[%s1129 + $0x9c] sm:$0xf]
        %v1170 = vld [vmem:[%s1129 + $0xa0] sm:$0xf]
        %v1171 = vld [vmem:[%s1129 + $0xa4] sm:$0xf]
        %v1172 = vld [vmem:[%s1129 + $0xa8] sm:$0xf]
        %v1173 = vld [vmem:[%s1129 + $0xac] sm:$0xf]
        %v1174 = vld [vmem:[%s1129 + $0xb0] sm:$0xf]
        %v1175 = vld [vmem:[%s1129 + $0xb4] sm:$0xf]
        %v1176 = vld [vmem:[%s1129 + $0xb8] sm:$0xf]
        %v1177 = vld [vmem:[%s1129 + $0xbc] sm:$0xf]
        %v1178 = vld [vmem:[%s1129 + $0xc0] sm:$0xf]
        %v1179 = vld [vmem:[%s1129 + $0xc4] sm:$0xf]
        %v1180 = vld [vmem:[%s1129 + $0xc8] sm:$0xf]
        %v1181 = vld [vmem:[%s1129 + $0xcc] sm:$0xf]
        %v1182 = vld [vmem:[%s1129 + $0xd0] sm:$0xf]
        %v1183 = vld [vmem:[%s1129 + $0xd4] sm:$0xf]
        %v1184 = vld [vmem:[%s1129 + $0xd8] sm:$0xf]
        %v1185 = vld [vmem:[%s1129 + $0xdc] sm:$0xf]
        %v1186 = vld [vmem:[%s1129 + $0xe0] sm:$0xf]
        %v1187 = vld [vmem:[%s1129 + $0xe4] sm:$0xf]
        %v1188 = vld [vmem:[%s1129 + $0xe8] sm:$0xf]
        %v1189 = vld [vmem:[%s1129 + $0xec] sm:$0xf]
        %v1190 = vld [vmem:[%s1129 + $0xf0] sm:$0xf]
        %v1191 = vld [vmem:[%s1129 + $0xf4] sm:$0xf]
        %v1192 = vld [vmem:[%s1129 + $0xf8] sm:$0xf]
        %v1193 = vld [vmem:[%s1129 + $0xfc] sm:$0xf]
        %v1194 = vld [vmem:[%s1129 + $0x100] sm:$0xf]
        %v1195 = vld [vmem:[%s1129 + $0x104] sm:$0xf]
        %v1196 = vld [vmem:[%s1129 + $0x108] sm:$0xf]
        %v1197 = vld [vmem:[%s1129 + $0x10c] sm:$0xf]
        %v1198 = vld [vmem:[%s1129 + $0x110] sm:$0xf]
        %v1199 = vld [vmem:[%s1129 + $0x114] sm:$0xf]
        %v1200 = vld [vmem:[%s1129 + $0x118] sm:$0xf]
        %v1201 = vld [vmem:[%s1129 + $0x11c] sm:$0xf]
        %v1202 = vld [vmem:[%s1129 + $0x120] sm:$0xf]
        %v1203 = vld [vmem:[%s1129 + $0x124] sm:$0xf]
        %v1204 = vld [vmem:[%s1129 + $0x128] sm:$0xf]
        %v1205 = vld [vmem:[%s1129 + $0x12c] sm:$0xf]
        %v1206 = vld [vmem:[%s1129 + $0x130] sm:$0xf]
        %v1207 = vld [vmem:[%s1129 + $0x134] sm:$0xf]
        %v1208 = vld [vmem:[%s1129 + $0x138] sm:$0xf]
        %v1209 = vld [vmem:[%s1129 + $0x13c] sm:$0xf]
        %v1210 = vld [vmem:[%s1129 + $0x140] sm:$0xf]
        %v1211 = vld [vmem:[%s1129 + $0x144] sm:$0xf]
        %v1212 = vld [vmem:[%s1129 + $0x148] sm:$0xf]
        %v1213 = vld [vmem:[%s1129 + $0x14c] sm:$0xf]
        %v1214 = vld [vmem:[%s1129 + $0x150] sm:$0xf]
        %v1215 = vld [vmem:[%s1129 + $0x154] sm:$0xf]
        %v1216 = vld [vmem:[%s1129 + $0x158] sm:$0xf]
        %v1217 = vld [vmem:[%s1129 + $0x15c] sm:$0xf]
        %v1218 = vld [vmem:[%s1129 + $0x160] sm:$0xf]
        %v1219 = vld [vmem:[%s1129 + $0x164] sm:$0xf]
        %v1220 = vld [vmem:[%s1129 + $0x168] sm:$0xf]
        %v1221 = vld [vmem:[%s1129 + $0x16c] sm:$0xf]
        %v1222 = vld [vmem:[%s1129 + $0x170] sm:$0xf]
        %v1223 = vld [vmem:[%s1129 + $0x174] sm:$0xf]
        %v1224 = vld [vmem:[%s1129 + $0x178] sm:$0xf]
        %v1225 = vld [vmem:[%s1129 + $0x17c] sm:$0xf]
        %v1322 = vunpack.c.l.b16 %v1130
        %v1323 = vunpack.c.l.b16 %v1131
        %v1324 = vunpack.c.l.b16 %v1132
        %v1325 = vunpack.c.l.b16 %v1133
        %v1326 = vunpack.c.l.b16 %v1134
        %v1327 = vunpack.c.l.b16 %v1135
        %v1328 = vunpack.c.l.b16 %v1136
        %v1329 = vunpack.c.l.b16 %v1137
        %v1330 = vunpack.c.l.b16 %v1138
        %v1331 = vunpack.c.l.b16 %v1139
        %v1332 = vunpack.c.l.b16 %v1140
        %v1333 = vunpack.c.l.b16 %v1141
        %v1334 = vunpack.c.l.b16 %v1142
        %v1335 = vunpack.c.l.b16 %v1143
        %v1336 = vunpack.c.l.b16 %v1144
        %v1337 = vunpack.c.l.b16 %v1145
        %v1338 = vunpack.c.l.b16 %v1146
        %v1339 = vunpack.c.l.b16 %v1147
        %v1340 = vunpack.c.l.b16 %v1148
        %v1341 = vunpack.c.l.b16 %v1149
        %v1342 = vunpack.c.l.b16 %v1150
        %v1343 = vunpack.c.l.b16 %v1151
        %v1344 = vunpack.c.l.b16 %v1152
        %v1345 = vunpack.c.l.b16 %v1153
        %v1346 = vunpack.c.l.b16 %v1154
        %v1347 = vunpack.c.l.b16 %v1155
        %v1348 = vunpack.c.l.b16 %v1156
        %v1349 = vunpack.c.l.b16 %v1157
        %v1350 = vunpack.c.l.b16 %v1158
        %v1351 = vunpack.c.l.b16 %v1159
        %v1352 = vunpack.c.l.b16 %v1160
        %v1353 = vunpack.c.l.b16 %v1161
        %v1354 = vunpack.c.l.b16 %v1162
        %v1355 = vunpack.c.l.b16 %v1163
        %v1356 = vunpack.c.l.b16 %v1164
        %v1357 = vunpack.c.l.b16 %v1165
        %v1358 = vunpack.c.l.b16 %v1166
        %v1359 = vunpack.c.l.b16 %v1167
        %v1360 = vunpack.c.l.b16 %v1168
        %v1361 = vunpack.c.l.b16 %v1169
        %v1362 = vunpack.c.l.b16 %v1170
        %v1363 = vunpack.c.l.b16 %v1171
        %v1364 = vunpack.c.l.b16 %v1172
        %v1365 = vunpack.c.l.b16 %v1173
        %v1366 = vunpack.c.l.b16 %v1174
        %v1367 = vunpack.c.l.b16 %v1175
        %v1368 = vunpack.c.l.b16 %v1176
        %v1369 = vunpack.c.l.b16 %v1177
        %v1370 = vunpack.c.l.b16 %v1178
        %v1371 = vunpack.c.l.b16 %v1179
        %v1372 = vunpack.c.l.b16 %v1180
        %v1373 = vunpack.c.l.b16 %v1181
        %v1374 = vunpack.c.l.b16 %v1182
        %v1375 = vunpack.c.l.b16 %v1183
        %v1376 = vunpack.c.l.b16 %v1184
        %v1377 = vunpack.c.l.b16 %v1185
        %v1378 = vunpack.c.l.b16 %v1186
        %v1379 = vunpack.c.l.b16 %v1187
        %v1380 = vunpack.c.l.b16 %v1188
        %v1381 = vunpack.c.l.b16 %v1189
        %v1382 = vunpack.c.l.b16 %v1190
        %v1383 = vunpack.c.l.b16 %v1191
        %v1384 = vunpack.c.l.b16 %v1192
        %v1385 = vunpack.c.l.b16 %v1193
        %v1386 = vunpack.c.l.b16 %v1194
        %v1387 = vunpack.c.l.b16 %v1195
        %v1388 = vunpack.c.l.b16 %v1196
        %v1389 = vunpack.c.l.b16 %v1197
        %v1390 = vunpack.c.l.b16 %v1198
        %v1391 = vunpack.c.l.b16 %v1199
        %v1392 = vunpack.c.l.b16 %v1200
        %v1393 = vunpack.c.l.b16 %v1201
        %v1394 = vunpack.c.l.b16 %v1202
        %v1395 = vunpack.c.l.b16 %v1203
        %v1396 = vunpack.c.l.b16 %v1204
        %v1397 = vunpack.c.l.b16 %v1205
        %v1398 = vunpack.c.l.b16 %v1206
        %v1399 = vunpack.c.l.b16 %v1207
        %v1400 = vunpack.c.l.b16 %v1208
        %v1401 = vunpack.c.l.b16 %v1209
        %v1402 = vunpack.c.l.b16 %v1210
        %v1403 = vunpack.c.l.b16 %v1211
        %v1404 = vunpack.c.l.b16 %v1212
        %v1405 = vunpack.c.l.b16 %v1213
        %v1406 = vunpack.c.l.b16 %v1214
        %v1407 = vunpack.c.l.b16 %v1215
        %v1408 = vunpack.c.l.b16 %v1216
        %v1409 = vunpack.c.l.b16 %v1217
        %v1410 = vunpack.c.l.b16 %v1218
        %v1411 = vunpack.c.l.b16 %v1219
        %v1412 = vunpack.c.l.b16 %v1220
        %v1413 = vunpack.c.l.b16 %v1221
        %v1414 = vunpack.c.l.b16 %v1222
        %v1415 = vunpack.c.l.b16 %v1223
        %v1416 = vunpack.c.l.b16 %v1224
        %v1417 = vunpack.c.l.b16 %v1225
        %v1418 = vpack.c.b16 %v1323, %v1322
        %v1419 = vpack.c.b16 %v1325, %v1324
        %v1420 = vpack.c.b16 %v1327, %v1326
        %v1421 = vpack.c.b16 %v1329, %v1328
        %v1422 = vpack.c.b16 %v1331, %v1330
        %v1423 = vpack.c.b16 %v1333, %v1332
        %v1424 = vpack.c.b16 %v1335, %v1334
        %v1425 = vpack.c.b16 %v1337, %v1336
        %v1426 = vpack.c.b16 %v1339, %v1338
        %v1427 = vpack.c.b16 %v1341, %v1340
        %v1428 = vpack.c.b16 %v1343, %v1342
        %v1429 = vpack.c.b16 %v1345, %v1344
        %v1430 = vpack.c.b16 %v1347, %v1346
        %v1431 = vpack.c.b16 %v1349, %v1348
        %v1432 = vpack.c.b16 %v1351, %v1350
        %v1433 = vpack.c.b16 %v1353, %v1352
        %v1434 = vpack.c.b16 %v1355, %v1354
        %v1435 = vpack.c.b16 %v1357, %v1356
        %v1436 = vpack.c.b16 %v1359, %v1358
        %v1437 = vpack.c.b16 %v1361, %v1360
        %v1438 = vpack.c.b16 %v1363, %v1362
        %v1439 = vpack.c.b16 %v1365, %v1364
        %v1440 = vpack.c.b16 %v1367, %v1366
        %v1441 = vpack.c.b16 %v1369, %v1368
        %v1442 = vpack.c.b16 %v1371, %v1370
        %v1443 = vpack.c.b16 %v1373, %v1372
        %v1444 = vpack.c.b16 %v1375, %v1374
        %v1445 = vpack.c.b16 %v1377, %v1376
        %v1446 = vpack.c.b16 %v1379, %v1378
        %v1447 = vpack.c.b16 %v1381, %v1380
        %v1448 = vpack.c.b16 %v1383, %v1382
        %v1449 = vpack.c.b16 %v1385, %v1384
        %v1450 = vpack.c.b16 %v1387, %v1386
        %v1451 = vpack.c.b16 %v1389, %v1388
        %v1452 = vpack.c.b16 %v1391, %v1390
        %v1453 = vpack.c.b16 %v1393, %v1392
        %v1454 = vpack.c.b16 %v1395, %v1394
        %v1455 = vpack.c.b16 %v1397, %v1396
        %v1456 = vpack.c.b16 %v1399, %v1398
        %v1457 = vpack.c.b16 %v1401, %v1400
        %v1458 = vpack.c.b16 %v1403, %v1402
        %v1459 = vpack.c.b16 %v1405, %v1404
        %v1460 = vpack.c.b16 %v1407, %v1406
        %v1461 = vpack.c.b16 %v1409, %v1408
        %v1462 = vpack.c.b16 %v1411, %v1410
        %v1463 = vpack.c.b16 %v1413, %v1412
        %v1464 = vpack.c.b16 %v1415, %v1414
        %v1465 = vpack.c.b16 %v1417, %v1416
        %1514 = vmatpush.bf16.msra.mxu0 %v1425
        %1515 = vmatpush.bf16.msra.mxu0 %v1424
        %1516 = vmatpush.bf16.msra.mxu0 %v1423
        %1517 = vmatpush.bf16.msra.mxu0 %v1422
        %1518 = vmatpush.bf16.msra.mxu0 %v1421
        %1519 = vmatpush.bf16.msra.mxu0 %v1420
        %1520 = vmatpush.bf16.msra.mxu0 %v1419
        %1521 = vmatpush.bf16.msra.mxu0 %v1418
        %1522 = vmatmul.bf16.gmra.mxu0 %v603
        %v1523 = vpop.f32.mrf.mxu0
        %v1524 = vadd.f32 0.0, %v1523
        %v1525 = vpop.f32.mrf.mxu0
        %v1526 = vadd.f32 0.0, %v1525
        %1527 = vmatmul.bf16.gmra.mxu0 %v605
        %v1528 = vpop.f32.mrf.mxu0
        %v1529 = vadd.f32 0.0, %v1528
        %v1530 = vpop.f32.mrf.mxu0
        %v1531 = vadd.f32 0.0, %v1530
        %1532 = vmatmul.bf16.gmra.mxu0 %v607
        %v1533 = vpop.f32.mrf.mxu0
        %v1534 = vadd.f32 0.0, %v1533
        %v1535 = vpop.f32.mrf.mxu0
        %v1536 = vadd.f32 0.0, %v1535
        %1537 = vmatmul.bf16.gmra.mxu0 %v609
        %v1538 = vpop.f32.mrf.mxu0
        %v1539 = vadd.f32 0.0, %v1538
        %v1540 = vpop.f32.mrf.mxu0
        %v1541 = vadd.f32 0.0, %v1540
        %1542 = vmatmul.bf16.gmra.mxu0 %v611
        %v1543 = vpop.f32.mrf.mxu0
        %v1544 = vadd.f32 0.0, %v1543
        %v1545 = vpop.f32.mrf.mxu0
        %v1546 = vadd.f32 0.0, %v1545
        %1547 = vmatmul.bf16.gmra.mxu0 %v613
        %v1548 = vpop.f32.mrf.mxu0
        %v1549 = vadd.f32 0.0, %v1548
        %v1550 = vpop.f32.mrf.mxu0
        %v1551 = vadd.f32 0.0, %v1550
        %1552 = vmatmul.bf16.gmra.mxu0 %v615
        %v1553 = vpop.f32.mrf.mxu0
        %v1554 = vadd.f32 0.0, %v1553
        %v1555 = vpop.f32.mrf.mxu0
        %v1556 = vadd.f32 0.0, %v1555
        %1557 = vmatmul.bf16.gmra.mxu0 %v617
        %v1558 = vpop.f32.mrf.mxu0
        %v1559 = vadd.f32 0.0, %v1558
        %v1560 = vpop.f32.mrf.mxu0
        %v1561 = vadd.f32 0.0, %v1560
        %1562 = vdwg.mxu0
        %1563 = vmatpush.bf16.msra.mxu0 %v1433
        %1564 = vmatpush.bf16.msra.mxu0 %v1432
        %1565 = vmatpush.bf16.msra.mxu0 %v1431
        %1566 = vmatpush.bf16.msra.mxu0 %v1430
        %1567 = vmatpush.bf16.msra.mxu0 %v1429
        %1568 = vmatpush.bf16.msra.mxu0 %v1428
        %1569 = vmatpush.bf16.msra.mxu0 %v1427
        %1570 = vmatpush.bf16.msra.mxu0 %v1426
        %1571 = vmatmul.bf16.gmra.mxu0 %v604
        %v1572 = vpop.f32.mrf.mxu0
        %v1573 = vadd.f32 %v1524, %v1572
        %v1574 = vpop.f32.mrf.mxu0
        %v1575 = vadd.f32 %v1526, %v1574
        %1576 = vmatmul.bf16.gmra.mxu0 %v606
        %v1577 = vpop.f32.mrf.mxu0
        %v1578 = vadd.f32 %v1529, %v1577
        %v1579 = vpop.f32.mrf.mxu0
        %v1580 = vadd.f32 %v1531, %v1579
        %1581 = vmatmul.bf16.gmra.mxu0 %v608
        %v1582 = vpop.f32.mrf.mxu0
        %v1583 = vadd.f32 %v1534, %v1582
        %v1584 = vpop.f32.mrf.mxu0
        %v1585 = vadd.f32 %v1536, %v1584
        %1586 = vmatmul.bf16.gmra.mxu0 %v610
        %v1587 = vpop.f32.mrf.mxu0
        %v1588 = vadd.f32 %v1539, %v1587
        %v1589 = vpop.f32.mrf.mxu0
        %v1590 = vadd.f32 %v1541, %v1589
        %1591 = vmatmul.bf16.gmra.mxu0 %v612
        %v1592 = vpop.f32.mrf.mxu0
        %v1593 = vadd.f32 %v1544, %v1592
        %v1594 = vpop.f32.mrf.mxu0
        %v1595 = vadd.f32 %v1546, %v1594
        %1596 = vmatmul.bf16.gmra.mxu0 %v614
        %v1597 = vpop.f32.mrf.mxu0
        %v1598 = vadd.f32 %v1549, %v1597
        %v1599 = vpop.f32.mrf.mxu0
        %v1600 = vadd.f32 %v1551, %v1599
        %1601 = vmatmul.bf16.gmra.mxu0 %v616
        %v1602 = vpop.f32.mrf.mxu0
        %v1603 = vadd.f32 %v1554, %v1602
        %v1604 = vpop.f32.mrf.mxu0
        %v1605 = vadd.f32 %v1556, %v1604
        %1606 = vmatmul.bf16.gmra.mxu0 %v618
        %v1607 = vpop.f32.mrf.mxu0
        %v1608 = vadd.f32 %v1559, %v1607
        %v1609 = vpop.f32.mrf.mxu0
        %v1610 = vadd.f32 %v1561, %v1609
        %1611 = vdwg.mxu0
        %1612 = vmatpush.bf16.msra.mxu0 %v1441
        %1613 = vmatpush.bf16.msra.mxu0 %v1440
        %1614 = vmatpush.bf16.msra.mxu0 %v1439
        %1615 = vmatpush.bf16.msra.mxu0 %v1438
        %1616 = vmatpush.bf16.msra.mxu0 %v1437
        %1617 = vmatpush.bf16.msra.mxu0 %v1436
        %1618 = vmatpush.bf16.msra.mxu0 %v1435
        %1619 = vmatpush.bf16.msra.mxu0 %v1434
        %1620 = vmatmul.bf16.gmra.mxu0 %v727
        %v1621 = vpop.f32.mrf.mxu0
        %v1622 = vadd.f32 %v1573, %v1621
        %v1623 = vpop.f32.mrf.mxu0
        %v1624 = vadd.f32 %v1575, %v1623
        %1625 = vmatmul.bf16.gmra.mxu0 %v751
        %v1626 = vpop.f32.mrf.mxu0
        %v1627 = vadd.f32 %v1578, %v1626
        %v1628 = vpop.f32.mrf.mxu0
        %v1629 = vadd.f32 %v1580, %v1628
        %1630 = vmatmul.bf16.gmra.mxu0 %v775
        %v1631 = vpop.f32.mrf.mxu0
        %v1632 = vadd.f32 %v1583, %v1631
        %v1633 = vpop.f32.mrf.mxu0
        %v1634 = vadd.f32 %v1585, %v1633
        %1635 = vmatmul.bf16.gmra.mxu0 %v799
        %v1636 = vpop.f32.mrf.mxu0
        %v1637 = vadd.f32 %v1588, %v1636
        %v1638 = vpop.f32.mrf.mxu0
        %v1639 = vadd.f32 %v1590, %v1638
        %1640 = vmatmul.bf16.gmra.mxu0 %v823
        %v1641 = vpop.f32.mrf.mxu0
        %v1642 = vadd.f32 %v1593, %v1641
        %v1643 = vpop.f32.mrf.mxu0
        %v1644 = vadd.f32 %v1595, %v1643
        %1645 = vmatmul.bf16.gmra.mxu0 %v847
        %v1646 = vpop.f32.mrf.mxu0
        %v1647 = vadd.f32 %v1598, %v1646
        %v1648 = vpop.f32.mrf.mxu0
        %v1649 = vadd.f32 %v1600, %v1648
        %1650 = vmatmul.bf16.gmra.mxu0 %v871
        %v1651 = vpop.f32.mrf.mxu0
        %v1652 = vadd.f32 %v1603, %v1651
        %v1653 = vpop.f32.mrf.mxu0
        %v1654 = vadd.f32 %v1605, %v1653
        %1655 = vmatmul.bf16.gmra.mxu0 %v895
        %v1656 = vpop.f32.mrf.mxu0
        %v1657 = vadd.f32 %v1608, %v1656
        %v1658 = vpop.f32.mrf.mxu0
        %v1659 = vadd.f32 %v1610, %v1658
        %1660 = vdwg.mxu0
        %1661 = vmatpush.bf16.msra.mxu0 %v1449
        %1662 = vmatpush.bf16.msra.mxu0 %v1448
        %1663 = vmatpush.bf16.msra.mxu0 %v1447
        %1664 = vmatpush.bf16.msra.mxu0 %v1446
        %1665 = vmatpush.bf16.msra.mxu0 %v1445
        %1666 = vmatpush.bf16.msra.mxu0 %v1444
        %1667 = vmatpush.bf16.msra.mxu0 %v1443
        %1668 = vmatpush.bf16.msra.mxu0 %v1442
        %1669 = vmatmul.bf16.gmra.mxu0 %v739
        %v1670 = vpop.f32.mrf.mxu0
        %v1671 = vadd.f32 %v1622, %v1670
        %v1672 = vpop.f32.mrf.mxu0
        %v1673 = vadd.f32 %v1624, %v1672
        %1674 = vmatmul.bf16.gmra.mxu0 %v763
        %v1675 = vpop.f32.mrf.mxu0
        %v1676 = vadd.f32 %v1627, %v1675
        %v1677 = vpop.f32.mrf.mxu0
        %v1678 = vadd.f32 %v1629, %v1677
        %1679 = vmatmul.bf16.gmra.mxu0 %v787
        %v1680 = vpop.f32.mrf.mxu0
        %v1681 = vadd.f32 %v1632, %v1680
        %v1682 = vpop.f32.mrf.mxu0
        %v1683 = vadd.f32 %v1634, %v1682
        %1684 = vmatmul.bf16.gmra.mxu0 %v811
        %v1685 = vpop.f32.mrf.mxu0
        %v1686 = vadd.f32 %v1637, %v1685
        %v1687 = vpop.f32.mrf.mxu0
        %v1688 = vadd.f32 %v1639, %v1687
        %1689 = vmatmul.bf16.gmra.mxu0 %v835
        %v1690 = vpop.f32.mrf.mxu0
        %v1691 = vadd.f32 %v1642, %v1690
        %v1692 = vpop.f32.mrf.mxu0
        %v1693 = vadd.f32 %v1644, %v1692
        %1694 = vmatmul.bf16.gmra.mxu0 %v859
        %v1695 = vpop.f32.mrf.mxu0
        %v1696 = vadd.f32 %v1647, %v1695
        %v1697 = vpop.f32.mrf.mxu0
        %v1698 = vadd.f32 %v1649, %v1697
        %1699 = vmatmul.bf16.gmra.mxu0 %v883
        %v1700 = vpop.f32.mrf.mxu0
        %v1701 = vadd.f32 %v1652, %v1700
        %v1702 = vpop.f32.mrf.mxu0
        %v1703 = vadd.f32 %v1654, %v1702
        %1704 = vmatmul.bf16.gmra.mxu0 %v907
        %v1705 = vpop.f32.mrf.mxu0
        %v1706 = vadd.f32 %v1657, %v1705
        %v1707 = vpop.f32.mrf.mxu0
        %v1708 = vadd.f32 %v1659, %v1707
        %1709 = vdwg.mxu0
        %1710 = vmatpush.bf16.msra.mxu0 %v1457
        %1711 = vmatpush.bf16.msra.mxu0 %v1456
        %1712 = vmatpush.bf16.msra.mxu0 %v1455
        %1713 = vmatpush.bf16.msra.mxu0 %v1454
        %1714 = vmatpush.bf16.msra.mxu0 %v1453
        %1715 = vmatpush.bf16.msra.mxu0 %v1452
        %1716 = vmatpush.bf16.msra.mxu0 %v1451
        %1717 = vmatpush.bf16.msra.mxu0 %v1450
        %1718 = vmatmul.bf16.gmra.mxu0 %v961
        %v1719 = vpop.f32.mrf.mxu0
        %v1720 = vadd.f32 %v1671, %v1719
        %v1721 = vpop.f32.mrf.mxu0
        %v1722 = vadd.f32 %v1673, %v1721
        %1723 = vmatmul.bf16.gmra.mxu0 %v967
        %v1724 = vpop.f32.mrf.mxu0
        %v1725 = vadd.f32 %v1676, %v1724
        %v1726 = vpop.f32.mrf.mxu0
        %v1727 = vadd.f32 %v1678, %v1726
        %1728 = vmatmul.bf16.gmra.mxu0 %v973
        %v1729 = vpop.f32.mrf.mxu0
        %v1730 = vadd.f32 %v1681, %v1729
        %v1731 = vpop.f32.mrf.mxu0
        %v1732 = vadd.f32 %v1683, %v1731
        %1733 = vmatmul.bf16.gmra.mxu0 %v979
        %v1734 = vpop.f32.mrf.mxu0
        %v1735 = vadd.f32 %v1686, %v1734
        %v1736 = vpop.f32.mrf.mxu0
        %v1737 = vadd.f32 %v1688, %v1736
        %1738 = vmatmul.bf16.gmra.mxu0 %v985
        %v1739 = vpop.f32.mrf.mxu0
        %v1740 = vadd.f32 %v1691, %v1739
        %v1741 = vpop.f32.mrf.mxu0
        %v1742 = vadd.f32 %v1693, %v1741
        %1743 = vmatmul.bf16.gmra.mxu0 %v991
        %v1744 = vpop.f32.mrf.mxu0
        %v1745 = vadd.f32 %v1696, %v1744
        %v1746 = vpop.f32.mrf.mxu0
        %v1747 = vadd.f32 %v1698, %v1746
        %1748 = vmatmul.bf16.gmra.mxu0 %v997
        %v1749 = vpop.f32.mrf.mxu0
        %v1750 = vadd.f32 %v1701, %v1749
        %v1751 = vpop.f32.mrf.mxu0
        %v1752 = vadd.f32 %v1703, %v1751
        %1753 = vmatmul.bf16.gmra.mxu0 %v1003
        %v1754 = vpop.f32.mrf.mxu0
        %v1755 = vadd.f32 %v1706, %v1754
        %v1756 = vpop.f32.mrf.mxu0
        %v1757 = vadd.f32 %v1708, %v1756
        %1758 = vdwg.mxu0
        %1759 = vmatpush.bf16.msra.mxu0 %v1465
        %1760 = vmatpush.bf16.msra.mxu0 %v1464
        %1761 = vmatpush.bf16.msra.mxu0 %v1463
        %1762 = vmatpush.bf16.msra.mxu0 %v1462
        %1763 = vmatpush.bf16.msra.mxu0 %v1461
        %1764 = vmatpush.bf16.msra.mxu0 %v1460
        %1765 = vmatpush.bf16.msra.mxu0 %v1459
        %1766 = vmatpush.bf16.msra.mxu0 %v1458
        %1767 = vmatmul.bf16.gmra.mxu0 %v964
        %v1768 = vpop.f32.mrf.mxu0
        %v1769 = vadd.f32 %v1720, %v1768
        %v1770 = vpop.f32.mrf.mxu0
        %v1771 = vadd.f32 %v1722, %v1770
        %1772 = vmatmul.bf16.gmra.mxu0 %v970
        %v1773 = vpop.f32.mrf.mxu0
        %v1774 = vadd.f32 %v1725, %v1773
        %v1775 = vpop.f32.mrf.mxu0
        %v1776 = vadd.f32 %v1727, %v1775
        %1777 = vmatmul.bf16.gmra.mxu0 %v976
        %v1778 = vpop.f32.mrf.mxu0
        %v1779 = vadd.f32 %v1730, %v1778
        %v1780 = vpop.f32.mrf.mxu0
        %v1781 = vadd.f32 %v1732, %v1780
        %1782 = vmatmul.bf16.gmra.mxu0 %v982
        %v1783 = vpop.f32.mrf.mxu0
        %v1784 = vadd.f32 %v1735, %v1783
        %v1785 = vpop.f32.mrf.mxu0
        %v1786 = vadd.f32 %v1737, %v1785
        %1787 = vmatmul.bf16.gmra.mxu0 %v988
        %v1788 = vpop.f32.mrf.mxu0
        %v1789 = vadd.f32 %v1740, %v1788
        %v1790 = vpop.f32.mrf.mxu0
        %v1791 = vadd.f32 %v1742, %v1790
        %1792 = vmatmul.bf16.gmra.mxu0 %v994
        %v1793 = vpop.f32.mrf.mxu0
        %v1794 = vadd.f32 %v1745, %v1793
        %v1795 = vpop.f32.mrf.mxu0
        %v1796 = vadd.f32 %v1747, %v1795
        %1797 = vmatmul.bf16.gmra.mxu0 %v1000
        %v1798 = vpop.f32.mrf.mxu0
        %v1799 = vadd.f32 %v1750, %v1798
        %v1800 = vpop.f32.mrf.mxu0
        %v1801 = vadd.f32 %v1752, %v1800
        %1802 = vmatmul.bf16.gmra.mxu0 %v1006
        %v1803 = vpop.f32.mrf.mxu0
        %v1804 = vadd.f32 %v1755, %v1803
        %v1805 = vpop.f32.mrf.mxu0
        %v1806 = vadd.f32 %v1757, %v1805
        %1807 = vdwg.mxu0
        %v1904 = vunpack.c.l.b16 %v1033
        %v1905 = vunpack.c.l.b16 %v1034
        %v1906 = vunpack.c.l.b16 %v1035
        %v1907 = vunpack.c.l.b16 %v1036
        %v1908 = vunpack.c.l.b16 %v1037
        %v1909 = vunpack.c.l.b16 %v1038
        %v1910 = vunpack.c.l.b16 %v1039
        %v1911 = vunpack.c.l.b16 %v1040
        %v1912 = vunpack.c.l.b16 %v1041
        %v1913 = vunpack.c.l.b16 %v1042
        %v1914 = vunpack.c.l.b16 %v1043
        %v1915 = vunpack.c.l.b16 %v1044
        %v1916 = vunpack.c.l.b16 %v1045
        %v1917 = vunpack.c.l.b16 %v1046
        %v1918 = vunpack.c.l.b16 %v1047
        %v1919 = vunpack.c.l.b16 %v1048
        %v1920 = vunpack.c.l.b16 %v1049
        %v1921 = vunpack.c.l.b16 %v1050
        %v1922 = vunpack.c.l.b16 %v1051
        %v1923 = vunpack.c.l.b16 %v1052
        %v1924 = vunpack.c.l.b16 %v1053
        %v1925 = vunpack.c.l.b16 %v1054
        %v1926 = vunpack.c.l.b16 %v1055
        %v1927 = vunpack.c.l.b16 %v1056
        %v1928 = vunpack.c.l.b16 %v1057
        %v1929 = vunpack.c.l.b16 %v1058
        %v1930 = vunpack.c.l.b16 %v1059
        %v1931 = vunpack.c.l.b16 %v1060
        %v1932 = vunpack.c.l.b16 %v1061
        %v1933 = vunpack.c.l.b16 %v1062
        %v1934 = vunpack.c.l.b16 %v1063
        %v1935 = vunpack.c.l.b16 %v1064
        %v1936 = vunpack.c.l.b16 %v1065
        %v1937 = vunpack.c.l.b16 %v1066
        %v1938 = vunpack.c.l.b16 %v1067
        %v1939 = vunpack.c.l.b16 %v1068
        %v1940 = vunpack.c.l.b16 %v1069
        %v1941 = vunpack.c.l.b16 %v1070
        %v1942 = vunpack.c.l.b16 %v1071
        %v1943 = vunpack.c.l.b16 %v1072
        %v1944 = vunpack.c.l.b16 %v1073
        %v1945 = vunpack.c.l.b16 %v1074
        %v1946 = vunpack.c.l.b16 %v1075
        %v1947 = vunpack.c.l.b16 %v1076
        %v1948 = vunpack.c.l.b16 %v1077
        %v1949 = vunpack.c.l.b16 %v1078
        %v1950 = vunpack.c.l.b16 %v1079
        %v1951 = vunpack.c.l.b16 %v1080
        %v1952 = vunpack.c.l.b16 %v1081
        %v1953 = vunpack.c.l.b16 %v1082
        %v1954 = vunpack.c.l.b16 %v1083
        %v1955 = vunpack.c.l.b16 %v1084
        %v1956 = vunpack.c.l.b16 %v1085
        %v1957 = vunpack.c.l.b16 %v1086
        %v1958 = vunpack.c.l.b16 %v1087
        %v1959 = vunpack.c.l.b16 %v1088
        %v1960 = vunpack.c.l.b16 %v1089
        %v1961 = vunpack.c.l.b16 %v1090
        %v1962 = vunpack.c.l.b16 %v1091
        %v1963 = vunpack.c.l.b16 %v1092
        %v1964 = vunpack.c.l.b16 %v1093
        %v1965 = vunpack.c.l.b16 %v1094
        %v1966 = vunpack.c.l.b16 %v1095
        %v1967 = vunpack.c.l.b16 %v1096
        %v1968 = vunpack.c.l.b16 %v1097
        %v1969 = vunpack.c.l.b16 %v1098
        %v1970 = vunpack.c.l.b16 %v1099
        %v1971 = vunpack.c.l.b16 %v1100
        %v1972 = vunpack.c.l.b16 %v1101
        %v1973 = vunpack.c.l.b16 %v1102
        %v1974 = vunpack.c.l.b16 %v1103
        %v1975 = vunpack.c.l.b16 %v1104
        %v1976 = vunpack.c.l.b16 %v1105
        %v1977 = vunpack.c.l.b16 %v1106
        %v1978 = vunpack.c.l.b16 %v1107
        %v1979 = vunpack.c.l.b16 %v1108
        %v1980 = vunpack.c.l.b16 %v1109
        %v1981 = vunpack.c.l.b16 %v1110
        %v1982 = vunpack.c.l.b16 %v1111
        %v1983 = vunpack.c.l.b16 %v1112
        %v1984 = vunpack.c.l.b16 %v1113
        %v1985 = vunpack.c.l.b16 %v1114
        %v1986 = vunpack.c.l.b16 %v1115
        %v1987 = vunpack.c.l.b16 %v1116
        %v1988 = vunpack.c.l.b16 %v1117
        %v1989 = vunpack.c.l.b16 %v1118
        %v1990 = vunpack.c.l.b16 %v1119
        %v1991 = vunpack.c.l.b16 %v1120
        %v1992 = vunpack.c.l.b16 %v1121
        %v1993 = vunpack.c.l.b16 %v1122
        %v1994 = vunpack.c.l.b16 %v1123
        %v1995 = vunpack.c.l.b16 %v1124
        %v1996 = vunpack.c.l.b16 %v1125
        %v1997 = vunpack.c.l.b16 %v1126
        %v1998 = vunpack.c.l.b16 %v1127
        %v1999 = vunpack.c.l.b16 %v1128
        %v2000 = vpack.c.b16 %v1905, %v1904
        %v2001 = vpack.c.b16 %v1907, %v1906
        %v2002 = vpack.c.b16 %v1909, %v1908
        %v2003 = vpack.c.b16 %v1911, %v1910
        %v2004 = vpack.c.b16 %v1913, %v1912
        %v2005 = vpack.c.b16 %v1915, %v1914
        %v2006 = vpack.c.b16 %v1917, %v1916
        %v2007 = vpack.c.b16 %v1919, %v1918
        %v2008 = vpack.c.b16 %v1921, %v1920
        %v2009 = vpack.c.b16 %v1923, %v1922
        %v2010 = vpack.c.b16 %v1925, %v1924
        %v2011 = vpack.c.b16 %v1927, %v1926
        %v2012 = vpack.c.b16 %v1929, %v1928
        %v2013 = vpack.c.b16 %v1931, %v1930
        %v2014 = vpack.c.b16 %v1933, %v1932
        %v2015 = vpack.c.b16 %v1935, %v1934
        %v2016 = vpack.c.b16 %v1937, %v1936
        %v2017 = vpack.c.b16 %v1939, %v1938
        %v2018 = vpack.c.b16 %v1941, %v1940
        %v2019 = vpack.c.b16 %v1943, %v1942
        %v2020 = vpack.c.b16 %v1945, %v1944
        %v2021 = vpack.c.b16 %v1947, %v1946
        %v2022 = vpack.c.b16 %v1949, %v1948
        %v2023 = vpack.c.b16 %v1951, %v1950
        %v2024 = vpack.c.b16 %v1953, %v1952
        %v2025 = vpack.c.b16 %v1955, %v1954
        %v2026 = vpack.c.b16 %v1957, %v1956
        %v2027 = vpack.c.b16 %v1959, %v1958
        %v2028 = vpack.c.b16 %v1961, %v1960
        %v2029 = vpack.c.b16 %v1963, %v1962
        %v2030 = vpack.c.b16 %v1965, %v1964
        %v2031 = vpack.c.b16 %v1967, %v1966
        %v2032 = vpack.c.b16 %v1969, %v1968
        %v2033 = vpack.c.b16 %v1971, %v1970
        %v2034 = vpack.c.b16 %v1973, %v1972
        %v2035 = vpack.c.b16 %v1975, %v1974
        %v2036 = vpack.c.b16 %v1977, %v1976
        %v2037 = vpack.c.b16 %v1979, %v1978
        %v2038 = vpack.c.b16 %v1981, %v1980
        %v2039 = vpack.c.b16 %v1983, %v1982
        %v2040 = vpack.c.b16 %v1985, %v1984
        %v2041 = vpack.c.b16 %v1987, %v1986
        %v2042 = vpack.c.b16 %v1989, %v1988
        %v2043 = vpack.c.b16 %v1991, %v1990
        %v2044 = vpack.c.b16 %v1993, %v1992
        %v2045 = vpack.c.b16 %v1995, %v1994
        %v2046 = vpack.c.b16 %v1997, %v1996
        %v2047 = vpack.c.b16 %v1999, %v1998
        %2096 = vmatpush.bf16.msra.mxu0 %v2007
        %2097 = vmatpush.bf16.msra.mxu0 %v2006
        %2098 = vmatpush.bf16.msra.mxu0 %v2005
        %2099 = vmatpush.bf16.msra.mxu0 %v2004
        %2100 = vmatpush.bf16.msra.mxu0 %v2003
        %2101 = vmatpush.bf16.msra.mxu0 %v2002
        %2102 = vmatpush.bf16.msra.mxu0 %v2001
        %2103 = vmatpush.bf16.msra.mxu0 %v2000
        %2104 = vmatmul.bf16.gmra.mxu0 %v601
        %v2105 = vpop.f32.mrf.mxu0
        %v2106 = vadd.f32 %v1769, %v2105
        %v2107 = vpop.f32.mrf.mxu0
        %v2108 = vadd.f32 %v1771, %v2107
        %2109 = vmatmul.bf16.gmra.mxu0 %v603
        %v2110 = vpop.f32.mrf.mxu0
        %v2111 = vadd.f32 %v1774, %v2110
        %v2112 = vpop.f32.mrf.mxu0
        %v2113 = vadd.f32 %v1776, %v2112
        %2114 = vmatmul.bf16.gmra.mxu0 %v605
        %v2115 = vpop.f32.mrf.mxu0
        %v2116 = vadd.f32 %v1779, %v2115
        %v2117 = vpop.f32.mrf.mxu0
        %v2118 = vadd.f32 %v1781, %v2117
        %2119 = vmatmul.bf16.gmra.mxu0 %v607
        %v2120 = vpop.f32.mrf.mxu0
        %v2121 = vadd.f32 %v1784, %v2120
        %v2122 = vpop.f32.mrf.mxu0
        %v2123 = vadd.f32 %v1786, %v2122
        %2124 = vmatmul.bf16.gmra.mxu0 %v609
        %v2125 = vpop.f32.mrf.mxu0
        %v2126 = vadd.f32 %v1789, %v2125
        %v2127 = vpop.f32.mrf.mxu0
        %v2128 = vadd.f32 %v1791, %v2127
        %2129 = vmatmul.bf16.gmra.mxu0 %v611
        %v2130 = vpop.f32.mrf.mxu0
        %v2131 = vadd.f32 %v1794, %v2130
        %v2132 = vpop.f32.mrf.mxu0
        %v2133 = vadd.f32 %v1796, %v2132
        %2134 = vmatmul.bf16.gmra.mxu0 %v613
        %v2135 = vpop.f32.mrf.mxu0
        %v2136 = vadd.f32 %v1799, %v2135
        %v2137 = vpop.f32.mrf.mxu0
        %v2138 = vadd.f32 %v1801, %v2137
        %2139 = vmatmul.bf16.gmra.mxu0 %v615
        %v2140 = vpop.f32.mrf.mxu0
        %v2141 = vadd.f32 %v1804, %v2140
        %v2142 = vpop.f32.mrf.mxu0
        %v2143 = vadd.f32 %v1806, %v2142
        %2144 = vdwg.mxu0
        %2145 = vmatpush.bf16.msra.mxu0 %v2015
        %2146 = vmatpush.bf16.msra.mxu0 %v2014
        %2147 = vmatpush.bf16.msra.mxu0 %v2013
        %2148 = vmatpush.bf16.msra.mxu0 %v2012
        %2149 = vmatpush.bf16.msra.mxu0 %v2011
        %2150 = vmatpush.bf16.msra.mxu0 %v2010
        %2151 = vmatpush.bf16.msra.mxu0 %v2009
        %2152 = vmatpush.bf16.msra.mxu0 %v2008
        %2153 = vmatmul.bf16.gmra.mxu0 %v602
        %v2154 = vpop.f32.mrf.mxu0
        %v2155 = vadd.f32 %v2106, %v2154
        %v2156 = vpop.f32.mrf.mxu0
        %v2157 = vadd.f32 %v2108, %v2156
        %2158 = vmatmul.bf16.gmra.mxu0 %v604
        %v2159 = vpop.f32.mrf.mxu0
        %v2160 = vadd.f32 %v2111, %v2159
        %v2161 = vpop.f32.mrf.mxu0
        %v2162 = vadd.f32 %v2113, %v2161
        %2163 = vmatmul.bf16.gmra.mxu0 %v606
        %v2164 = vpop.f32.mrf.mxu0
        %v2165 = vadd.f32 %v2116, %v2164
        %v2166 = vpop.f32.mrf.mxu0
        %v2167 = vadd.f32 %v2118, %v2166
        %2168 = vmatmul.bf16.gmra.mxu0 %v608
        %v2169 = vpop.f32.mrf.mxu0
        %v2170 = vadd.f32 %v2121, %v2169
        %v2171 = vpop.f32.mrf.mxu0
        %v2172 = vadd.f32 %v2123, %v2171
        %2173 = vmatmul.bf16.gmra.mxu0 %v610
        %v2174 = vpop.f32.mrf.mxu0
        %v2175 = vadd.f32 %v2126, %v2174
        %v2176 = vpop.f32.mrf.mxu0
        %v2177 = vadd.f32 %v2128, %v2176
        %2178 = vmatmul.bf16.gmra.mxu0 %v612
        %v2179 = vpop.f32.mrf.mxu0
        %v2180 = vadd.f32 %v2131, %v2179
        %v2181 = vpop.f32.mrf.mxu0
        %v2182 = vadd.f32 %v2133, %v2181
        %2183 = vmatmul.bf16.gmra.mxu0 %v614
        %v2184 = vpop.f32.mrf.mxu0
        %v2185 = vadd.f32 %v2136, %v2184
        %v2186 = vpop.f32.mrf.mxu0
        %v2187 = vadd.f32 %v2138, %v2186
        %2188 = vmatmul.bf16.gmra.mxu0 %v616
        %v2189 = vpop.f32.mrf.mxu0
        %v2190 = vadd.f32 %v2141, %v2189
        %v2191 = vpop.f32.mrf.mxu0
        %v2192 = vadd.f32 %v2143, %v2191
        %2193 = vdwg.mxu0
        %2194 = vmatpush.bf16.msra.mxu0 %v2023
        %2195 = vmatpush.bf16.msra.mxu0 %v2022
        %2196 = vmatpush.bf16.msra.mxu0 %v2021
        %2197 = vmatpush.bf16.msra.mxu0 %v2020
        %2198 = vmatpush.bf16.msra.mxu0 %v2019
        %2199 = vmatpush.bf16.msra.mxu0 %v2018
        %2200 = vmatpush.bf16.msra.mxu0 %v2017
        %2201 = vmatpush.bf16.msra.mxu0 %v2016
        %2202 = vmatmul.bf16.gmra.mxu0 %v703
        %v2203 = vpop.f32.mrf.mxu0
        %v2204 = vadd.f32 %v2155, %v2203
        %v2205 = vpop.f32.mrf.mxu0
        %v2206 = vadd.f32 %v2157, %v2205
        %2207 = vmatmul.bf16.gmra.mxu0 %v727
        %v2208 = vpop.f32.mrf.mxu0
        %v2209 = vadd.f32 %v2160, %v2208
        %v2210 = vpop.f32.mrf.mxu0
        %v2211 = vadd.f32 %v2162, %v2210
        %2212 = vmatmul.bf16.gmra.mxu0 %v751
        %v2213 = vpop.f32.mrf.mxu0
        %v2214 = vadd.f32 %v2165, %v2213
        %v2215 = vpop.f32.mrf.mxu0
        %v2216 = vadd.f32 %v2167, %v2215
        %2217 = vmatmul.bf16.gmra.mxu0 %v775
        %v2218 = vpop.f32.mrf.mxu0
        %v2219 = vadd.f32 %v2170, %v2218
        %v2220 = vpop.f32.mrf.mxu0
        %v2221 = vadd.f32 %v2172, %v2220
        %2222 = vmatmul.bf16.gmra.mxu0 %v799
        %v2223 = vpop.f32.mrf.mxu0
        %v2224 = vadd.f32 %v2175, %v2223
        %v2225 = vpop.f32.mrf.mxu0
        %v2226 = vadd.f32 %v2177, %v2225
        %2227 = vmatmul.bf16.gmra.mxu0 %v823
        %v2228 = vpop.f32.mrf.mxu0
        %v2229 = vadd.f32 %v2180, %v2228
        %v2230 = vpop.f32.mrf.mxu0
        %v2231 = vadd.f32 %v2182, %v2230
        %2232 = vmatmul.bf16.gmra.mxu0 %v847
        %v2233 = vpop.f32.mrf.mxu0
        %v2234 = vadd.f32 %v2185, %v2233
        %v2235 = vpop.f32.mrf.mxu0
        %v2236 = vadd.f32 %v2187, %v2235
        %2237 = vmatmul.bf16.gmra.mxu0 %v871
        %v2238 = vpop.f32.mrf.mxu0
        %v2239 = vadd.f32 %v2190, %v2238
        %v2240 = vpop.f32.mrf.mxu0
        %v2241 = vadd.f32 %v2192, %v2240
        %2242 = vdwg.mxu0
        %2243 = vmatpush.bf16.msra.mxu0 %v2031
        %2244 = vmatpush.bf16.msra.mxu0 %v2030
        %2245 = vmatpush.bf16.msra.mxu0 %v2029
        %2246 = vmatpush.bf16.msra.mxu0 %v2028
        %2247 = vmatpush.bf16.msra.mxu0 %v2027
        %2248 = vmatpush.bf16.msra.mxu0 %v2026
        %2249 = vmatpush.bf16.msra.mxu0 %v2025
        %2250 = vmatpush.bf16.msra.mxu0 %v2024
        %2251 = vmatmul.bf16.gmra.mxu0 %v715
        %v2252 = vpop.f32.mrf.mxu0
        %v2253 = vadd.f32 %v2204, %v2252
        %v2254 = vpop.f32.mrf.mxu0
        %v2255 = vadd.f32 %v2206, %v2254
        %2256 = vmatmul.bf16.gmra.mxu0 %v739
        %v2257 = vpop.f32.mrf.mxu0
        %v2258 = vadd.f32 %v2209, %v2257
        %v2259 = vpop.f32.mrf.mxu0
        %v2260 = vadd.f32 %v2211, %v2259
        %2261 = vmatmul.bf16.gmra.mxu0 %v763
        %v2262 = vpop.f32.mrf.mxu0
        %v2263 = vadd.f32 %v2214, %v2262
        %v2264 = vpop.f32.mrf.mxu0
        %v2265 = vadd.f32 %v2216, %v2264
        %2266 = vmatmul.bf16.gmra.mxu0 %v787
        %v2267 = vpop.f32.mrf.mxu0
        %v2268 = vadd.f32 %v2219, %v2267
        %v2269 = vpop.f32.mrf.mxu0
        %v2270 = vadd.f32 %v2221, %v2269
        %2271 = vmatmul.bf16.gmra.mxu0 %v811
        %v2272 = vpop.f32.mrf.mxu0
        %v2273 = vadd.f32 %v2224, %v2272
        %v2274 = vpop.f32.mrf.mxu0
        %v2275 = vadd.f32 %v2226, %v2274
        %2276 = vmatmul.bf16.gmra.mxu0 %v835
        %v2277 = vpop.f32.mrf.mxu0
        %v2278 = vadd.f32 %v2229, %v2277
        %v2279 = vpop.f32.mrf.mxu0
        %v2280 = vadd.f32 %v2231, %v2279
        %2281 = vmatmul.bf16.gmra.mxu0 %v859
        %v2282 = vpop.f32.mrf.mxu0
        %v2283 = vadd.f32 %v2234, %v2282
        %v2284 = vpop.f32.mrf.mxu0
        %v2285 = vadd.f32 %v2236, %v2284
        %2286 = vmatmul.bf16.gmra.mxu0 %v883
        %v2287 = vpop.f32.mrf.mxu0
        %v2288 = vadd.f32 %v2239, %v2287
        %v2289 = vpop.f32.mrf.mxu0
        %v2290 = vadd.f32 %v2241, %v2289
        %2291 = vdwg.mxu0
        %2292 = vmatpush.bf16.msra.mxu0 %v2039
        %2293 = vmatpush.bf16.msra.mxu0 %v2038
        %2294 = vmatpush.bf16.msra.mxu0 %v2037
        %2295 = vmatpush.bf16.msra.mxu0 %v2036
        %2296 = vmatpush.bf16.msra.mxu0 %v2035
        %2297 = vmatpush.bf16.msra.mxu0 %v2034
        %2298 = vmatpush.bf16.msra.mxu0 %v2033
        %2299 = vmatpush.bf16.msra.mxu0 %v2032
        %2300 = vmatmul.bf16.gmra.mxu0 %v955
        %v2301 = vpop.f32.mrf.mxu0
        %v2302 = vadd.f32 %v2253, %v2301
        %v2303 = vpop.f32.mrf.mxu0
        %v2304 = vadd.f32 %v2255, %v2303
        %2305 = vmatmul.bf16.gmra.mxu0 %v961
        %v2306 = vpop.f32.mrf.mxu0
        %v2307 = vadd.f32 %v2258, %v2306
        %v2308 = vpop.f32.mrf.mxu0
        %v2309 = vadd.f32 %v2260, %v2308
        %2310 = vmatmul.bf16.gmra.mxu0 %v967
        %v2311 = vpop.f32.mrf.mxu0
        %v2312 = vadd.f32 %v2263, %v2311
        %v2313 = vpop.f32.mrf.mxu0
        %v2314 = vadd.f32 %v2265, %v2313
        %2315 = vmatmul.bf16.gmra.mxu0 %v973
        %v2316 = vpop.f32.mrf.mxu0
        %v2317 = vadd.f32 %v2268, %v2316
        %v2318 = vpop.f32.mrf.mxu0
        %v2319 = vadd.f32 %v2270, %v2318
        %2320 = vmatmul.bf16.gmra.mxu0 %v979
        %v2321 = vpop.f32.mrf.mxu0
        %v2322 = vadd.f32 %v2273, %v2321
        %v2323 = vpop.f32.mrf.mxu0
        %v2324 = vadd.f32 %v2275, %v2323
        %2325 = vmatmul.bf16.gmra.mxu0 %v985
        %v2326 = vpop.f32.mrf.mxu0
        %v2327 = vadd.f32 %v2278, %v2326
        %v2328 = vpop.f32.mrf.mxu0
        %v2329 = vadd.f32 %v2280, %v2328
        %2330 = vmatmul.bf16.gmra.mxu0 %v991
        %v2331 = vpop.f32.mrf.mxu0
        %v2332 = vadd.f32 %v2283, %v2331
        %v2333 = vpop.f32.mrf.mxu0
        %v2334 = vadd.f32 %v2285, %v2333
        %2335 = vmatmul.bf16.gmra.mxu0 %v997
        %v2336 = vpop.f32.mrf.mxu0
        %v2337 = vadd.f32 %v2288, %v2336
        %v2338 = vpop.f32.mrf.mxu0
        %v2339 = vadd.f32 %v2290, %v2338
        %2340 = vdwg.mxu0
        %2341 = vmatpush.bf16.msra.mxu0 %v2047
        %2342 = vmatpush.bf16.msra.mxu0 %v2046
        %2343 = vmatpush.bf16.msra.mxu0 %v2045
        %2344 = vmatpush.bf16.msra.mxu0 %v2044
        %2345 = vmatpush.bf16.msra.mxu0 %v2043
        %2346 = vmatpush.bf16.msra.mxu0 %v2042
        %2347 = vmatpush.bf16.msra.mxu0 %v2041
        %2348 = vmatpush.bf16.msra.mxu0 %v2040
        %2349 = vmatmul.bf16.gmra.mxu0 %v958
        %v2350 = vpop.f32.mrf.mxu0
        %v2351 = vadd.f32 %v2302, %v2350
        %v2352 = vpop.f32.mrf.mxu0
        %v2353 = vadd.f32 %v2304, %v2352
        %2354 = vmatmul.bf16.gmra.mxu0 %v964
        %v2355 = vpop.f32.mrf.mxu0
        %v2356 = vadd.f32 %v2307, %v2355
        %v2357 = vpop.f32.mrf.mxu0
        %v2358 = vadd.f32 %v2309, %v2357
        %2359 = vmatmul.bf16.gmra.mxu0 %v970
        %v2360 = vpop.f32.mrf.mxu0
        %v2361 = vadd.f32 %v2312, %v2360
        %v2362 = vpop.f32.mrf.mxu0
        %v2363 = vadd.f32 %v2314, %v2362
        %2364 = vmatmul.bf16.gmra.mxu0 %v976
        %v2365 = vpop.f32.mrf.mxu0
        %v2366 = vadd.f32 %v2317, %v2365
        %v2367 = vpop.f32.mrf.mxu0
        %v2368 = vadd.f32 %v2319, %v2367
        %2369 = vmatmul.bf16.gmra.mxu0 %v982
        %v2370 = vpop.f32.mrf.mxu0
        %v2371 = vadd.f32 %v2322, %v2370
        %v2372 = vpop.f32.mrf.mxu0
        %v2373 = vadd.f32 %v2324, %v2372
        %2374 = vmatmul.bf16.gmra.mxu0 %v988
        %v2375 = vpop.f32.mrf.mxu0
        %v2376 = vadd.f32 %v2327, %v2375
        %v2377 = vpop.f32.mrf.mxu0
        %v2378 = vadd.f32 %v2329, %v2377
        %2379 = vmatmul.bf16.gmra.mxu0 %v994
        %v2380 = vpop.f32.mrf.mxu0
        %v2381 = vadd.f32 %v2332, %v2380
        %v2382 = vpop.f32.mrf.mxu0
        %v2383 = vadd.f32 %v2334, %v2382
        %2384 = vmatmul.bf16.gmra.mxu0 %v1000
        %v2385 = vpop.f32.mrf.mxu0
        %v2386 = vadd.f32 %v2337, %v2385
        %v2387 = vpop.f32.mrf.mxu0
        %v2388 = vadd.f32 %v2339, %v2387
        %2389 = vdwg.mxu0
        %s2390 = scalar_lea.vmem %s433, 768 [#allocation4]
        %v2391 = vld [vmem:[%s2390] sm:$0xf]
        %v2392 = vld [vmem:[%s2390 + $0x4] sm:$0xf]
        %v2393 = vld [vmem:[%s2390 + $0x8] sm:$0xf]
        %v2394 = vld [vmem:[%s2390 + $0xc] sm:$0xf]
        %v2395 = vld [vmem:[%s2390 + $0x10] sm:$0xf]
        %v2396 = vld [vmem:[%s2390 + $0x14] sm:$0xf]
        %v2397 = vld [vmem:[%s2390 + $0x18] sm:$0xf]
        %v2398 = vld [vmem:[%s2390 + $0x1c] sm:$0xf]
        %v2399 = vld [vmem:[%s2390 + $0x20] sm:$0xf]
        %v2400 = vld [vmem:[%s2390 + $0x24] sm:$0xf]
        %v2401 = vld [vmem:[%s2390 + $0x28] sm:$0xf]
        %v2402 = vld [vmem:[%s2390 + $0x2c] sm:$0xf]
        %v2403 = vld [vmem:[%s2390 + $0x30] sm:$0xf]
        %v2404 = vld [vmem:[%s2390 + $0x34] sm:$0xf]
        %v2405 = vld [vmem:[%s2390 + $0x38] sm:$0xf]
        %v2406 = vld [vmem:[%s2390 + $0x3c] sm:$0xf]
        %v2407 = vld [vmem:[%s2390 + $0x40] sm:$0xf]
        %v2408 = vld [vmem:[%s2390 + $0x44] sm:$0xf]
        %v2409 = vld [vmem:[%s2390 + $0x48] sm:$0xf]
        %v2410 = vld [vmem:[%s2390 + $0x4c] sm:$0xf]
        %v2411 = vld [vmem:[%s2390 + $0x50] sm:$0xf]
        %v2412 = vld [vmem:[%s2390 + $0x54] sm:$0xf]
        %v2413 = vld [vmem:[%s2390 + $0x58] sm:$0xf]
        %v2414 = vld [vmem:[%s2390 + $0x5c] sm:$0xf]
        %v2415 = vld [vmem:[%s2390 + $0x60] sm:$0xf]
        %v2416 = vld [vmem:[%s2390 + $0x64] sm:$0xf]
        %v2417 = vld [vmem:[%s2390 + $0x68] sm:$0xf]
        %v2418 = vld [vmem:[%s2390 + $0x6c] sm:$0xf]
        %v2419 = vld [vmem:[%s2390 + $0x70] sm:$0xf]
        %v2420 = vld [vmem:[%s2390 + $0x74] sm:$0xf]
        %v2421 = vld [vmem:[%s2390 + $0x78] sm:$0xf]
        %v2422 = vld [vmem:[%s2390 + $0x7c] sm:$0xf]
        %v2423 = vld [vmem:[%s2390 + $0x80] sm:$0xf]
        %v2424 = vld [vmem:[%s2390 + $0x84] sm:$0xf]
        %v2425 = vld [vmem:[%s2390 + $0x88] sm:$0xf]
        %v2426 = vld [vmem:[%s2390 + $0x8c] sm:$0xf]
        %v2427 = vld [vmem:[%s2390 + $0x90] sm:$0xf]
        %v2428 = vld [vmem:[%s2390 + $0x94] sm:$0xf]
        %v2429 = vld [vmem:[%s2390 + $0x98] sm:$0xf]
        %v2430 = vld [vmem:[%s2390 + $0x9c] sm:$0xf]
        %v2431 = vld [vmem:[%s2390 + $0xa0] sm:$0xf]
        %v2432 = vld [vmem:[%s2390 + $0xa4] sm:$0xf]
        %v2433 = vld [vmem:[%s2390 + $0xa8] sm:$0xf]
        %v2434 = vld [vmem:[%s2390 + $0xac] sm:$0xf]
        %v2435 = vld [vmem:[%s2390 + $0xb0] sm:$0xf]
        %v2436 = vld [vmem:[%s2390 + $0xb4] sm:$0xf]
        %v2437 = vld [vmem:[%s2390 + $0xb8] sm:$0xf]
        %v2438 = vld [vmem:[%s2390 + $0xbc] sm:$0xf]
        %v2439 = vld [vmem:[%s2390 + $0xc0] sm:$0xf]
        %v2440 = vld [vmem:[%s2390 + $0xc4] sm:$0xf]
        %v2441 = vld [vmem:[%s2390 + $0xc8] sm:$0xf]
        %v2442 = vld [vmem:[%s2390 + $0xcc] sm:$0xf]
        %v2443 = vld [vmem:[%s2390 + $0xd0] sm:$0xf]
        %v2444 = vld [vmem:[%s2390 + $0xd4] sm:$0xf]
        %v2445 = vld [vmem:[%s2390 + $0xd8] sm:$0xf]
        %v2446 = vld [vmem:[%s2390 + $0xdc] sm:$0xf]
        %v2447 = vld [vmem:[%s2390 + $0xe0] sm:$0xf]
        %v2448 = vld [vmem:[%s2390 + $0xe4] sm:$0xf]
        %v2449 = vld [vmem:[%s2390 + $0xe8] sm:$0xf]
        %v2450 = vld [vmem:[%s2390 + $0xec] sm:$0xf]
        %v2451 = vld [vmem:[%s2390 + $0xf0] sm:$0xf]
        %v2452 = vld [vmem:[%s2390 + $0xf4] sm:$0xf]
        %v2453 = vld [vmem:[%s2390 + $0xf8] sm:$0xf]
        %v2454 = vld [vmem:[%s2390 + $0xfc] sm:$0xf]
        %v2455 = vld [vmem:[%s2390 + $0x100] sm:$0xf]
        %v2456 = vld [vmem:[%s2390 + $0x104] sm:$0xf]
        %v2457 = vld [vmem:[%s2390 + $0x108] sm:$0xf]
        %v2458 = vld [vmem:[%s2390 + $0x10c] sm:$0xf]
        %v2459 = vld [vmem:[%s2390 + $0x110] sm:$0xf]
        %v2460 = vld [vmem:[%s2390 + $0x114] sm:$0xf]
        %v2461 = vld [vmem:[%s2390 + $0x118] sm:$0xf]
        %v2462 = vld [vmem:[%s2390 + $0x11c] sm:$0xf]
        %v2463 = vld [vmem:[%s2390 + $0x120] sm:$0xf]
        %v2464 = vld [vmem:[%s2390 + $0x124] sm:$0xf]
        %v2465 = vld [vmem:[%s2390 + $0x128] sm:$0xf]
        %v2466 = vld [vmem:[%s2390 + $0x12c] sm:$0xf]
        %v2467 = vld [vmem:[%s2390 + $0x130] sm:$0xf]
        %v2468 = vld [vmem:[%s2390 + $0x134] sm:$0xf]
        %v2469 = vld [vmem:[%s2390 + $0x138] sm:$0xf]
        %v2470 = vld [vmem:[%s2390 + $0x13c] sm:$0xf]
        %v2471 = vld [vmem:[%s2390 + $0x140] sm:$0xf]
        %v2472 = vld [vmem:[%s2390 + $0x144] sm:$0xf]
        %v2473 = vld [vmem:[%s2390 + $0x148] sm:$0xf]
        %v2474 = vld [vmem:[%s2390 + $0x14c] sm:$0xf]
        %v2475 = vld [vmem:[%s2390 + $0x150] sm:$0xf]
        %v2476 = vld [vmem:[%s2390 + $0x154] sm:$0xf]
        %v2477 = vld [vmem:[%s2390 + $0x158] sm:$0xf]
        %v2478 = vld [vmem:[%s2390 + $0x15c] sm:$0xf]
        %v2479 = vld [vmem:[%s2390 + $0x160] sm:$0xf]
        %v2480 = vld [vmem:[%s2390 + $0x164] sm:$0xf]
        %v2481 = vld [vmem:[%s2390 + $0x168] sm:$0xf]
        %v2482 = vld [vmem:[%s2390 + $0x16c] sm:$0xf]
        %v2483 = vld [vmem:[%s2390 + $0x170] sm:$0xf]
        %v2484 = vld [vmem:[%s2390 + $0x174] sm:$0xf]
        %v2485 = vld [vmem:[%s2390 + $0x178] sm:$0xf]
        %v2486 = vld [vmem:[%s2390 + $0x17c] sm:$0xf]
        %v2583 = vunpack.c.l.b16 %v2391
        %v2584 = vunpack.c.l.b16 %v2392
        %v2585 = vunpack.c.l.b16 %v2393
        %v2586 = vunpack.c.l.b16 %v2394
        %v2587 = vunpack.c.l.b16 %v2395
        %v2588 = vunpack.c.l.b16 %v2396
        %v2589 = vunpack.c.l.b16 %v2397
        %v2590 = vunpack.c.l.b16 %v2398
        %v2591 = vunpack.c.l.b16 %v2399
        %v2592 = vunpack.c.l.b16 %v2400
        %v2593 = vunpack.c.l.b16 %v2401
        %v2594 = vunpack.c.l.b16 %v2402
        %v2595 = vunpack.c.l.b16 %v2403
        %v2596 = vunpack.c.l.b16 %v2404
        %v2597 = vunpack.c.l.b16 %v2405
        %v2598 = vunpack.c.l.b16 %v2406
        %v2599 = vunpack.c.l.b16 %v2407
        %v2600 = vunpack.c.l.b16 %v2408
        %v2601 = vunpack.c.l.b16 %v2409
        %v2602 = vunpack.c.l.b16 %v2410
        %v2603 = vunpack.c.l.b16 %v2411
        %v2604 = vunpack.c.l.b16 %v2412
        %v2605 = vunpack.c.l.b16 %v2413
        %v2606 = vunpack.c.l.b16 %v2414
        %v2607 = vunpack.c.l.b16 %v2415
        %v2608 = vunpack.c.l.b16 %v2416
        %v2609 = vunpack.c.l.b16 %v2417
        %v2610 = vunpack.c.l.b16 %v2418
        %v2611 = vunpack.c.l.b16 %v2419
        %v2612 = vunpack.c.l.b16 %v2420
        %v2613 = vunpack.c.l.b16 %v2421
        %v2614 = vunpack.c.l.b16 %v2422
        %v2615 = vunpack.c.l.b16 %v2423
        %v2616 = vunpack.c.l.b16 %v2424
        %v2617 = vunpack.c.l.b16 %v2425
        %v2618 = vunpack.c.l.b16 %v2426
        %v2619 = vunpack.c.l.b16 %v2427
        %v2620 = vunpack.c.l.b16 %v2428
        %v2621 = vunpack.c.l.b16 %v2429
        %v2622 = vunpack.c.l.b16 %v2430
        %v2623 = vunpack.c.l.b16 %v2431
        %v2624 = vunpack.c.l.b16 %v2432
        %v2625 = vunpack.c.l.b16 %v2433
        %v2626 = vunpack.c.l.b16 %v2434
        %v2627 = vunpack.c.l.b16 %v2435
        %v2628 = vunpack.c.l.b16 %v2436
        %v2629 = vunpack.c.l.b16 %v2437
        %v2630 = vunpack.c.l.b16 %v2438
        %v2631 = vunpack.c.l.b16 %v2439
        %v2632 = vunpack.c.l.b16 %v2440
        %v2633 = vunpack.c.l.b16 %v2441
        %v2634 = vunpack.c.l.b16 %v2442
        %v2635 = vunpack.c.l.b16 %v2443
        %v2636 = vunpack.c.l.b16 %v2444
        %v2637 = vunpack.c.l.b16 %v2445
        %v2638 = vunpack.c.l.b16 %v2446
        %v2639 = vunpack.c.l.b16 %v2447
        %v2640 = vunpack.c.l.b16 %v2448
        %v2641 = vunpack.c.l.b16 %v2449
        %v2642 = vunpack.c.l.b16 %v2450
        %v2643 = vunpack.c.l.b16 %v2451
        %v2644 = vunpack.c.l.b16 %v2452
        %v2645 = vunpack.c.l.b16 %v2453
        %v2646 = vunpack.c.l.b16 %v2454
        %v2647 = vunpack.c.l.b16 %v2455
        %v2648 = vunpack.c.l.b16 %v2456
        %v2649 = vunpack.c.l.b16 %v2457
        %v2650 = vunpack.c.l.b16 %v2458
        %v2651 = vunpack.c.l.b16 %v2459
        %v2652 = vunpack.c.l.b16 %v2460
        %v2653 = vunpack.c.l.b16 %v2461
        %v2654 = vunpack.c.l.b16 %v2462
        %v2655 = vunpack.c.l.b16 %v2463
        %v2656 = vunpack.c.l.b16 %v2464
        %v2657 = vunpack.c.l.b16 %v2465
        %v2658 = vunpack.c.l.b16 %v2466
        %v2659 = vunpack.c.l.b16 %v2467
        %v2660 = vunpack.c.l.b16 %v2468
        %v2661 = vunpack.c.l.b16 %v2469
        %v2662 = vunpack.c.l.b16 %v2470
        %v2663 = vunpack.c.l.b16 %v2471
        %v2664 = vunpack.c.l.b16 %v2472
        %v2665 = vunpack.c.l.b16 %v2473
        %v2666 = vunpack.c.l.b16 %v2474
        %v2667 = vunpack.c.l.b16 %v2475
        %v2668 = vunpack.c.l.b16 %v2476
        %v2669 = vunpack.c.l.b16 %v2477
        %v2670 = vunpack.c.l.b16 %v2478
        %v2671 = vunpack.c.l.b16 %v2479
        %v2672 = vunpack.c.l.b16 %v2480
        %v2673 = vunpack.c.l.b16 %v2481
        %v2674 = vunpack.c.l.b16 %v2482
        %v2675 = vunpack.c.l.b16 %v2483
        %v2676 = vunpack.c.l.b16 %v2484
        %v2677 = vunpack.c.l.b16 %v2485
        %v2678 = vunpack.c.l.b16 %v2486
        %v2679 = vpack.c.b16 %v2584, %v2583
        %v2680 = vpack.c.b16 %v2586, %v2585
        %v2681 = vpack.c.b16 %v2588, %v2587
        %v2682 = vpack.c.b16 %v2590, %v2589
        %v2683 = vpack.c.b16 %v2592, %v2591
        %v2684 = vpack.c.b16 %v2594, %v2593
        %v2685 = vpack.c.b16 %v2596, %v2595
        %v2686 = vpack.c.b16 %v2598, %v2597
        %v2687 = vpack.c.b16 %v2600, %v2599
        %v2688 = vpack.c.b16 %v2602, %v2601
        %v2689 = vpack.c.b16 %v2604, %v2603
        %v2690 = vpack.c.b16 %v2606, %v2605
        %v2691 = vpack.c.b16 %v2608, %v2607
        %v2692 = vpack.c.b16 %v2610, %v2609
        %v2693 = vpack.c.b16 %v2612, %v2611
        %v2694 = vpack.c.b16 %v2614, %v2613
        %v2695 = vpack.c.b16 %v2616, %v2615
        %v2696 = vpack.c.b16 %v2618, %v2617
        %v2697 = vpack.c.b16 %v2620, %v2619
        %v2698 = vpack.c.b16 %v2622, %v2621
        %v2699 = vpack.c.b16 %v2624, %v2623
        %v2700 = vpack.c.b16 %v2626, %v2625
        %v2701 = vpack.c.b16 %v2628, %v2627
        %v2702 = vpack.c.b16 %v2630, %v2629
        %v2703 = vpack.c.b16 %v2632, %v2631
        %v2704 = vpack.c.b16 %v2634, %v2633
        %v2705 = vpack.c.b16 %v2636, %v2635
        %v2706 = vpack.c.b16 %v2638, %v2637
        %v2707 = vpack.c.b16 %v2640, %v2639
        %v2708 = vpack.c.b16 %v2642, %v2641
        %v2709 = vpack.c.b16 %v2644, %v2643
        %v2710 = vpack.c.b16 %v2646, %v2645
        %v2711 = vpack.c.b16 %v2648, %v2647
        %v2712 = vpack.c.b16 %v2650, %v2649
        %v2713 = vpack.c.b16 %v2652, %v2651
        %v2714 = vpack.c.b16 %v2654, %v2653
        %v2715 = vpack.c.b16 %v2656, %v2655
        %v2716 = vpack.c.b16 %v2658, %v2657
        %v2717 = vpack.c.b16 %v2660, %v2659
        %v2718 = vpack.c.b16 %v2662, %v2661
        %v2719 = vpack.c.b16 %v2664, %v2663
        %v2720 = vpack.c.b16 %v2666, %v2665
        %v2721 = vpack.c.b16 %v2668, %v2667
        %v2722 = vpack.c.b16 %v2670, %v2669
        %v2723 = vpack.c.b16 %v2672, %v2671
        %v2724 = vpack.c.b16 %v2674, %v2673
        %v2725 = vpack.c.b16 %v2676, %v2675
        %v2726 = vpack.c.b16 %v2678, %v2677
        %2775 = vmatpush.bf16.msra.mxu0 %v2686
        %2776 = vmatpush.bf16.msra.mxu0 %v2685
        %2777 = vmatpush.bf16.msra.mxu0 %v2684
        %2778 = vmatpush.bf16.msra.mxu0 %v2683
        %2779 = vmatpush.bf16.msra.mxu0 %v2682
        %2780 = vmatpush.bf16.msra.mxu0 %v2681
        %2781 = vmatpush.bf16.msra.mxu0 %v2680
        %2782 = vmatpush.bf16.msra.mxu0 %v2679
        %2783 = vmatmul.bf16.gmra.mxu0 %v605
        %v2784 = vpop.f32.mrf.mxu0
        %v2785 = vadd.f32 0.0, %v2784
        %v2786 = vpop.f32.mrf.mxu0
        %v2787 = vadd.f32 0.0, %v2786
        %2788 = vmatmul.bf16.gmra.mxu0 %v607
        %v2789 = vpop.f32.mrf.mxu0
        %v2790 = vadd.f32 0.0, %v2789
        %v2791 = vpop.f32.mrf.mxu0
        %v2792 = vadd.f32 0.0, %v2791
        %2793 = vmatmul.bf16.gmra.mxu0 %v609
        %v2794 = vpop.f32.mrf.mxu0
        %v2795 = vadd.f32 0.0, %v2794
        %v2796 = vpop.f32.mrf.mxu0
        %v2797 = vadd.f32 0.0, %v2796
        %2798 = vmatmul.bf16.gmra.mxu0 %v611
        %v2799 = vpop.f32.mrf.mxu0
        %v2800 = vadd.f32 0.0, %v2799
        %v2801 = vpop.f32.mrf.mxu0
        %v2802 = vadd.f32 0.0, %v2801
        %2803 = vmatmul.bf16.gmra.mxu0 %v613
        %v2804 = vpop.f32.mrf.mxu0
        %v2805 = vadd.f32 0.0, %v2804
        %v2806 = vpop.f32.mrf.mxu0
        %v2807 = vadd.f32 0.0, %v2806
        %2808 = vmatmul.bf16.gmra.mxu0 %v615
        %v2809 = vpop.f32.mrf.mxu0
        %v2810 = vadd.f32 0.0, %v2809
        %v2811 = vpop.f32.mrf.mxu0
        %v2812 = vadd.f32 0.0, %v2811
        %2813 = vmatmul.bf16.gmra.mxu0 %v617
        %v2814 = vpop.f32.mrf.mxu0
        %v2815 = vadd.f32 0.0, %v2814
        %v2816 = vpop.f32.mrf.mxu0
        %v2817 = vadd.f32 0.0, %v2816
        %2818 = vmatmul.bf16.gmra.mxu0 %v619
        %v2819 = vpop.f32.mrf.mxu0
        %v2820 = vadd.f32 0.0, %v2819
        %v2821 = vpop.f32.mrf.mxu0
        %v2822 = vadd.f32 0.0, %v2821
        %2823 = vdwg.mxu0
        %2824 = vmatpush.bf16.msra.mxu0 %v2694
        %2825 = vmatpush.bf16.msra.mxu0 %v2693
        %2826 = vmatpush.bf16.msra.mxu0 %v2692
        %2827 = vmatpush.bf16.msra.mxu0 %v2691
        %2828 = vmatpush.bf16.msra.mxu0 %v2690
        %2829 = vmatpush.bf16.msra.mxu0 %v2689
        %2830 = vmatpush.bf16.msra.mxu0 %v2688
        %2831 = vmatpush.bf16.msra.mxu0 %v2687
        %2832 = vmatmul.bf16.gmra.mxu0 %v606
        %v2833 = vpop.f32.mrf.mxu0
        %v2834 = vadd.f32 %v2785, %v2833
        %v2835 = vpop.f32.mrf.mxu0
        %v2836 = vadd.f32 %v2787, %v2835
        %2837 = vmatmul.bf16.gmra.mxu0 %v608
        %v2838 = vpop.f32.mrf.mxu0
        %v2839 = vadd.f32 %v2790, %v2838
        %v2840 = vpop.f32.mrf.mxu0
        %v2841 = vadd.f32 %v2792, %v2840
        %2842 = vmatmul.bf16.gmra.mxu0 %v610
        %v2843 = vpop.f32.mrf.mxu0
        %v2844 = vadd.f32 %v2795, %v2843
        %v2845 = vpop.f32.mrf.mxu0
        %v2846 = vadd.f32 %v2797, %v2845
        %2847 = vmatmul.bf16.gmra.mxu0 %v612
        %v2848 = vpop.f32.mrf.mxu0
        %v2849 = vadd.f32 %v2800, %v2848
        %v2850 = vpop.f32.mrf.mxu0
        %v2851 = vadd.f32 %v2802, %v2850
        %2852 = vmatmul.bf16.gmra.mxu0 %v614
        %v2853 = vpop.f32.mrf.mxu0
        %v2854 = vadd.f32 %v2805, %v2853
        %v2855 = vpop.f32.mrf.mxu0
        %v2856 = vadd.f32 %v2807, %v2855
        %2857 = vmatmul.bf16.gmra.mxu0 %v616
        %v2858 = vpop.f32.mrf.mxu0
        %v2859 = vadd.f32 %v2810, %v2858
        %v2860 = vpop.f32.mrf.mxu0
        %v2861 = vadd.f32 %v2812, %v2860
        %2862 = vmatmul.bf16.gmra.mxu0 %v618
        %v2863 = vpop.f32.mrf.mxu0
        %v2864 = vadd.f32 %v2815, %v2863
        %v2865 = vpop.f32.mrf.mxu0
        %v2866 = vadd.f32 %v2817, %v2865
        %2867 = vmatmul.bf16.gmra.mxu0 %v620
        %v2868 = vpop.f32.mrf.mxu0
        %v2869 = vadd.f32 %v2820, %v2868
        %v2870 = vpop.f32.mrf.mxu0
        %v2871 = vadd.f32 %v2822, %v2870
        %2872 = vdwg.mxu0
        %2873 = vmatpush.bf16.msra.mxu0 %v2702
        %2874 = vmatpush.bf16.msra.mxu0 %v2701
        %2875 = vmatpush.bf16.msra.mxu0 %v2700
        %2876 = vmatpush.bf16.msra.mxu0 %v2699
        %2877 = vmatpush.bf16.msra.mxu0 %v2698
        %2878 = vmatpush.bf16.msra.mxu0 %v2697
        %2879 = vmatpush.bf16.msra.mxu0 %v2696
        %2880 = vmatpush.bf16.msra.mxu0 %v2695
        %2881 = vmatmul.bf16.gmra.mxu0 %v751
        %v2882 = vpop.f32.mrf.mxu0
        %v2883 = vadd.f32 %v2834, %v2882
        %v2884 = vpop.f32.mrf.mxu0
        %v2885 = vadd.f32 %v2836, %v2884
        %2886 = vmatmul.bf16.gmra.mxu0 %v775
        %v2887 = vpop.f32.mrf.mxu0
        %v2888 = vadd.f32 %v2839, %v2887
        %v2889 = vpop.f32.mrf.mxu0
        %v2890 = vadd.f32 %v2841, %v2889
        %2891 = vmatmul.bf16.gmra.mxu0 %v799
        %v2892 = vpop.f32.mrf.mxu0
        %v2893 = vadd.f32 %v2844, %v2892
        %v2894 = vpop.f32.mrf.mxu0
        %v2895 = vadd.f32 %v2846, %v2894
        %2896 = vmatmul.bf16.gmra.mxu0 %v823
        %v2897 = vpop.f32.mrf.mxu0
        %v2898 = vadd.f32 %v2849, %v2897
        %v2899 = vpop.f32.mrf.mxu0
        %v2900 = vadd.f32 %v2851, %v2899
        %2901 = vmatmul.bf16.gmra.mxu0 %v847
        %v2902 = vpop.f32.mrf.mxu0
        %v2903 = vadd.f32 %v2854, %v2902
        %v2904 = vpop.f32.mrf.mxu0
        %v2905 = vadd.f32 %v2856, %v2904
        %2906 = vmatmul.bf16.gmra.mxu0 %v871
        %v2907 = vpop.f32.mrf.mxu0
        %v2908 = vadd.f32 %v2859, %v2907
        %v2909 = vpop.f32.mrf.mxu0
        %v2910 = vadd.f32 %v2861, %v2909
        %2911 = vmatmul.bf16.gmra.mxu0 %v895
        %v2912 = vpop.f32.mrf.mxu0
        %v2913 = vadd.f32 %v2864, %v2912
        %v2914 = vpop.f32.mrf.mxu0
        %v2915 = vadd.f32 %v2866, %v2914
        %2916 = vmatmul.bf16.gmra.mxu0 %v919
        %v2917 = vpop.f32.mrf.mxu0
        %v2918 = vadd.f32 %v2869, %v2917
        %v2919 = vpop.f32.mrf.mxu0
        %v2920 = vadd.f32 %v2871, %v2919
        %2921 = vdwg.mxu0
        %2922 = vmatpush.bf16.msra.mxu0 %v2710
        %2923 = vmatpush.bf16.msra.mxu0 %v2709
        %2924 = vmatpush.bf16.msra.mxu0 %v2708
        %2925 = vmatpush.bf16.msra.mxu0 %v2707
        %2926 = vmatpush.bf16.msra.mxu0 %v2706
        %2927 = vmatpush.bf16.msra.mxu0 %v2705
        %2928 = vmatpush.bf16.msra.mxu0 %v2704
        %2929 = vmatpush.bf16.msra.mxu0 %v2703
        %2930 = vmatmul.bf16.gmra.mxu0 %v763
        %v2931 = vpop.f32.mrf.mxu0
        %v2932 = vadd.f32 %v2883, %v2931
        %v2933 = vpop.f32.mrf.mxu0
        %v2934 = vadd.f32 %v2885, %v2933
        %2935 = vmatmul.bf16.gmra.mxu0 %v787
        %v2936 = vpop.f32.mrf.mxu0
        %v2937 = vadd.f32 %v2888, %v2936
        %v2938 = vpop.f32.mrf.mxu0
        %v2939 = vadd.f32 %v2890, %v2938
        %2940 = vmatmul.bf16.gmra.mxu0 %v811
        %v2941 = vpop.f32.mrf.mxu0
        %v2942 = vadd.f32 %v2893, %v2941
        %v2943 = vpop.f32.mrf.mxu0
        %v2944 = vadd.f32 %v2895, %v2943
        %2945 = vmatmul.bf16.gmra.mxu0 %v835
        %v2946 = vpop.f32.mrf.mxu0
        %v2947 = vadd.f32 %v2898, %v2946
        %v2948 = vpop.f32.mrf.mxu0
        %v2949 = vadd.f32 %v2900, %v2948
        %2950 = vmatmul.bf16.gmra.mxu0 %v859
        %v2951 = vpop.f32.mrf.mxu0
        %v2952 = vadd.f32 %v2903, %v2951
        %v2953 = vpop.f32.mrf.mxu0
        %v2954 = vadd.f32 %v2905, %v2953
        %2955 = vmatmul.bf16.gmra.mxu0 %v883
        %v2956 = vpop.f32.mrf.mxu0
        %v2957 = vadd.f32 %v2908, %v2956
        %v2958 = vpop.f32.mrf.mxu0
        %v2959 = vadd.f32 %v2910, %v2958
        %2960 = vmatmul.bf16.gmra.mxu0 %v907
        %v2961 = vpop.f32.mrf.mxu0
        %v2962 = vadd.f32 %v2913, %v2961
        %v2963 = vpop.f32.mrf.mxu0
        %v2964 = vadd.f32 %v2915, %v2963
        %2965 = vmatmul.bf16.gmra.mxu0 %v931
        %v2966 = vpop.f32.mrf.mxu0
        %v2967 = vadd.f32 %v2918, %v2966
        %v2968 = vpop.f32.mrf.mxu0
        %v2969 = vadd.f32 %v2920, %v2968
        %2970 = vdwg.mxu0
        %2971 = vmatpush.bf16.msra.mxu0 %v2718
        %2972 = vmatpush.bf16.msra.mxu0 %v2717
        %2973 = vmatpush.bf16.msra.mxu0 %v2716
        %2974 = vmatpush.bf16.msra.mxu0 %v2715
        %2975 = vmatpush.bf16.msra.mxu0 %v2714
        %2976 = vmatpush.bf16.msra.mxu0 %v2713
        %2977 = vmatpush.bf16.msra.mxu0 %v2712
        %2978 = vmatpush.bf16.msra.mxu0 %v2711
        %2979 = vmatmul.bf16.gmra.mxu0 %v967
        %v2980 = vpop.f32.mrf.mxu0
        %v2981 = vadd.f32 %v2932, %v2980
        %v2982 = vpop.f32.mrf.mxu0
        %v2983 = vadd.f32 %v2934, %v2982
        %2984 = vmatmul.bf16.gmra.mxu0 %v973
        %v2985 = vpop.f32.mrf.mxu0
        %v2986 = vadd.f32 %v2937, %v2985
        %v2987 = vpop.f32.mrf.mxu0
        %v2988 = vadd.f32 %v2939, %v2987
        %2989 = vmatmul.bf16.gmra.mxu0 %v979
        %v2990 = vpop.f32.mrf.mxu0
        %v2991 = vadd.f32 %v2942, %v2990
        %v2992 = vpop.f32.mrf.mxu0
        %v2993 = vadd.f32 %v2944, %v2992
        %2994 = vmatmul.bf16.gmra.mxu0 %v985
        %v2995 = vpop.f32.mrf.mxu0
        %v2996 = vadd.f32 %v2947, %v2995
        %v2997 = vpop.f32.mrf.mxu0
        %v2998 = vadd.f32 %v2949, %v2997
        %2999 = vmatmul.bf16.gmra.mxu0 %v991
        %v3000 = vpop.f32.mrf.mxu0
        %v3001 = vadd.f32 %v2952, %v3000
        %v3002 = vpop.f32.mrf.mxu0
        %v3003 = vadd.f32 %v2954, %v3002
        %3004 = vmatmul.bf16.gmra.mxu0 %v997
        %v3005 = vpop.f32.mrf.mxu0
        %v3006 = vadd.f32 %v2957, %v3005
        %v3007 = vpop.f32.mrf.mxu0
        %v3008 = vadd.f32 %v2959, %v3007
        %3009 = vmatmul.bf16.gmra.mxu0 %v1003
        %v3010 = vpop.f32.mrf.mxu0
        %v3011 = vadd.f32 %v2962, %v3010
        %v3012 = vpop.f32.mrf.mxu0
        %v3013 = vadd.f32 %v2964, %v3012
        %3014 = vmatmul.bf16.gmra.mxu0 %v1009
        %v3015 = vpop.f32.mrf.mxu0
        %v3016 = vadd.f32 %v2967, %v3015
        %v3017 = vpop.f32.mrf.mxu0
        %v3018 = vadd.f32 %v2969, %v3017
        %3019 = vdwg.mxu0
        %3020 = vmatpush.bf16.msra.mxu0 %v2726
        %3021 = vmatpush.bf16.msra.mxu0 %v2725
        %3022 = vmatpush.bf16.msra.mxu0 %v2724
        %3023 = vmatpush.bf16.msra.mxu0 %v2723
        %3024 = vmatpush.bf16.msra.mxu0 %v2722
        %3025 = vmatpush.bf16.msra.mxu0 %v2721
        %3026 = vmatpush.bf16.msra.mxu0 %v2720
        %3027 = vmatpush.bf16.msra.mxu0 %v2719
        %3028 = vmatmul.bf16.gmra.mxu0 %v970
        %v3029 = vpop.f32.mrf.mxu0
        %v3030 = vadd.f32 %v2981, %v3029
        %v3031 = vpop.f32.mrf.mxu0
        %v3032 = vadd.f32 %v2983, %v3031
        %3033 = vmatmul.bf16.gmra.mxu0 %v976
        %v3034 = vpop.f32.mrf.mxu0
        %v3035 = vadd.f32 %v2986, %v3034
        %v3036 = vpop.f32.mrf.mxu0
        %v3037 = vadd.f32 %v2988, %v3036
        %3038 = vmatmul.bf16.gmra.mxu0 %v982
        %v3039 = vpop.f32.mrf.mxu0
        %v3040 = vadd.f32 %v2991, %v3039
        %v3041 = vpop.f32.mrf.mxu0
        %v3042 = vadd.f32 %v2993, %v3041
        %3043 = vmatmul.bf16.gmra.mxu0 %v988
        %v3044 = vpop.f32.mrf.mxu0
        %v3045 = vadd.f32 %v2996, %v3044
        %v3046 = vpop.f32.mrf.mxu0
        %v3047 = vadd.f32 %v2998, %v3046
        %3048 = vmatmul.bf16.gmra.mxu0 %v994
        %v3049 = vpop.f32.mrf.mxu0
        %v3050 = vadd.f32 %v3001, %v3049
        %v3051 = vpop.f32.mrf.mxu0
        %v3052 = vadd.f32 %v3003, %v3051
        %3053 = vmatmul.bf16.gmra.mxu0 %v1000
        %v3054 = vpop.f32.mrf.mxu0
        %v3055 = vadd.f32 %v3006, %v3054
        %v3056 = vpop.f32.mrf.mxu0
        %v3057 = vadd.f32 %v3008, %v3056
        %3058 = vmatmul.bf16.gmra.mxu0 %v1006
        %v3059 = vpop.f32.mrf.mxu0
        %v3060 = vadd.f32 %v3011, %v3059
        %v3061 = vpop.f32.mrf.mxu0
        %v3062 = vadd.f32 %v3013, %v3061
        %3063 = vmatmul.bf16.gmra.mxu0 %v1012
        %v3064 = vpop.f32.mrf.mxu0
        %v3065 = vadd.f32 %v3016, %v3064
        %v3066 = vpop.f32.mrf.mxu0
        %v3067 = vadd.f32 %v3018, %v3066
        %3068 = vdwg.mxu0
        %v3069 = vadd.f32 %v2351, %v3030
        %v3070 = vadd.f32 %v2353, %v3032
        %v3071 = vadd.f32 %v2356, %v3035
        %v3072 = vadd.f32 %v2358, %v3037
        %v3073 = vadd.f32 %v2361, %v3040
        %v3074 = vadd.f32 %v2363, %v3042
        %v3075 = vadd.f32 %v2366, %v3045
        %v3076 = vadd.f32 %v2368, %v3047
        %v3077 = vadd.f32 %v2371, %v3050
        %v3078 = vadd.f32 %v2373, %v3052
        %v3079 = vadd.f32 %v2376, %v3055
        %v3080 = vadd.f32 %v2378, %v3057
        %v3081 = vadd.f32 %v2381, %v3060
        %v3082 = vadd.f32 %v2383, %v3062
        %v3083 = vadd.f32 %v2386, %v3065
        %v3084 = vadd.f32 %v2388, %v3067
        %v3085 = vadd.f32 %v495, %v3069
        %v3086 = vadd.f32 %v496, %v3070
        %v3087 = vadd.f32 %v497, %v3071
        %v3088 = vadd.f32 %v498, %v3072
        %v3089 = vadd.f32 %v499, %v3073
        %v3090 = vadd.f32 %v500, %v3074
        %v3091 = vadd.f32 %v501, %v3075
        %v3092 = vadd.f32 %v502, %v3076
        %v3093 = vadd.f32 %v503, %v3077
        %v3094 = vadd.f32 %v504, %v3078
        %v3095 = vadd.f32 %v505, %v3079
        %v3096 = vadd.f32 %v506, %v3080
        %v3097 = vadd.f32 %v507, %v3081
        %v3098 = vadd.f32 %v508, %v3082
        %v3099 = vadd.f32 %v509, %v3083
        %v3100 = vadd.f32 %v510, %v3084
        %3101 = vst [vmem:[#allocation2] sm:$0xff] %v3085
        %3102 = vst [vmem:[#allocation2 + $0x8] sm:$0xff] %v3086
        %3103 = vst [vmem:[#allocation2 + $0x10] sm:$0xff] %v3087
        %3104 = vst [vmem:[#allocation2 + $0x18] sm:$0xff] %v3088
        %3105 = vst [vmem:[#allocation2 + $0x20] sm:$0xff] %v3089
        %3106 = vst [vmem:[#allocation2 + $0x28] sm:$0xff] %v3090
        %3107 = vst [vmem:[#allocation2 + $0x30] sm:$0xff] %v3091
        %3108 = vst [vmem:[#allocation2 + $0x38] sm:$0xff] %v3092
        %3109 = vst [vmem:[#allocation2 + $0x40] sm:$0xff] %v3093
        %3110 = vst [vmem:[#allocation2 + $0x48] sm:$0xff] %v3094
        %3111 = vst [vmem:[#allocation2 + $0x50] sm:$0xff] %v3095
        %3112 = vst [vmem:[#allocation2 + $0x58] sm:$0xff] %v3096
        %3113 = vst [vmem:[#allocation2 + $0x60] sm:$0xff] %v3097
        %3114 = vst [vmem:[#allocation2 + $0x68] sm:$0xff] %v3098
        %3115 = vst [vmem:[#allocation2 + $0x70] sm:$0xff] %v3099
        %3116 = vst [vmem:[#allocation2 + $0x78] sm:$0xff] %v3100
        %p3117 = scmp.eq.s32.totalorder %s29, 1
        // Predicated region
        $region91: #{tpu_custom_call.1} parent=69 // pred_check
          %p3118 = pneg %p3117
        $region92: #{tpu_custom_call.1} parent=69 // pred_check_branch
          %3120 = sbr.rel (%p3118) target = $region94
        $region93: #{tpu_custom_call.1} parent=69 // pred_region
          %v3121 = vld [vmem:[#allocation2] sm:$0xff]
          %v3122 = vld [vmem:[#allocation2 + $0x8] sm:$0xff]
          %v3123 = vld [vmem:[#allocation2 + $0x10] sm:$0xff]
          %v3124 = vld [vmem:[#allocation2 + $0x18] sm:$0xff]
          %v3125 = vld [vmem:[#allocation2 + $0x20] sm:$0xff]
          %v3126 = vld [vmem:[#allocation2 + $0x28] sm:$0xff]
          %v3127 = vld [vmem:[#allocation2 + $0x30] sm:$0xff]
          %v3128 = vld [vmem:[#allocation2 + $0x38] sm:$0xff]
          %v3129 = vld [vmem:[#allocation2 + $0x40] sm:$0xff]
          %v3130 = vld [vmem:[#allocation2 + $0x48] sm:$0xff]
          %v3131 = vld [vmem:[#allocation2 + $0x50] sm:$0xff]
          %v3132 = vld [vmem:[#allocation2 + $0x58] sm:$0xff]
          %v3133 = vld [vmem:[#allocation2 + $0x60] sm:$0xff]
          %v3134 = vld [vmem:[#allocation2 + $0x68] sm:$0xff]
          %v3135 = vld [vmem:[#allocation2 + $0x70] sm:$0xff]
          %v3136 = vld [vmem:[#allocation2 + $0x78] sm:$0xff]
          %v3137 = vld [vmem:[#allocation7] sm:$0x1]
          %v3139 = vperm.slane %v3137, 0
          %v3141 = vmul.f32 %v3121, %v3139
          %v3142 = vmul.f32 %v3122, %v3139
          %v3143 = vmul.f32 %v3123, %v3139
          %v3144 = vmul.f32 %v3124, %v3139
          %v3145 = vmul.f32 %v3125, %v3139
          %v3146 = vmul.f32 %v3126, %v3139
          %v3147 = vmul.f32 %v3127, %v3139
          %v3148 = vmul.f32 %v3128, %v3139
          %v3149 = vmul.f32 %v3129, %v3139
          %v3150 = vmul.f32 %v3130, %v3139
          %v3151 = vmul.f32 %v3131, %v3139
          %v3152 = vmul.f32 %v3132, %v3139
          %v3153 = vmul.f32 %v3133, %v3139
          %v3154 = vmul.f32 %v3134, %v3139
          %v3155 = vmul.f32 %v3135, %v3139
          %v3156 = vmul.f32 %v3136, %v3139
          %v3157 = vld [vmem:[#allocation9] sm:$0x1]
          %v3159 = vperm.slane %v3157, 0
          %v3161 = vadd.f32 %v3141, %v3159
          %v3162 = vadd.f32 %v3142, %v3159
          %v3163 = vadd.f32 %v3143, %v3159
          %v3164 = vadd.f32 %v3144, %v3159
          %v3165 = vadd.f32 %v3145, %v3159
          %v3166 = vadd.f32 %v3146, %v3159
          %v3167 = vadd.f32 %v3147, %v3159
          %v3168 = vadd.f32 %v3148, %v3159
          %v3169 = vadd.f32 %v3149, %v3159
          %v3170 = vadd.f32 %v3150, %v3159
          %v3171 = vadd.f32 %v3151, %v3159
          %v3172 = vadd.f32 %v3152, %v3159
          %v3173 = vadd.f32 %v3153, %v3159
          %v3174 = vadd.f32 %v3154, %v3159
          %v3175 = vadd.f32 %v3155, %v3159
          %v3176 = vadd.f32 %v3156, %v3159
          %3177 = vst [vmem:[%s472] sm:$0xff] %v3161
          %3178 = vst [vmem:[%s472 + $0x8] sm:$0xff] %v3162
          %3179 = vst [vmem:[%s472 + $0x10] sm:$0xff] %v3163
          %3180 = vst [vmem:[%s472 + $0x18] sm:$0xff] %v3164
          %3181 = vst [vmem:[%s472 + $0x20] sm:$0xff] %v3165
          %3182 = vst [vmem:[%s472 + $0x28] sm:$0xff] %v3166
          %3183 = vst [vmem:[%s472 + $0x30] sm:$0xff] %v3167
          %3184 = vst [vmem:[%s472 + $0x38] sm:$0xff] %v3168
          %3185 = vst [vmem:[%s472 + $0x40] sm:$0xff] %v3169
          %3186 = vst [vmem:[%s472 + $0x48] sm:$0xff] %v3170
          %3187 = vst [vmem:[%s472 + $0x50] sm:$0xff] %v3171
          %3188 = vst [vmem:[%s472 + $0x58] sm:$0xff] %v3172
          %3189 = vst [vmem:[%s472 + $0x60] sm:$0xff] %v3173
          %3190 = vst [vmem:[%s472 + $0x68] sm:$0xff] %v3174
          %3191 = vst [vmem:[%s472 + $0x70] sm:$0xff] %v3175
          %3192 = vst [vmem:[%s472 + $0x78] sm:$0xff] %v3176
        $region94: #{tpu_custom_call.1} parent=69 // pred_fallthru
          _
        %s3193 = sand.u32 %s149, 1
        %s3194 = scalar_lea.sflag [#allocation6], %s3193
        %s3195 = sand.u32 %s149, 1
        %s3196 = smul.addr %s3195, 128
        %s3197 = scalar_lea.vmem [#allocation10], %s3196
        // Predicated region
        $region95: #{tpu_custom_call.1} parent=69 // pred_check
          %p3198 = pneg %p159
        $region96: #{tpu_custom_call.1} parent=69 // pred_check_branch
          %3200 = sbr.rel (%p3198) target = $region98
        $region97: #{tpu_custom_call.1} parent=69 // pred_region
          %s3201 = smul.u32 8, %s28
          %3203 = vsyncadd %s3194, 0
          %s3204 = smul.addr %s3201, 2
          %s3205 = smul.addr %s27, 32
          %s3206 = sadd.s32 %s3204, %s3205
          %s3207 = smul.addr %s3206, 8
          %s3208 = scalar_lea.hbm %s4, %s3207
          %s3209 = sshll.u32 %s3197, 4
          %s3210 = int_to_ptr.vmem [resolvable:$true] %s3209
          %s3211 = sshll.u32 %s3208, 4
          %s3212 = int_to_ptr.hbm [resolvable:$true] %s3211
          %3217 = dma.vmem_to_hbm [thread:$0]  %s3210, 2048, %s3212, %s3194, 128, 128, 8
        $region98: #{tpu_custom_call.1} parent=69 // pred_fallthru
          _
      $region70: #{tpu_custom_call.1} parent=5 // pred_fallthru
        _
      %p3218 = scmp.le.s32.totalorder 2, %s17
      // Predicated region
      $region99: #{tpu_custom_call.1} parent=5 // pred_check
        %p3219 = pneg %p3218
      $region100: #{tpu_custom_call.1} parent=5 // pred_check_branch
        %3221 = sbr.rel (%p3219) target = $region102
      $region101: #{tpu_custom_call.1} parent=5 // pred_region
        %s3222 = ssub.s32 %s17, 2
        // Predicated region
        $region103: #{tpu_custom_call.1} parent=101 // pred_check
          %p3223 = pneg %p165
        $region104: #{tpu_custom_call.1} parent=101 // pred_check_branch
          %3225 = sbr.rel (%p3223) target = $region106
        $region105: #{tpu_custom_call.1} parent=101 // pred_region
          %s3226 = sand.u32 %s150, 1
          %s3227 = scalar_lea.sflag [#allocation6], %s3226
          %s3228 = sand.u32 %s150, 1
          %s3229 = smul.addr %s3228, 128
          %s3230 = scalar_lea.vmem [#allocation10], %s3229
          %3232 = dma.done %s3227, 2048
        $region106: #{tpu_custom_call.1} parent=101 // pred_fallthru
          _
      $region102: #{tpu_custom_call.1} parent=5 // pred_fallthru
        _
    $region6: #{tpu_custom_call.1} parent=1 // loop_footer
      %s21 = sadd.s32 1, %s17
    $region7: #{tpu_custom_call.1} parent=1 // loop_footer_branch
      %16 = sbr.rel target = $region3
    $region8: #{tpu_custom_call.1} parent=1 // loop_exit
      _
    %3233 = vsyncpa [#allocation5], 1
    %s3234 = scalar_lea.sflag [#allocation5], 1
    %3235 = vsyncpa %s3234, 1
    %3236 = vsyncpa [#allocation8], 1
    %3237 = vsyncpa [#allocation6], 1
    %s3238 = scalar_lea.sflag [#allocation6], 1
    %3239 = vsyncpa %s3238, 1

</llo_original>
